<compile_context>
chip_gen: v7x
topology: tpu7x:2x2x1
jax: 0.10.0
libtpu: 0.0.40
codegen_flags: <defaults>
</compile_context>

<pallas_src>
import functools

import jax
import jax.numpy as jnp
from jax.experimental import pallas as pl
from jax.experimental.pallas import tpu as pltpu


# ----------------------------------------------------------------------------
# Fused 2-layer GRU kernel (all mask branches stacked on the batch axis)
# ----------------------------------------------------------------------------
def _fused_gru_kernel(x_ref, keep_ref, wih1_ref, whh1_ref, b1_ref,
                      wih2_ref, whh2_ref, b2_ref, out_ref):
    """One grid step == one independent group of mask branches.

    x_ref    : (T, Bb, C)    masked inputs, parts stacked on the batch axis
    keep_ref : (T, Bb, C)    1.0 where this branch's output is kept, else 0.0
    wih1_ref : (3, C,  H1)   layer-1 input  weights, gate axis = (r, z, n), bf16
    whh1_ref : (3, H1, H1)   layer-1 hidden weights, bf16
    b1_ref   : (4, H1)       rows = [b_ir+b_hr, b_iz+b_hz, b_in, b_hn], f32
    wih2_ref : (3, H1, C)    layer-2 input  weights, bf16
    whh2_ref : (3, C,  C)    layer-2 hidden weights, bf16
    b2_ref   : (4, C)        layer-2 biases, same packing as b1, f32
    out_ref  : (1, T, L, C)  mask-weighted sum over the parts in this block
    """
    f32 = jnp.float32
    bf16 = jnp.bfloat16

    T, Bb, C = x_ref.shape
    L = out_ref.shape[2]
    H1 = whh1_ref.shape[1]
    n_parts = Bb // L

    # Weights / biases: load once, stay resident for the whole recurrence.
    wih1 = wih1_ref[...]
    whh1 = whh1_ref[...]
    wih2 = wih2_ref[...]
    whh2 = whh2_ref[...]
    b1 = b1_ref[...]
    b2 = b2_ref[...]
    b1_r, b1_z, b1_in, b1_hn = (b1[i:i + 1, :] for i in range(4))
    b2_r, b2_z, b2_in, b2_hn = (b2[i:i + 1, :] for i in range(4))

    # ---- hoisted layer-1 input projection -----------------------------------
    # One (T*Bb, C) x (C, H1) MXU matmul per gate instead of T tiny ones;
    # the time-invariant input/combined biases are folded in here.
    x_flat = x_ref[...].reshape(T * Bb, C).astype(bf16)
    gi1_r = jnp.dot(x_flat, wih1[0], preferred_element_type=f32) + b1_r
    gi1_z = jnp.dot(x_flat, wih1[1], preferred_element_type=f32) + b1_z
    gi1_n = jnp.dot(x_flat, wih1[2], preferred_element_type=f32) + b1_in

    h1 = jnp.zeros((Bb, H1), f32)
    h2 = jnp.zeros((Bb, C), f32)

    # T is small and static -> fully unrolled; only the unavoidable h @ W_hh
    # recurrence matmuls remain per timestep.
    for t in range(T):
        row = t * Bb   # Bb is a multiple of 8 -> sublane-aligned static slices

        # ---- layer 1 cell (input size C, hidden H1) ----
        h1b = h1.astype(bf16)
        gh1_r = jnp.dot(h1b, whh1[0], preferred_element_type=f32)
        gh1_z = jnp.dot(h1b, whh1[1], preferred_element_type=f32)
        gh1_n = jnp.dot(h1b, whh1[2], preferred_element_type=f32)
        r1 = jax.nn.sigmoid(gi1_r[row:row + Bb] + gh1_r)
        z1 = jax.nn.sigmoid(gi1_z[row:row + Bb] + gh1_z)
        n1 = jnp.tanh(gi1_n[row:row + Bb] + r1 * (gh1_n + b1_hn))
        h1 = (1.0 - z1) * n1 + z1 * h1

        # ---- layer 2 cell (input size H1, hidden C), fed directly by h1 ----
        h1c = h1.astype(bf16)
        h2b = h2.astype(bf16)
        r2 = jax.nn.sigmoid(jnp.dot(h1c, wih2[0], preferred_element_type=f32)
                            + jnp.dot(h2b, whh2[0], preferred_element_type=f32)
                            + b2_r)
        z2 = jax.nn.sigmoid(jnp.dot(h1c, wih2[1], preferred_element_type=f32)
                            + jnp.dot(h2b, whh2[1], preferred_element_type=f32)
                            + b2_z)
        n2 = jnp.tanh(jnp.dot(h1c, wih2[2], preferred_element_type=f32) + b2_in
                      + r2 * (jnp.dot(h2b, whh2[2], preferred_element_type=f32)
                              + b2_hn))
        h2 = (1.0 - z2) * n2 + z2 * h2

        # ---- mask-weighted sum over the parts stacked in this block ----
        contrib = h2 * keep_ref[t]                    # (Bb, C)
        out_t = contrib[0:L]
        for p in range(1, n_parts):
            out_t = out_t + contrib[p * L:(p + 1) * L]
        out_ref[0, t, :, :] = out_t.astype(out_ref.dtype)


# ----------------------------------------------------------------------------
# Parameter packing: PyTorch nn.GRU layout -> per-gate kernel layout
# ----------------------------------------------------------------------------
def pack_gru_params(params, matmul_dtype=jnp.bfloat16):
    """params: w_ih (3H, Cin), w_hh (3H, H), b_ih/b_hh (3H,), gate order (r,z,n).

    Returns wih (3, Cin, H), whh (3, H, H) in matmul_dtype and a (4, H) f32
    bias with rows [b_ir+b_hr, b_iz+b_hz, b_in, b_hn].
    """
    w_ih = jnp.asarray(params["w_ih"], jnp.float32)
    w_hh = jnp.asarray(params["w_hh"], jnp.float32)
    b_ih = jnp.asarray(params["b_ih"], jnp.float32)
    b_hh = jnp.asarray(params["b_hh"], jnp.float32)
    H = w_hh.shape[1]
    wih = jnp.stack([w_ih[g * H:(g + 1) * H, :].T for g in range(3)])
    whh = jnp.stack([w_hh[g * H:(g + 1) * H, :].T for g in range(3)])
    bias = jnp.stack([
        b_ih[0 * H:1 * H] + b_hh[0 * H:1 * H],   # r (input+hidden pre-added)
        b_ih[1 * H:2 * H] + b_hh[1 * H:2 * H],   # z (input+hidden pre-added)
        b_ih[2 * H:3 * H],                       # n input bias
        b_hh[2 * H:3 * H],                       # n hidden bias (scaled by r)
    ])
    return wih.astype(matmul_dtype), whh.astype(matmul_dtype), bias


# ----------------------------------------------------------------------------
# Full forward: sum over 6 parts of mask_i * GRU2(GRU1(x masked_fill(mask_i, 0)))
# — one fused pallas_call for all parts and both layers.
# ----------------------------------------------------------------------------
def gru_model_forward(x, gru1, gru2, masks, *, num_blocks=2):
    T, L, C = x.shape            # (b, l, c); b is the nn.GRU time axis
    P = masks.shape[0]
    if P % num_blocks != 0:
        num_blocks = 1
    H1 = gru1["w_hh"].shape[1]
    B = P * L
    Bb = B // num_blocks
    assert num_blocks == 1 or Bb % 8 == 0, "batch block must be sublane aligned"

    keep = masks.astype(jnp.float32)                 # (P, T, L, C)
    x_masked = x[None, :, :, :] * (1.0 - keep)       # x.masked_fill(mask, 0)
    # stack the P independent mask branches into the GRU batch axis
    x_st = jnp.transpose(x_masked, (1, 0, 2, 3)).reshape(T, B, C)
    keep_st = jnp.transpose(keep, (1, 0, 2, 3)).reshape(T, B, C)

    wih1, whh1, b1 = pack_gru_params(gru1)
    wih2, whh2, b2 = pack_gru_params(gru2)

    const3 = lambda nb: (0, 0, 0)
    const2 = lambda nb: (0, 0)

    partial_out = pl.pallas_call(
        _fused_gru_kernel,
        out_shape=jax.ShapeDtypeStruct((num_blocks, T, L, C), x.dtype),
        grid_spec=pltpu.PrefetchScalarGridSpec(
            num_scalar_prefetch=0,
            grid=(num_blocks,),
            in_specs=[
                pl.BlockSpec((T, Bb, C), lambda nb: (0, nb, 0)),
                pl.BlockSpec((T, Bb, C), lambda nb: (0, nb, 0)),
                pl.BlockSpec((3, C, H1), const3),
                pl.BlockSpec((3, H1, H1), const3),
                pl.BlockSpec((4, H1), const2),
                pl.BlockSpec((3, H1, C), const3),
                pl.BlockSpec((3, C, C), const3),
                pl.BlockSpec((4, C), const2),
            ],
            out_specs=pl.BlockSpec((1, T, L, C), lambda nb: (nb, 0, 0, 0)),
        ),
        # Blocks hold disjoint mask groups -> fully independent; "parallel"
        # lets v7x shard them across its two TensorCores (sequential & cheap
        # on single-TC v5e/v6e).
        compiler_params=pltpu.CompilerParams(
            dimension_semantics=("parallel",)),
    )(x_st, keep_st, wih1, whh1, b1, wih2, whh2, b2)

    return jnp.sum(partial_out, axis=0)


# ----------------------------------------------------------------------------
# Parameter init (nn.GRU shapes; uniform(-k, k), k = 1/sqrt(H))
# ----------------------------------------------------------------------------
def init_gru_params(key, input_size, hidden_size):
    k = 1.0 / jnp.sqrt(jnp.float32(hidden_size))
    k_wih, k_whh, k_bih, k_bhh = jax.random.split(key, 4)
    return dict(
        w_ih=jax.random.uniform(k_wih, (3 * hidden_size, input_size),
                                jnp.float32, -k, k),
        w_hh=jax.random.uniform(k_whh, (3 * hidden_size, hidden_size),
                                jnp.float32, -k, k),
        b_ih=jax.random.uniform(k_bih, (3 * hidden_size,), jnp.float32, -k, k),
        b_hh=jax.random.uniform(k_bhh, (3 * hidden_size,), jnp.float32, -k, k),
    )


# ----------------------------------------------------------------------------
# creatMaskEvenSplit equivalent: partition all (b, l, c) positions into `part`
# disjoint random subsets of equal size (jax PRNG instead of random.sample).
# ----------------------------------------------------------------------------
def create_even_split_masks(key, shape, part=6):
    b, l, c = shape
    n = b * l * c
    assert n % part == 0, "even split requires b*l*c divisible by part"
    slice_num = n // part
    perm = jax.random.permutation(key, n)
    part_ids = jnp.zeros((n,), jnp.int32).at[perm].set(
        jnp.arange(n, dtype=jnp.int32) // slice_num)
    masks = part_ids[None, :] == jnp.arange(part, dtype=jnp.int32)[:, None]
    return masks.reshape(part, b, l, c)


# ----------------------------------------------------------------------------
# Pure-JAX f32 reference (matches PyTorch nn.GRU semantics) for validation
# ----------------------------------------------------------------------------
def _gru_layer_ref(x, params):
    T, Lb, _ = x.shape
    H = params["w_hh"].shape[1]
    wih, whh = params["w_ih"].T, params["w_hh"].T
    b_ih, b_hh = params["b_ih"], params["b_hh"]
    h = jnp.zeros((Lb, H), jnp.float32)
    outs = []
    for t in range(T):
        gi = x[t] @ wih + b_ih
        gh = h @ whh + b_hh
        r = jax.nn.sigmoid(gi[:, :H] + gh[:, :H])
        z = jax.nn.sigmoid(gi[:, H:2 * H] + gh[:, H:2 * H])
        n = jnp.tanh(gi[:, 2 * H:] + r * gh[:, 2 * H:])
        h = (1.0 - z) * n + z * h
        outs.append(h)
    return jnp.stack(outs)


def gru_model_reference(x, gru1, gru2, masks):
    acc = jnp.zeros_like(x)
    for i in range(masks.shape[0]):
        m = masks[i]
        x_i = jnp.where(m, 0.0, x)
        h1 = _gru_layer_ref(x_i, gru1)
        h2 = _gru_layer_ref(h1, gru2)
        acc = acc + jnp.where(m, h2, 0.0)
    return acc


if __name__ == "__main__":
    # x is (b, l, c) with c == hidC; b (=6) is the time axis for nn.GRU
    # (batch_first=False) and b*l*c is divisible by 6 for the even mask split.
    b, l = 6, 8
    hidC, hidR = 16, 32

    root = jax.random.PRNGKey(0)
    k_x, k_mask, k_g1, k_g2 = jax.random.split(root, 4)

    x = jax.random.normal(k_x, (b, l, hidC), jnp.float32)
    gru1 = init_gru_params(k_g1, hidC, hidR)   # nn.GRU(hidC, hidR)
    gru2 = init_gru_params(k_g2, hidR, hidC)   # nn.GRU(hidR, hidC)
    masks = create_even_split_masks(k_mask, (b, l, hidC), part=6)

    fwd = jax.jit(functools.partial(gru_model_forward, num_blocks=2))
    out = jax.block_until_ready(fwd(x, gru1, gru2, masks))

    assert out.shape == (b, l, hidC)
    assert bool(jnp.all(jnp.isfinite(out)))

    # Numerical check vs pure-f32 reference (kernel matmul inputs are bf16).
    ref = gru_model_reference(x, gru1, gru2, masks)
    max_err = float(jnp.max(jnp.abs(out - ref)))
    assert max_err < 5e-2, f"max abs err vs reference: {max_err}"

    print("KERNEL_OK")
</pallas_src>

<mosaic_0001>
module attributes {stable_mosaic.version = 11 : i64} {
  func.func @_fused_gru_kernel(%arg0: i32, %arg1: memref<6x24x16xf32, #tpu.memory_space<vmem>>, %arg2: memref<6x24x16xf32, #tpu.memory_space<vmem>>, %arg3: memref<3x16x32xbf16, #tpu.memory_space<vmem>>, %arg4: memref<3x32x32xbf16, #tpu.memory_space<vmem>>, %arg5: memref<4x32xf32, #tpu.memory_space<vmem>>, %arg6: memref<3x32x16xbf16, #tpu.memory_space<vmem>>, %arg7: memref<3x16x16xbf16, #tpu.memory_space<vmem>>, %arg8: memref<4x16xf32, #tpu.memory_space<vmem>>, %arg9: memref<1x6x8x16xf32, #tpu.memory_space<vmem>>) attributes {dimension_semantics = [#tpu.dimension_semantics<parallel>], iteration_bounds = array<i64: 2>, scalar_prefetch = 0 : i64, scratch_operands = 0 : i64, tpu.core_type = #tpu.core_type<tc>, window_params = [{transform_indices = @transform_0, window_bounds = array<i64: 6, 24, 16>}, {transform_indices = @transform_1, window_bounds = array<i64: 6, 24, 16>}, {pipeline_mode = #tpu.pipeline_mode<synchronous>, transform_indices = @transform_2, window_bounds = array<i64: 3, 16, 32>}, {pipeline_mode = #tpu.pipeline_mode<synchronous>, transform_indices = @transform_3, window_bounds = array<i64: 3, 32, 32>}, {pipeline_mode = #tpu.pipeline_mode<synchronous>, transform_indices = @transform_4, window_bounds = array<i64: 4, 32>}, {pipeline_mode = #tpu.pipeline_mode<synchronous>, transform_indices = @transform_5, window_bounds = array<i64: 3, 32, 16>}, {pipeline_mode = #tpu.pipeline_mode<synchronous>, transform_indices = @transform_6, window_bounds = array<i64: 3, 16, 16>}, {pipeline_mode = #tpu.pipeline_mode<synchronous>, transform_indices = @transform_7, window_bounds = array<i64: 4, 16>}, {transform_indices = @transform_8, window_bounds = array<i64: 1, 6, 8, 16>}]} {
    %c0 = arith.constant 0 : index
    %c0_0 = arith.constant 0 : index
    %c0_1 = arith.constant 0 : index
    %0 = vector.load %arg3[%c0, %c0_0, %c0_1] : memref<3x16x32xbf16, #tpu.memory_space<vmem>>, vector<3x16x32xbf16>
    %c0_2 = arith.constant 0 : index
    %c0_3 = arith.constant 0 : index
    %c0_4 = arith.constant 0 : index
    %1 = vector.load %arg4[%c0_2, %c0_3, %c0_4] : memref<3x32x32xbf16, #tpu.memory_space<vmem>>, vector<3x32x32xbf16>
    %c0_5 = arith.constant 0 : index
    %c0_6 = arith.constant 0 : index
    %c0_7 = arith.constant 0 : index
    %2 = vector.load %arg6[%c0_5, %c0_6, %c0_7] : memref<3x32x16xbf16, #tpu.memory_space<vmem>>, vector<3x32x16xbf16>
    %c0_8 = arith.constant 0 : index
    %c0_9 = arith.constant 0 : index
    %c0_10 = arith.constant 0 : index
    %3 = vector.load %arg7[%c0_8, %c0_9, %c0_10] : memref<3x16x16xbf16, #tpu.memory_space<vmem>>, vector<3x16x16xbf16>
    %c0_11 = arith.constant 0 : index
    %c0_12 = arith.constant 0 : index
    %4 = vector.load %arg5[%c0_11, %c0_12] : memref<4x32xf32, #tpu.memory_space<vmem>>, vector<4x32xf32>
    %c0_13 = arith.constant 0 : index
    %c0_14 = arith.constant 0 : index
    %5 = vector.load %arg8[%c0_13, %c0_14] : memref<4x16xf32, #tpu.memory_space<vmem>>, vector<4x16xf32>
    %6 = vector.extract_strided_slice %4 {offsets = [0, 0], sizes = [1, 32], strides = [1, 1]} : vector<4x32xf32> to vector<1x32xf32>
    %7 = vector.extract_strided_slice %4 {offsets = [1, 0], sizes = [1, 32], strides = [1, 1]} : vector<4x32xf32> to vector<1x32xf32>
    %8 = vector.extract_strided_slice %4 {offsets = [2, 0], sizes = [1, 32], strides = [1, 1]} : vector<4x32xf32> to vector<1x32xf32>
    %9 = vector.extract_strided_slice %4 {offsets = [3, 0], sizes = [1, 32], strides = [1, 1]} : vector<4x32xf32> to vector<1x32xf32>
    %10 = vector.extract_strided_slice %5 {offsets = [0, 0], sizes = [1, 16], strides = [1, 1]} : vector<4x16xf32> to vector<1x16xf32>
    %11 = vector.extract_strided_slice %5 {offsets = [1, 0], sizes = [1, 16], strides = [1, 1]} : vector<4x16xf32> to vector<1x16xf32>
    %12 = vector.extract_strided_slice %5 {offsets = [2, 0], sizes = [1, 16], strides = [1, 1]} : vector<4x16xf32> to vector<1x16xf32>
    %13 = vector.extract_strided_slice %5 {offsets = [3, 0], sizes = [1, 16], strides = [1, 1]} : vector<4x16xf32> to vector<1x16xf32>
    %c0_15 = arith.constant 0 : index
    %c0_16 = arith.constant 0 : index
    %c0_17 = arith.constant 0 : index
    %14 = vector.load %arg1[%c0_15, %c0_16, %c0_17] : memref<6x24x16xf32, #tpu.memory_space<vmem>>, vector<6x24x16xf32>
    %15 = vector.shape_cast %14 : vector<6x24x16xf32> to vector<144x16xf32>
    %16 = arith.truncf %15 : vector<144x16xf32> to vector<144x16xbf16>
    %17 = vector.extract_strided_slice %0 {offsets = [0, 0, 0], sizes = [1, 16, 32], strides = [1, 1, 1]} : vector<3x16x32xbf16> to vector<1x16x32xbf16>
    %18 = vector.shape_cast %17 : vector<1x16x32xbf16> to vector<16x32xbf16>
    %cst = arith.constant dense<0.000000e+00> : vector<144x32xf32>
    %19 = tpu.matmul %16, %18, %cst {dimension_numbers = #tpu.dot_dimension_numbers<[1], [0], [0], [1], [0, 0, 1, 1], [], []>} : vector<144x16xbf16>, vector<16x32xbf16>, vector<144x32xf32> -> vector<144x32xf32>
    %20 = vector.broadcast %6 : vector<1x32xf32> to vector<144x32xf32>
    %21 = arith.addf %19, %20 : vector<144x32xf32>
    %22 = vector.extract_strided_slice %0 {offsets = [1, 0, 0], sizes = [1, 16, 32], strides = [1, 1, 1]} : vector<3x16x32xbf16> to vector<1x16x32xbf16>
    %23 = vector.shape_cast %22 : vector<1x16x32xbf16> to vector<16x32xbf16>
    %cst_18 = arith.constant dense<0.000000e+00> : vector<144x32xf32>
    %24 = tpu.matmul %16, %23, %cst_18 {dimension_numbers = #tpu.dot_dimension_numbers<[1], [0], [0], [1], [0, 0, 1, 1], [], []>} : vector<144x16xbf16>, vector<16x32xbf16>, vector<144x32xf32> -> vector<144x32xf32>
    %25 = vector.broadcast %7 : vector<1x32xf32> to vector<144x32xf32>
    %26 = arith.addf %24, %25 : vector<144x32xf32>
    %27 = vector.extract_strided_slice %0 {offsets = [2, 0, 0], sizes = [1, 16, 32], strides = [1, 1, 1]} : vector<3x16x32xbf16> to vector<1x16x32xbf16>
    %28 = vector.shape_cast %27 : vector<1x16x32xbf16> to vector<16x32xbf16>
    %cst_19 = arith.constant dense<0.000000e+00> : vector<144x32xf32>
    %29 = tpu.matmul %16, %28, %cst_19 {dimension_numbers = #tpu.dot_dimension_numbers<[1], [0], [0], [1], [0, 0, 1, 1], [], []>} : vector<144x16xbf16>, vector<16x32xbf16>, vector<144x32xf32> -> vector<144x32xf32>
    %30 = vector.broadcast %8 : vector<1x32xf32> to vector<144x32xf32>
    %31 = arith.addf %29, %30 : vector<144x32xf32>
    %cst_20 = arith.constant 0.000000e+00 : f32
    %32 = vector.broadcast %cst_20 : f32 to vector<24x32xf32>
    %cst_21 = arith.constant 0.000000e+00 : f32
    %33 = vector.broadcast %cst_21 : f32 to vector<24x16xf32>
    %34 = arith.truncf %32 : vector<24x32xf32> to vector<24x32xbf16>
    %35 = vector.extract_strided_slice %1 {offsets = [0, 0, 0], sizes = [1, 32, 32], strides = [1, 1, 1]} : vector<3x32x32xbf16> to vector<1x32x32xbf16>
    %36 = vector.shape_cast %35 : vector<1x32x32xbf16> to vector<32x32xbf16>
    %cst_22 = arith.constant dense<0.000000e+00> : vector<24x32xf32>
    %37 = tpu.matmul %34, %36, %cst_22 {dimension_numbers = #tpu.dot_dimension_numbers<[1], [0], [0], [1], [0, 0, 1, 1], [], []>} : vector<24x32xbf16>, vector<32x32xbf16>, vector<24x32xf32> -> vector<24x32xf32>
    %38 = vector.extract_strided_slice %1 {offsets = [1, 0, 0], sizes = [1, 32, 32], strides = [1, 1, 1]} : vector<3x32x32xbf16> to vector<1x32x32xbf16>
    %39 = vector.shape_cast %38 : vector<1x32x32xbf16> to vector<32x32xbf16>
    %cst_23 = arith.constant dense<0.000000e+00> : vector<24x32xf32>
    %40 = tpu.matmul %34, %39, %cst_23 {dimension_numbers = #tpu.dot_dimension_numbers<[1], [0], [0], [1], [0, 0, 1, 1], [], []>} : vector<24x32xbf16>, vector<32x32xbf16>, vector<24x32xf32> -> vector<24x32xf32>
    %41 = vector.extract_strided_slice %1 {offsets = [2, 0, 0], sizes = [1, 32, 32], strides = [1, 1, 1]} : vector<3x32x32xbf16> to vector<1x32x32xbf16>
    %42 = vector.shape_cast %41 : vector<1x32x32xbf16> to vector<32x32xbf16>
    %cst_24 = arith.constant dense<0.000000e+00> : vector<24x32xf32>
    %43 = tpu.matmul %34, %42, %cst_24 {dimension_numbers = #tpu.dot_dimension_numbers<[1], [0], [0], [1], [0, 0, 1, 1], [], []>} : vector<24x32xbf16>, vector<32x32xbf16>, vector<24x32xf32> -> vector<24x32xf32>
    %44 = vector.extract_strided_slice %21 {offsets = [0, 0], sizes = [24, 32], strides = [1, 1]} : vector<144x32xf32> to vector<24x32xf32>
    %45 = arith.addf %44, %37 : vector<24x32xf32>
    %46 = arith.negf %45 : vector<24x32xf32>
    %47 = math.exp %46 : vector<24x32xf32>
    %cst_25 = arith.constant 1.000000e+00 : f32
    %48 = vector.broadcast %cst_25 : f32 to vector<24x32xf32>
    %49 = arith.addf %48, %47 : vector<24x32xf32>
    %50 = arith.divf %48, %49 : vector<24x32xf32>
    %51 = vector.extract_strided_slice %26 {offsets = [0, 0], sizes = [24, 32], strides = [1, 1]} : vector<144x32xf32> to vector<24x32xf32>
    %52 = arith.addf %51, %40 : vector<24x32xf32>
    %53 = arith.negf %52 : vector<24x32xf32>
    %54 = math.exp %53 : vector<24x32xf32>
    %cst_26 = arith.constant 1.000000e+00 : f32
    %55 = vector.broadcast %cst_26 : f32 to vector<24x32xf32>
    %56 = arith.addf %55, %54 : vector<24x32xf32>
    %57 = arith.divf %55, %56 : vector<24x32xf32>
    %58 = vector.extract_strided_slice %31 {offsets = [0, 0], sizes = [24, 32], strides = [1, 1]} : vector<144x32xf32> to vector<24x32xf32>
    %59 = vector.broadcast %9 : vector<1x32xf32> to vector<24x32xf32>
    %60 = arith.addf %43, %59 : vector<24x32xf32>
    %61 = arith.mulf %50, %60 : vector<24x32xf32>
    %62 = arith.addf %58, %61 : vector<24x32xf32>
    %63 = math.tanh %62 : vector<24x32xf32>
    %cst_27 = arith.constant 1.000000e+00 : f32
    %64 = vector.broadcast %cst_27 : f32 to vector<24x32xf32>
    %65 = arith.subf %64, %57 : vector<24x32xf32>
    %66 = arith.mulf %65, %63 : vector<24x32xf32>
    %67 = arith.mulf %57, %32 : vector<24x32xf32>
    %68 = arith.addf %66, %67 : vector<24x32xf32>
    %69 = arith.truncf %68 : vector<24x32xf32> to vector<24x32xbf16>
    %70 = arith.truncf %33 : vector<24x16xf32> to vector<24x16xbf16>
    %71 = vector.extract_strided_slice %2 {offsets = [0, 0, 0], sizes = [1, 32, 16], strides = [1, 1, 1]} : vector<3x32x16xbf16> to vector<1x32x16xbf16>
    %72 = vector.shape_cast %71 : vector<1x32x16xbf16> to vector<32x16xbf16>
    %cst_28 = arith.constant dense<0.000000e+00> : vector<24x16xf32>
    %73 = tpu.matmul %69, %72, %cst_28 {dimension_numbers = #tpu.dot_dimension_numbers<[1], [0], [0], [1], [0, 0, 1, 1], [], []>} : vector<24x32xbf16>, vector<32x16xbf16>, vector<24x16xf32> -> vector<24x16xf32>
    %74 = vector.extract_strided_slice %3 {offsets = [0, 0, 0], sizes = [1, 16, 16], strides = [1, 1, 1]} : vector<3x16x16xbf16> to vector<1x16x16xbf16>
    %75 = vector.shape_cast %74 : vector<1x16x16xbf16> to vector<16x16xbf16>
    %cst_29 = arith.constant dense<0.000000e+00> : vector<24x16xf32>
    %76 = tpu.matmul %70, %75, %cst_29 {dimension_numbers = #tpu.dot_dimension_numbers<[1], [0], [0], [1], [0, 0, 1, 1], [], []>} : vector<24x16xbf16>, vector<16x16xbf16>, vector<24x16xf32> -> vector<24x16xf32>
    %77 = arith.addf %73, %76 : vector<24x16xf32>
    %78 = vector.broadcast %10 : vector<1x16xf32> to vector<24x16xf32>
    %79 = arith.addf %77, %78 : vector<24x16xf32>
    %80 = arith.negf %79 : vector<24x16xf32>
    %81 = math.exp %80 : vector<24x16xf32>
    %cst_30 = arith.constant 1.000000e+00 : f32
    %82 = vector.broadcast %cst_30 : f32 to vector<24x16xf32>
    %83 = arith.addf %82, %81 : vector<24x16xf32>
    %84 = arith.divf %82, %83 : vector<24x16xf32>
    %85 = vector.extract_strided_slice %2 {offsets = [1, 0, 0], sizes = [1, 32, 16], strides = [1, 1, 1]} : vector<3x32x16xbf16> to vector<1x32x16xbf16>
    %86 = vector.shape_cast %85 : vector<1x32x16xbf16> to vector<32x16xbf16>
    %cst_31 = arith.constant dense<0.000000e+00> : vector<24x16xf32>
    %87 = tpu.matmul %69, %86, %cst_31 {dimension_numbers = #tpu.dot_dimension_numbers<[1], [0], [0], [1], [0, 0, 1, 1], [], []>} : vector<24x32xbf16>, vector<32x16xbf16>, vector<24x16xf32> -> vector<24x16xf32>
    %88 = vector.extract_strided_slice %3 {offsets = [1, 0, 0], sizes = [1, 16, 16], strides = [1, 1, 1]} : vector<3x16x16xbf16> to vector<1x16x16xbf16>
    %89 = vector.shape_cast %88 : vector<1x16x16xbf16> to vector<16x16xbf16>
    %cst_32 = arith.constant dense<0.000000e+00> : vector<24x16xf32>
    %90 = tpu.matmul %70, %89, %cst_32 {dimension_numbers = #tpu.dot_dimension_numbers<[1], [0], [0], [1], [0, 0, 1, 1], [], []>} : vector<24x16xbf16>, vector<16x16xbf16>, vector<24x16xf32> -> vector<24x16xf32>
    %91 = arith.addf %87, %90 : vector<24x16xf32>
    %92 = vector.broadcast %11 : vector<1x16xf32> to vector<24x16xf32>
    %93 = arith.addf %91, %92 : vector<24x16xf32>
    %94 = arith.negf %93 : vector<24x16xf32>
    %95 = math.exp %94 : vector<24x16xf32>
    %cst_33 = arith.constant 1.000000e+00 : f32
    %96 = vector.broadcast %cst_33 : f32 to vector<24x16xf32>
    %97 = arith.addf %96, %95 : vector<24x16xf32>
    %98 = arith.divf %96, %97 : vector<24x16xf32>
    %99 = vector.extract_strided_slice %2 {offsets = [2, 0, 0], sizes = [1, 32, 16], strides = [1, 1, 1]} : vector<3x32x16xbf16> to vector<1x32x16xbf16>
    %100 = vector.shape_cast %99 : vector<1x32x16xbf16> to vector<32x16xbf16>
    %cst_34 = arith.constant dense<0.000000e+00> : vector<24x16xf32>
    %101 = tpu.matmul %69, %100, %cst_34 {dimension_numbers = #tpu.dot_dimension_numbers<[1], [0], [0], [1], [0, 0, 1, 1], [], []>} : vector<24x32xbf16>, vector<32x16xbf16>, vector<24x16xf32> -> vector<24x16xf32>
    %102 = vector.broadcast %12 : vector<1x16xf32> to vector<24x16xf32>
    %103 = arith.addf %101, %102 : vector<24x16xf32>
    %104 = vector.extract_strided_slice %3 {offsets = [2, 0, 0], sizes = [1, 16, 16], strides = [1, 1, 1]} : vector<3x16x16xbf16> to vector<1x16x16xbf16>
    %105 = vector.shape_cast %104 : vector<1x16x16xbf16> to vector<16x16xbf16>
    %cst_35 = arith.constant dense<0.000000e+00> : vector<24x16xf32>
    %106 = tpu.matmul %70, %105, %cst_35 {dimension_numbers = #tpu.dot_dimension_numbers<[1], [0], [0], [1], [0, 0, 1, 1], [], []>} : vector<24x16xbf16>, vector<16x16xbf16>, vector<24x16xf32> -> vector<24x16xf32>
    %107 = vector.broadcast %13 : vector<1x16xf32> to vector<24x16xf32>
    %108 = arith.addf %106, %107 : vector<24x16xf32>
    %109 = arith.mulf %84, %108 : vector<24x16xf32>
    %110 = arith.addf %103, %109 : vector<24x16xf32>
    %111 = math.tanh %110 : vector<24x16xf32>
    %cst_36 = arith.constant 1.000000e+00 : f32
    %112 = vector.broadcast %cst_36 : f32 to vector<24x16xf32>
    %113 = arith.subf %112, %98 : vector<24x16xf32>
    %114 = arith.mulf %113, %111 : vector<24x16xf32>
    %115 = arith.mulf %98, %33 : vector<24x16xf32>
    %116 = arith.addf %114, %115 : vector<24x16xf32>
    %c0_37 = arith.constant 0 : index
    %c0_38 = arith.constant 0 : index
    %c0_39 = arith.constant 0 : index
    %117 = vector.load %arg2[%c0_37, %c0_38, %c0_39] : memref<6x24x16xf32, #tpu.memory_space<vmem>>, vector<1x24x16xf32>
    %118 = vector.shape_cast %117 : vector<1x24x16xf32> to vector<24x16xf32>
    %119 = arith.mulf %116, %118 : vector<24x16xf32>
    %120 = vector.extract_strided_slice %119 {offsets = [0, 0], sizes = [8, 16], strides = [1, 1]} : vector<24x16xf32> to vector<8x16xf32>
    %121 = vector.extract_strided_slice %119 {offsets = [8, 0], sizes = [8, 16], strides = [1, 1]} : vector<24x16xf32> to vector<8x16xf32>
    %122 = arith.addf %120, %121 : vector<8x16xf32>
    %123 = vector.extract_strided_slice %119 {offsets = [16, 0], sizes = [8, 16], strides = [1, 1]} : vector<24x16xf32> to vector<8x16xf32>
    %124 = arith.addf %122, %123 : vector<8x16xf32>
    %c0_40 = arith.constant 0 : index
    %c0_41 = arith.constant 0 : index
    %c0_42 = arith.constant 0 : index
    %c0_43 = arith.constant 0 : index
    %125 = vector.load %arg9[%c0_40, %c0_41, %c0_42, %c0_43] : memref<1x6x8x16xf32, #tpu.memory_space<vmem>>, vector<1x1x8x16xf32>
    %126 = vector.shape_cast %125 : vector<1x1x8x16xf32> to vector<8x16xf32>
    %127 = vector.shape_cast %124 : vector<8x16xf32> to vector<1x1x8x16xf32>
    tpu.vector_store %arg9[%c0_40, %c0_41, %c0_42, %c0_43], %127 {strides = array<i32>} : memref<1x6x8x16xf32, #tpu.memory_space<vmem>>, vector<1x1x8x16xf32>,
    %128 = arith.truncf %68 : vector<24x32xf32> to vector<24x32xbf16>
    %129 = vector.extract_strided_slice %1 {offsets = [0, 0, 0], sizes = [1, 32, 32], strides = [1, 1, 1]} : vector<3x32x32xbf16> to vector<1x32x32xbf16>
    %130 = vector.shape_cast %129 : vector<1x32x32xbf16> to vector<32x32xbf16>
    %cst_44 = arith.constant dense<0.000000e+00> : vector<24x32xf32>
    %131 = tpu.matmul %128, %130, %cst_44 {dimension_numbers = #tpu.dot_dimension_numbers<[1], [0], [0], [1], [0, 0, 1, 1], [], []>} : vector<24x32xbf16>, vector<32x32xbf16>, vector<24x32xf32> -> vector<24x32xf32>
    %132 = vector.extract_strided_slice %1 {offsets = [1, 0, 0], sizes = [1, 32, 32], strides = [1, 1, 1]} : vector<3x32x32xbf16> to vector<1x32x32xbf16>
    %133 = vector.shape_cast %132 : vector<1x32x32xbf16> to vector<32x32xbf16>
    %cst_45 = arith.constant dense<0.000000e+00> : vector<24x32xf32>
    %134 = tpu.matmul %128, %133, %cst_45 {dimension_numbers = #tpu.dot_dimension_numbers<[1], [0], [0], [1], [0, 0, 1, 1], [], []>} : vector<24x32xbf16>, vector<32x32xbf16>, vector<24x32xf32> -> vector<24x32xf32>
    %135 = vector.extract_strided_slice %1 {offsets = [2, 0, 0], sizes = [1, 32, 32], strides = [1, 1, 1]} : vector<3x32x32xbf16> to vector<1x32x32xbf16>
    %136 = vector.shape_cast %135 : vector<1x32x32xbf16> to vector<32x32xbf16>
    %cst_46 = arith.constant dense<0.000000e+00> : vector<24x32xf32>
    %137 = tpu.matmul %128, %136, %cst_46 {dimension_numbers = #tpu.dot_dimension_numbers<[1], [0], [0], [1], [0, 0, 1, 1], [], []>} : vector<24x32xbf16>, vector<32x32xbf16>, vector<24x32xf32> -> vector<24x32xf32>
    %138 = vector.extract_strided_slice %21 {offsets = [24, 0], sizes = [24, 32], strides = [1, 1]} : vector<144x32xf32> to vector<24x32xf32>
    %139 = arith.addf %138, %131 : vector<24x32xf32>
    %140 = arith.negf %139 : vector<24x32xf32>
    %141 = math.exp %140 : vector<24x32xf32>
    %cst_47 = arith.constant 1.000000e+00 : f32
    %142 = vector.broadcast %cst_47 : f32 to vector<24x32xf32>
    %143 = arith.addf %142, %141 : vector<24x32xf32>
    %144 = arith.divf %142, %143 : vector<24x32xf32>
    %145 = vector.extract_strided_slice %26 {offsets = [24, 0], sizes = [24, 32], strides = [1, 1]} : vector<144x32xf32> to vector<24x32xf32>
    %146 = arith.addf %145, %134 : vector<24x32xf32>
    %147 = arith.negf %146 : vector<24x32xf32>
    %148 = math.exp %147 : vector<24x32xf32>
    %cst_48 = arith.constant 1.000000e+00 : f32
    %149 = vector.broadcast %cst_48 : f32 to vector<24x32xf32>
    %150 = arith.addf %149, %148 : vector<24x32xf32>
    %151 = arith.divf %149, %150 : vector<24x32xf32>
    %152 = vector.extract_strided_slice %31 {offsets = [24, 0], sizes = [24, 32], strides = [1, 1]} : vector<144x32xf32> to vector<24x32xf32>
    %153 = vector.broadcast %9 : vector<1x32xf32> to vector<24x32xf32>
    %154 = arith.addf %137, %153 : vector<24x32xf32>
    %155 = arith.mulf %144, %154 : vector<24x32xf32>
    %156 = arith.addf %152, %155 : vector<24x32xf32>
    %157 = math.tanh %156 : vector<24x32xf32>
    %cst_49 = arith.constant 1.000000e+00 : f32
    %158 = vector.broadcast %cst_49 : f32 to vector<24x32xf32>
    %159 = arith.subf %158, %151 : vector<24x32xf32>
    %160 = arith.mulf %159, %157 : vector<24x32xf32>
    %161 = arith.mulf %151, %68 : vector<24x32xf32>
    %162 = arith.addf %160, %161 : vector<24x32xf32>
    %163 = arith.truncf %162 : vector<24x32xf32> to vector<24x32xbf16>
    %164 = arith.truncf %116 : vector<24x16xf32> to vector<24x16xbf16>
    %165 = vector.extract_strided_slice %2 {offsets = [0, 0, 0], sizes = [1, 32, 16], strides = [1, 1, 1]} : vector<3x32x16xbf16> to vector<1x32x16xbf16>
    %166 = vector.shape_cast %165 : vector<1x32x16xbf16> to vector<32x16xbf16>
    %cst_50 = arith.constant dense<0.000000e+00> : vector<24x16xf32>
    %167 = tpu.matmul %163, %166, %cst_50 {dimension_numbers = #tpu.dot_dimension_numbers<[1], [0], [0], [1], [0, 0, 1, 1], [], []>} : vector<24x32xbf16>, vector<32x16xbf16>, vector<24x16xf32> -> vector<24x16xf32>
    %168 = vector.extract_strided_slice %3 {offsets = [0, 0, 0], sizes = [1, 16, 16], strides = [1, 1, 1]} : vector<3x16x16xbf16> to vector<1x16x16xbf16>
    %169 = vector.shape_cast %168 : vector<1x16x16xbf16> to vector<16x16xbf16>
    %cst_51 = arith.constant dense<0.000000e+00> : vector<24x16xf32>
    %170 = tpu.matmul %164, %169, %cst_51 {dimension_numbers = #tpu.dot_dimension_numbers<[1], [0], [0], [1], [0, 0, 1, 1], [], []>} : vector<24x16xbf16>, vector<16x16xbf16>, vector<24x16xf32> -> vector<24x16xf32>
    %171 = arith.addf %167, %170 : vector<24x16xf32>
    %172 = vector.broadcast %10 : vector<1x16xf32> to vector<24x16xf32>
    %173 = arith.addf %171, %172 : vector<24x16xf32>
    %174 = arith.negf %173 : vector<24x16xf32>
    %175 = math.exp %174 : vector<24x16xf32>
    %cst_52 = arith.constant 1.000000e+00 : f32
    %176 = vector.broadcast %cst_52 : f32 to vector<24x16xf32>
    %177 = arith.addf %176, %175 : vector<24x16xf32>
    %178 = arith.divf %176, %177 : vector<24x16xf32>
    %179 = vector.extract_strided_slice %2 {offsets = [1, 0, 0], sizes = [1, 32, 16], strides = [1, 1, 1]} : vector<3x32x16xbf16> to vector<1x32x16xbf16>
    %180 = vector.shape_cast %179 : vector<1x32x16xbf16> to vector<32x16xbf16>
    %cst_53 = arith.constant dense<0.000000e+00> : vector<24x16xf32>
    %181 = tpu.matmul %163, %180, %cst_53 {dimension_numbers = #tpu.dot_dimension_numbers<[1], [0], [0], [1], [0, 0, 1, 1], [], []>} : vector<24x32xbf16>, vector<32x16xbf16>, vector<24x16xf32> -> vector<24x16xf32>
    %182 = vector.extract_strided_slice %3 {offsets = [1, 0, 0], sizes = [1, 16, 16], strides = [1, 1, 1]} : vector<3x16x16xbf16> to vector<1x16x16xbf16>
    %183 = vector.shape_cast %182 : vector<1x16x16xbf16> to vector<16x16xbf16>
    %cst_54 = arith.constant dense<0.000000e+00> : vector<24x16xf32>
    %184 = tpu.matmul %164, %183, %cst_54 {dimension_numbers = #tpu.dot_dimension_numbers<[1], [0], [0], [1], [0, 0, 1, 1], [], []>} : vector<24x16xbf16>, vector<16x16xbf16>, vector<24x16xf32> -> vector<24x16xf32>
    %185 = arith.addf %181, %184 : vector<24x16xf32>
    %186 = vector.broadcast %11 : vector<1x16xf32> to vector<24x16xf32>
    %187 = arith.addf %185, %186 : vector<24x16xf32>
    %188 = arith.negf %187 : vector<24x16xf32>
    %189 = math.exp %188 : vector<24x16xf32>
    %cst_55 = arith.constant 1.000000e+00 : f32
    %190 = vector.broadcast %cst_55 : f32 to vector<24x16xf32>
    %191 = arith.addf %190, %189 : vector<24x16xf32>
    %192 = arith.divf %190, %191 : vector<24x16xf32>
    %193 = vector.extract_strided_slice %2 {offsets = [2, 0, 0], sizes = [1, 32, 16], strides = [1, 1, 1]} : vector<3x32x16xbf16> to vector<1x32x16xbf16>
    %194 = vector.shape_cast %193 : vector<1x32x16xbf16> to vector<32x16xbf16>
    %cst_56 = arith.constant dense<0.000000e+00> : vector<24x16xf32>
    %195 = tpu.matmul %163, %194, %cst_56 {dimension_numbers = #tpu.dot_dimension_numbers<[1], [0], [0], [1], [0, 0, 1, 1], [], []>} : vector<24x32xbf16>, vector<32x16xbf16>, vector<24x16xf32> -> vector<24x16xf32>
    %196 = vector.broadcast %12 : vector<1x16xf32> to vector<24x16xf32>
    %197 = arith.addf %195, %196 : vector<24x16xf32>
    %198 = vector.extract_strided_slice %3 {offsets = [2, 0, 0], sizes = [1, 16, 16], strides = [1, 1, 1]} : vector<3x16x16xbf16> to vector<1x16x16xbf16>
    %199 = vector.shape_cast %198 : vector<1x16x16xbf16> to vector<16x16xbf16>
    %cst_57 = arith.constant dense<0.000000e+00> : vector<24x16xf32>
    %200 = tpu.matmul %164, %199, %cst_57 {dimension_numbers = #tpu.dot_dimension_numbers<[1], [0], [0], [1], [0, 0, 1, 1], [], []>} : vector<24x16xbf16>, vector<16x16xbf16>, vector<24x16xf32> -> vector<24x16xf32>
    %201 = vector.broadcast %13 : vector<1x16xf32> to vector<24x16xf32>
    %202 = arith.addf %200, %201 : vector<24x16xf32>
    %203 = arith.mulf %178, %202 : vector<24x16xf32>
    %204 = arith.addf %197, %203 : vector<24x16xf32>
    %205 = math.tanh %204 : vector<24x16xf32>
    %cst_58 = arith.constant 1.000000e+00 : f32
    %206 = vector.broadcast %cst_58 : f32 to vector<24x16xf32>
    %207 = arith.subf %206, %192 : vector<24x16xf32>
    %208 = arith.mulf %207, %205 : vector<24x16xf32>
    %209 = arith.mulf %192, %116 : vector<24x16xf32>
    %210 = arith.addf %208, %209 : vector<24x16xf32>
    %c1 = arith.constant 1 : index
    %c0_59 = arith.constant 0 : index
    %c0_60 = arith.constant 0 : index
    %211 = vector.load %arg2[%c1, %c0_59, %c0_60] : memref<6x24x16xf32, #tpu.memory_space<vmem>>, vector<1x24x16xf32>
    %212 = vector.shape_cast %211 : vector<1x24x16xf32> to vector<24x16xf32>
    %213 = arith.mulf %210, %212 : vector<24x16xf32>
    %214 = vector.extract_strided_slice %213 {offsets = [0, 0], sizes = [8, 16], strides = [1, 1]} : vector<24x16xf32> to vector<8x16xf32>
    %215 = vector.extract_strided_slice %213 {offsets = [8, 0], sizes = [8, 16], strides = [1, 1]} : vector<24x16xf32> to vector<8x16xf32>
    %216 = arith.addf %214, %215 : vector<8x16xf32>
    %217 = vector.extract_strided_slice %213 {offsets = [16, 0], sizes = [8, 16], strides = [1, 1]} : vector<24x16xf32> to vector<8x16xf32>
    %218 = arith.addf %216, %217 : vector<8x16xf32>
    %c0_61 = arith.constant 0 : index
    %c1_62 = arith.constant 1 : index
    %c0_63 = arith.constant 0 : index
    %c0_64 = arith.constant 0 : index
    %219 = vector.load %arg9[%c0_61, %c1_62, %c0_63, %c0_64] : memref<1x6x8x16xf32, #tpu.memory_space<vmem>>, vector<1x1x8x16xf32>
    %220 = vector.shape_cast %219 : vector<1x1x8x16xf32> to vector<8x16xf32>
    %221 = vector.shape_cast %218 : vector<8x16xf32> to vector<1x1x8x16xf32>
    tpu.vector_store %arg9[%c0_61, %c1_62, %c0_63, %c0_64], %221 {strides = array<i32>} : memref<1x6x8x16xf32, #tpu.memory_space<vmem>>, vector<1x1x8x16xf32>,
    %222 = arith.truncf %162 : vector<24x32xf32> to vector<24x32xbf16>
    %223 = vector.extract_strided_slice %1 {offsets = [0, 0, 0], sizes = [1, 32, 32], strides = [1, 1, 1]} : vector<3x32x32xbf16> to vector<1x32x32xbf16>
    %224 = vector.shape_cast %223 : vector<1x32x32xbf16> to vector<32x32xbf16>
    %cst_65 = arith.constant dense<0.000000e+00> : vector<24x32xf32>
    %225 = tpu.matmul %222, %224, %cst_65 {dimension_numbers = #tpu.dot_dimension_numbers<[1], [0], [0], [1], [0, 0, 1, 1], [], []>} : vector<24x32xbf16>, vector<32x32xbf16>, vector<24x32xf32> -> vector<24x32xf32>
    %226 = vector.extract_strided_slice %1 {offsets = [1, 0, 0], sizes = [1, 32, 32], strides = [1, 1, 1]} : vector<3x32x32xbf16> to vector<1x32x32xbf16>
    %227 = vector.shape_cast %226 : vector<1x32x32xbf16> to vector<32x32xbf16>
    %cst_66 = arith.constant dense<0.000000e+00> : vector<24x32xf32>
    %228 = tpu.matmul %222, %227, %cst_66 {dimension_numbers = #tpu.dot_dimension_numbers<[1], [0], [0], [1], [0, 0, 1, 1], [], []>} : vector<24x32xbf16>, vector<32x32xbf16>, vector<24x32xf32> -> vector<24x32xf32>
    %229 = vector.extract_strided_slice %1 {offsets = [2, 0, 0], sizes = [1, 32, 32], strides = [1, 1, 1]} : vector<3x32x32xbf16> to vector<1x32x32xbf16>
    %230 = vector.shape_cast %229 : vector<1x32x32xbf16> to vector<32x32xbf16>
    %cst_67 = arith.constant dense<0.000000e+00> : vector<24x32xf32>
    %231 = tpu.matmul %222, %230, %cst_67 {dimension_numbers = #tpu.dot_dimension_numbers<[1], [0], [0], [1], [0, 0, 1, 1], [], []>} : vector<24x32xbf16>, vector<32x32xbf16>, vector<24x32xf32> -> vector<24x32xf32>
    %232 = vector.extract_strided_slice %21 {offsets = [48, 0], sizes = [24, 32], strides = [1, 1]} : vector<144x32xf32> to vector<24x32xf32>
    %233 = arith.addf %232, %225 : vector<24x32xf32>
    %234 = arith.negf %233 : vector<24x32xf32>
    %235 = math.exp %234 : vector<24x32xf32>
    %cst_68 = arith.constant 1.000000e+00 : f32
    %236 = vector.broadcast %cst_68 : f32 to vector<24x32xf32>
    %237 = arith.addf %236, %235 : vector<24x32xf32>
    %238 = arith.divf %236, %237 : vector<24x32xf32>
    %239 = vector.extract_strided_slice %26 {offsets = [48, 0], sizes = [24, 32], strides = [1, 1]} : vector<144x32xf32> to vector<24x32xf32>
    %240 = arith.addf %239, %228 : vector<24x32xf32>
    %241 = arith.negf %240 : vector<24x32xf32>
    %242 = math.exp %241 : vector<24x32xf32>
    %cst_69 = arith.constant 1.000000e+00 : f32
    %243 = vector.broadcast %cst_69 : f32 to vector<24x32xf32>
    %244 = arith.addf %243, %242 : vector<24x32xf32>
    %245 = arith.divf %243, %244 : vector<24x32xf32>
    %246 = vector.extract_strided_slice %31 {offsets = [48, 0], sizes = [24, 32], strides = [1, 1]} : vector<144x32xf32> to vector<24x32xf32>
    %247 = vector.broadcast %9 : vector<1x32xf32> to vector<24x32xf32>
    %248 = arith.addf %231, %247 : vector<24x32xf32>
    %249 = arith.mulf %238, %248 : vector<24x32xf32>
    %250 = arith.addf %246, %249 : vector<24x32xf32>
    %251 = math.tanh %250 : vector<24x32xf32>
    %cst_70 = arith.constant 1.000000e+00 : f32
    %252 = vector.broadcast %cst_70 : f32 to vector<24x32xf32>
    %253 = arith.subf %252, %245 : vector<24x32xf32>
    %254 = arith.mulf %253, %251 : vector<24x32xf32>
    %255 = arith.mulf %245, %162 : vector<24x32xf32>
    %256 = arith.addf %254, %255 : vector<24x32xf32>
    %257 = arith.truncf %256 : vector<24x32xf32> to vector<24x32xbf16>
    %258 = arith.truncf %210 : vector<24x16xf32> to vector<24x16xbf16>
    %259 = vector.extract_strided_slice %2 {offsets = [0, 0, 0], sizes = [1, 32, 16], strides = [1, 1, 1]} : vector<3x32x16xbf16> to vector<1x32x16xbf16>
    %260 = vector.shape_cast %259 : vector<1x32x16xbf16> to vector<32x16xbf16>
    %cst_71 = arith.constant dense<0.000000e+00> : vector<24x16xf32>
    %261 = tpu.matmul %257, %260, %cst_71 {dimension_numbers = #tpu.dot_dimension_numbers<[1], [0], [0], [1], [0, 0, 1, 1], [], []>} : vector<24x32xbf16>, vector<32x16xbf16>, vector<24x16xf32> -> vector<24x16xf32>
    %262 = vector.extract_strided_slice %3 {offsets = [0, 0, 0], sizes = [1, 16, 16], strides = [1, 1, 1]} : vector<3x16x16xbf16> to vector<1x16x16xbf16>
    %263 = vector.shape_cast %262 : vector<1x16x16xbf16> to vector<16x16xbf16>
    %cst_72 = arith.constant dense<0.000000e+00> : vector<24x16xf32>
    %264 = tpu.matmul %258, %263, %cst_72 {dimension_numbers = #tpu.dot_dimension_numbers<[1], [0], [0], [1], [0, 0, 1, 1], [], []>} : vector<24x16xbf16>, vector<16x16xbf16>, vector<24x16xf32> -> vector<24x16xf32>
    %265 = arith.addf %261, %264 : vector<24x16xf32>
    %266 = vector.broadcast %10 : vector<1x16xf32> to vector<24x16xf32>
    %267 = arith.addf %265, %266 : vector<24x16xf32>
    %268 = arith.negf %267 : vector<24x16xf32>
    %269 = math.exp %268 : vector<24x16xf32>
    %cst_73 = arith.constant 1.000000e+00 : f32
    %270 = vector.broadcast %cst_73 : f32 to vector<24x16xf32>
    %271 = arith.addf %270, %269 : vector<24x16xf32>
    %272 = arith.divf %270, %271 : vector<24x16xf32>
    %273 = vector.extract_strided_slice %2 {offsets = [1, 0, 0], sizes = [1, 32, 16], strides = [1, 1, 1]} : vector<3x32x16xbf16> to vector<1x32x16xbf16>
    %274 = vector.shape_cast %273 : vector<1x32x16xbf16> to vector<32x16xbf16>
    %cst_74 = arith.constant dense<0.000000e+00> : vector<24x16xf32>
    %275 = tpu.matmul %257, %274, %cst_74 {dimension_numbers = #tpu.dot_dimension_numbers<[1], [0], [0], [1], [0, 0, 1, 1], [], []>} : vector<24x32xbf16>, vector<32x16xbf16>, vector<24x16xf32> -> vector<24x16xf32>
    %276 = vector.extract_strided_slice %3 {offsets = [1, 0, 0], sizes = [1, 16, 16], strides = [1, 1, 1]} : vector<3x16x16xbf16> to vector<1x16x16xbf16>
    %277 = vector.shape_cast %276 : vector<1x16x16xbf16> to vector<16x16xbf16>
    %cst_75 = arith.constant dense<0.000000e+00> : vector<24x16xf32>
    %278 = tpu.matmul %258, %277, %cst_75 {dimension_numbers = #tpu.dot_dimension_numbers<[1], [0], [0], [1], [0, 0, 1, 1], [], []>} : vector<24x16xbf16>, vector<16x16xbf16>, vector<24x16xf32> -> vector<24x16xf32>
    %279 = arith.addf %275, %278 : vector<24x16xf32>
    %280 = vector.broadcast %11 : vector<1x16xf32> to vector<24x16xf32>
    %281 = arith.addf %279, %280 : vector<24x16xf32>
    %282 = arith.negf %281 : vector<24x16xf32>
    %283 = math.exp %282 : vector<24x16xf32>
    %cst_76 = arith.constant 1.000000e+00 : f32
    %284 = vector.broadcast %cst_76 : f32 to vector<24x16xf32>
    %285 = arith.addf %284, %283 : vector<24x16xf32>
    %286 = arith.divf %284, %285 : vector<24x16xf32>
    %287 = vector.extract_strided_slice %2 {offsets = [2, 0, 0], sizes = [1, 32, 16], strides = [1, 1, 1]} : vector<3x32x16xbf16> to vector<1x32x16xbf16>
    %288 = vector.shape_cast %287 : vector<1x32x16xbf16> to vector<32x16xbf16>
    %cst_77 = arith.constant dense<0.000000e+00> : vector<24x16xf32>
    %289 = tpu.matmul %257, %288, %cst_77 {dimension_numbers = #tpu.dot_dimension_numbers<[1], [0], [0], [1], [0, 0, 1, 1], [], []>} : vector<24x32xbf16>, vector<32x16xbf16>, vector<24x16xf32> -> vector<24x16xf32>
    %290 = vector.broadcast %12 : vector<1x16xf32> to vector<24x16xf32>
    %291 = arith.addf %289, %290 : vector<24x16xf32>
    %292 = vector.extract_strided_slice %3 {offsets = [2, 0, 0], sizes = [1, 16, 16], strides = [1, 1, 1]} : vector<3x16x16xbf16> to vector<1x16x16xbf16>
    %293 = vector.shape_cast %292 : vector<1x16x16xbf16> to vector<16x16xbf16>
    %cst_78 = arith.constant dense<0.000000e+00> : vector<24x16xf32>
    %294 = tpu.matmul %258, %293, %cst_78 {dimension_numbers = #tpu.dot_dimension_numbers<[1], [0], [0], [1], [0, 0, 1, 1], [], []>} : vector<24x16xbf16>, vector<16x16xbf16>, vector<24x16xf32> -> vector<24x16xf32>
    %295 = vector.broadcast %13 : vector<1x16xf32> to vector<24x16xf32>
    %296 = arith.addf %294, %295 : vector<24x16xf32>
    %297 = arith.mulf %272, %296 : vector<24x16xf32>
    %298 = arith.addf %291, %297 : vector<24x16xf32>
    %299 = math.tanh %298 : vector<24x16xf32>
    %cst_79 = arith.constant 1.000000e+00 : f32
    %300 = vector.broadcast %cst_79 : f32 to vector<24x16xf32>
    %301 = arith.subf %300, %286 : vector<24x16xf32>
    %302 = arith.mulf %301, %299 : vector<24x16xf32>
    %303 = arith.mulf %286, %210 : vector<24x16xf32>
    %304 = arith.addf %302, %303 : vector<24x16xf32>
    %c2 = arith.constant 2 : index
    %c0_80 = arith.constant 0 : index
    %c0_81 = arith.constant 0 : index
    %305 = vector.load %arg2[%c2, %c0_80, %c0_81] : memref<6x24x16xf32, #tpu.memory_space<vmem>>, vector<1x24x16xf32>
    %306 = vector.shape_cast %305 : vector<1x24x16xf32> to vector<24x16xf32>
    %307 = arith.mulf %304, %306 : vector<24x16xf32>
    %308 = vector.extract_strided_slice %307 {offsets = [0, 0], sizes = [8, 16], strides = [1, 1]} : vector<24x16xf32> to vector<8x16xf32>
    %309 = vector.extract_strided_slice %307 {offsets = [8, 0], sizes = [8, 16], strides = [1, 1]} : vector<24x16xf32> to vector<8x16xf32>
    %310 = arith.addf %308, %309 : vector<8x16xf32>
    %311 = vector.extract_strided_slice %307 {offsets = [16, 0], sizes = [8, 16], strides = [1, 1]} : vector<24x16xf32> to vector<8x16xf32>
    %312 = arith.addf %310, %311 : vector<8x16xf32>
    %c0_82 = arith.constant 0 : index
    %c2_83 = arith.constant 2 : index
    %c0_84 = arith.constant 0 : index
    %c0_85 = arith.constant 0 : index
    %313 = vector.load %arg9[%c0_82, %c2_83, %c0_84, %c0_85] : memref<1x6x8x16xf32, #tpu.memory_space<vmem>>, vector<1x1x8x16xf32>
    %314 = vector.shape_cast %313 : vector<1x1x8x16xf32> to vector<8x16xf32>
    %315 = vector.shape_cast %312 : vector<8x16xf32> to vector<1x1x8x16xf32>
    tpu.vector_store %arg9[%c0_82, %c2_83, %c0_84, %c0_85], %315 {strides = array<i32>} : memref<1x6x8x16xf32, #tpu.memory_space<vmem>>, vector<1x1x8x16xf32>,
    %316 = arith.truncf %256 : vector<24x32xf32> to vector<24x32xbf16>
    %317 = vector.extract_strided_slice %1 {offsets = [0, 0, 0], sizes = [1, 32, 32], strides = [1, 1, 1]} : vector<3x32x32xbf16> to vector<1x32x32xbf16>
    %318 = vector.shape_cast %317 : vector<1x32x32xbf16> to vector<32x32xbf16>
    %cst_86 = arith.constant dense<0.000000e+00> : vector<24x32xf32>
    %319 = tpu.matmul %316, %318, %cst_86 {dimension_numbers = #tpu.dot_dimension_numbers<[1], [0], [0], [1], [0, 0, 1, 1], [], []>} : vector<24x32xbf16>, vector<32x32xbf16>, vector<24x32xf32> -> vector<24x32xf32>
    %320 = vector.extract_strided_slice %1 {offsets = [1, 0, 0], sizes = [1, 32, 32], strides = [1, 1, 1]} : vector<3x32x32xbf16> to vector<1x32x32xbf16>
    %321 = vector.shape_cast %320 : vector<1x32x32xbf16> to vector<32x32xbf16>
    %cst_87 = arith.constant dense<0.000000e+00> : vector<24x32xf32>
    %322 = tpu.matmul %316, %321, %cst_87 {dimension_numbers = #tpu.dot_dimension_numbers<[1], [0], [0], [1], [0, 0, 1, 1], [], []>} : vector<24x32xbf16>, vector<32x32xbf16>, vector<24x32xf32> -> vector<24x32xf32>
    %323 = vector.extract_strided_slice %1 {offsets = [2, 0, 0], sizes = [1, 32, 32], strides = [1, 1, 1]} : vector<3x32x32xbf16> to vector<1x32x32xbf16>
    %324 = vector.shape_cast %323 : vector<1x32x32xbf16> to vector<32x32xbf16>
    %cst_88 = arith.constant dense<0.000000e+00> : vector<24x32xf32>
    %325 = tpu.matmul %316, %324, %cst_88 {dimension_numbers = #tpu.dot_dimension_numbers<[1], [0], [0], [1], [0, 0, 1, 1], [], []>} : vector<24x32xbf16>, vector<32x32xbf16>, vector<24x32xf32> -> vector<24x32xf32>
    %326 = vector.extract_strided_slice %21 {offsets = [72, 0], sizes = [24, 32], strides = [1, 1]} : vector<144x32xf32> to vector<24x32xf32>
    %327 = arith.addf %326, %319 : vector<24x32xf32>
    %328 = arith.negf %327 : vector<24x32xf32>
    %329 = math.exp %328 : vector<24x32xf32>
    %cst_89 = arith.constant 1.000000e+00 : f32
    %330 = vector.broadcast %cst_89 : f32 to vector<24x32xf32>
    %331 = arith.addf %330, %329 : vector<24x32xf32>
    %332 = arith.divf %330, %331 : vector<24x32xf32>
    %333 = vector.extract_strided_slice %26 {offsets = [72, 0], sizes = [24, 32], strides = [1, 1]} : vector<144x32xf32> to vector<24x32xf32>
    %334 = arith.addf %333, %322 : vector<24x32xf32>
    %335 = arith.negf %334 : vector<24x32xf32>
    %336 = math.exp %335 : vector<24x32xf32>
    %cst_90 = arith.constant 1.000000e+00 : f32
    %337 = vector.broadcast %cst_90 : f32 to vector<24x32xf32>
    %338 = arith.addf %337, %336 : vector<24x32xf32>
    %339 = arith.divf %337, %338 : vector<24x32xf32>
    %340 = vector.extract_strided_slice %31 {offsets = [72, 0], sizes = [24, 32], strides = [1, 1]} : vector<144x32xf32> to vector<24x32xf32>
    %341 = vector.broadcast %9 : vector<1x32xf32> to vector<24x32xf32>
    %342 = arith.addf %325, %341 : vector<24x32xf32>
    %343 = arith.mulf %332, %342 : vector<24x32xf32>
    %344 = arith.addf %340, %343 : vector<24x32xf32>
    %345 = math.tanh %344 : vector<24x32xf32>
    %cst_91 = arith.constant 1.000000e+00 : f32
    %346 = vector.broadcast %cst_91 : f32 to vector<24x32xf32>
    %347 = arith.subf %346, %339 : vector<24x32xf32>
    %348 = arith.mulf %347, %345 : vector<24x32xf32>
    %349 = arith.mulf %339, %256 : vector<24x32xf32>
    %350 = arith.addf %348, %349 : vector<24x32xf32>
    %351 = arith.truncf %350 : vector<24x32xf32> to vector<24x32xbf16>
    %352 = arith.truncf %304 : vector<24x16xf32> to vector<24x16xbf16>
    %353 = vector.extract_strided_slice %2 {offsets = [0, 0, 0], sizes = [1, 32, 16], strides = [1, 1, 1]} : vector<3x32x16xbf16> to vector<1x32x16xbf16>
    %354 = vector.shape_cast %353 : vector<1x32x16xbf16> to vector<32x16xbf16>
    %cst_92 = arith.constant dense<0.000000e+00> : vector<24x16xf32>
    %355 = tpu.matmul %351, %354, %cst_92 {dimension_numbers = #tpu.dot_dimension_numbers<[1], [0], [0], [1], [0, 0, 1, 1], [], []>} : vector<24x32xbf16>, vector<32x16xbf16>, vector<24x16xf32> -> vector<24x16xf32>
    %356 = vector.extract_strided_slice %3 {offsets = [0, 0, 0], sizes = [1, 16, 16], strides = [1, 1, 1]} : vector<3x16x16xbf16> to vector<1x16x16xbf16>
    %357 = vector.shape_cast %356 : vector<1x16x16xbf16> to vector<16x16xbf16>
    %cst_93 = arith.constant dense<0.000000e+00> : vector<24x16xf32>
    %358 = tpu.matmul %352, %357, %cst_93 {dimension_numbers = #tpu.dot_dimension_numbers<[1], [0], [0], [1], [0, 0, 1, 1], [], []>} : vector<24x16xbf16>, vector<16x16xbf16>, vector<24x16xf32> -> vector<24x16xf32>
    %359 = arith.addf %355, %358 : vector<24x16xf32>
    %360 = vector.broadcast %10 : vector<1x16xf32> to vector<24x16xf32>
    %361 = arith.addf %359, %360 : vector<24x16xf32>
    %362 = arith.negf %361 : vector<24x16xf32>
    %363 = math.exp %362 : vector<24x16xf32>
    %cst_94 = arith.constant 1.000000e+00 : f32
    %364 = vector.broadcast %cst_94 : f32 to vector<24x16xf32>
    %365 = arith.addf %364, %363 : vector<24x16xf32>
    %366 = arith.divf %364, %365 : vector<24x16xf32>
    %367 = vector.extract_strided_slice %2 {offsets = [1, 0, 0], sizes = [1, 32, 16], strides = [1, 1, 1]} : vector<3x32x16xbf16> to vector<1x32x16xbf16>
    %368 = vector.shape_cast %367 : vector<1x32x16xbf16> to vector<32x16xbf16>
    %cst_95 = arith.constant dense<0.000000e+00> : vector<24x16xf32>
    %369 = tpu.matmul %351, %368, %cst_95 {dimension_numbers = #tpu.dot_dimension_numbers<[1], [0], [0], [1], [0, 0, 1, 1], [], []>} : vector<24x32xbf16>, vector<32x16xbf16>, vector<24x16xf32> -> vector<24x16xf32>
    %370 = vector.extract_strided_slice %3 {offsets = [1, 0, 0], sizes = [1, 16, 16], strides = [1, 1, 1]} : vector<3x16x16xbf16> to vector<1x16x16xbf16>
    %371 = vector.shape_cast %370 : vector<1x16x16xbf16> to vector<16x16xbf16>
    %cst_96 = arith.constant dense<0.000000e+00> : vector<24x16xf32>
    %372 = tpu.matmul %352, %371, %cst_96 {dimension_numbers = #tpu.dot_dimension_numbers<[1], [0], [0], [1], [0, 0, 1, 1], [], []>} : vector<24x16xbf16>, vector<16x16xbf16>, vector<24x16xf32> -> vector<24x16xf32>
    %373 = arith.addf %369, %372 : vector<24x16xf32>
    %374 = vector.broadcast %11 : vector<1x16xf32> to vector<24x16xf32>
    %375 = arith.addf %373, %374 : vector<24x16xf32>
    %376 = arith.negf %375 : vector<24x16xf32>
    %377 = math.exp %376 : vector<24x16xf32>
    %cst_97 = arith.constant 1.000000e+00 : f32
    %378 = vector.broadcast %cst_97 : f32 to vector<24x16xf32>
    %379 = arith.addf %378, %377 : vector<24x16xf32>
    %380 = arith.divf %378, %379 : vector<24x16xf32>
    %381 = vector.extract_strided_slice %2 {offsets = [2, 0, 0], sizes = [1, 32, 16], strides = [1, 1, 1]} : vector<3x32x16xbf16> to vector<1x32x16xbf16>
    %382 = vector.shape_cast %381 : vector<1x32x16xbf16> to vector<32x16xbf16>
    %cst_98 = arith.constant dense<0.000000e+00> : vector<24x16xf32>
    %383 = tpu.matmul %351, %382, %cst_98 {dimension_numbers = #tpu.dot_dimension_numbers<[1], [0], [0], [1], [0, 0, 1, 1], [], []>} : vector<24x32xbf16>, vector<32x16xbf16>, vector<24x16xf32> -> vector<24x16xf32>
    %384 = vector.broadcast %12 : vector<1x16xf32> to vector<24x16xf32>
    %385 = arith.addf %383, %384 : vector<24x16xf32>
    %386 = vector.extract_strided_slice %3 {offsets = [2, 0, 0], sizes = [1, 16, 16], strides = [1, 1, 1]} : vector<3x16x16xbf16> to vector<1x16x16xbf16>
    %387 = vector.shape_cast %386 : vector<1x16x16xbf16> to vector<16x16xbf16>
    %cst_99 = arith.constant dense<0.000000e+00> : vector<24x16xf32>
    %388 = tpu.matmul %352, %387, %cst_99 {dimension_numbers = #tpu.dot_dimension_numbers<[1], [0], [0], [1], [0, 0, 1, 1], [], []>} : vector<24x16xbf16>, vector<16x16xbf16>, vector<24x16xf32> -> vector<24x16xf32>
    %389 = vector.broadcast %13 : vector<1x16xf32> to vector<24x16xf32>
    %390 = arith.addf %388, %389 : vector<24x16xf32>
    %391 = arith.mulf %366, %390 : vector<24x16xf32>
    %392 = arith.addf %385, %391 : vector<24x16xf32>
    %393 = math.tanh %392 : vector<24x16xf32>
    %cst_100 = arith.constant 1.000000e+00 : f32
    %394 = vector.broadcast %cst_100 : f32 to vector<24x16xf32>
    %395 = arith.subf %394, %380 : vector<24x16xf32>
    %396 = arith.mulf %395, %393 : vector<24x16xf32>
    %397 = arith.mulf %380, %304 : vector<24x16xf32>
    %398 = arith.addf %396, %397 : vector<24x16xf32>
    %c3 = arith.constant 3 : index
    %c0_101 = arith.constant 0 : index
    %c0_102 = arith.constant 0 : index
    %399 = vector.load %arg2[%c3, %c0_101, %c0_102] : memref<6x24x16xf32, #tpu.memory_space<vmem>>, vector<1x24x16xf32>
    %400 = vector.shape_cast %399 : vector<1x24x16xf32> to vector<24x16xf32>
    %401 = arith.mulf %398, %400 : vector<24x16xf32>
    %402 = vector.extract_strided_slice %401 {offsets = [0, 0], sizes = [8, 16], strides = [1, 1]} : vector<24x16xf32> to vector<8x16xf32>
    %403 = vector.extract_strided_slice %401 {offsets = [8, 0], sizes = [8, 16], strides = [1, 1]} : vector<24x16xf32> to vector<8x16xf32>
    %404 = arith.addf %402, %403 : vector<8x16xf32>
    %405 = vector.extract_strided_slice %401 {offsets = [16, 0], sizes = [8, 16], strides = [1, 1]} : vector<24x16xf32> to vector<8x16xf32>
    %406 = arith.addf %404, %405 : vector<8x16xf32>
    %c0_103 = arith.constant 0 : index
    %c3_104 = arith.constant 3 : index
    %c0_105 = arith.constant 0 : index
    %c0_106 = arith.constant 0 : index
    %407 = vector.load %arg9[%c0_103, %c3_104, %c0_105, %c0_106] : memref<1x6x8x16xf32, #tpu.memory_space<vmem>>, vector<1x1x8x16xf32>
    %408 = vector.shape_cast %407 : vector<1x1x8x16xf32> to vector<8x16xf32>
    %409 = vector.shape_cast %406 : vector<8x16xf32> to vector<1x1x8x16xf32>
    tpu.vector_store %arg9[%c0_103, %c3_104, %c0_105, %c0_106], %409 {strides = array<i32>} : memref<1x6x8x16xf32, #tpu.memory_space<vmem>>, vector<1x1x8x16xf32>,
    %410 = arith.truncf %350 : vector<24x32xf32> to vector<24x32xbf16>
    %411 = vector.extract_strided_slice %1 {offsets = [0, 0, 0], sizes = [1, 32, 32], strides = [1, 1, 1]} : vector<3x32x32xbf16> to vector<1x32x32xbf16>
    %412 = vector.shape_cast %411 : vector<1x32x32xbf16> to vector<32x32xbf16>
    %cst_107 = arith.constant dense<0.000000e+00> : vector<24x32xf32>
    %413 = tpu.matmul %410, %412, %cst_107 {dimension_numbers = #tpu.dot_dimension_numbers<[1], [0], [0], [1], [0, 0, 1, 1], [], []>} : vector<24x32xbf16>, vector<32x32xbf16>, vector<24x32xf32> -> vector<24x32xf32>
    %414 = vector.extract_strided_slice %1 {offsets = [1, 0, 0], sizes = [1, 32, 32], strides = [1, 1, 1]} : vector<3x32x32xbf16> to vector<1x32x32xbf16>
    %415 = vector.shape_cast %414 : vector<1x32x32xbf16> to vector<32x32xbf16>
    %cst_108 = arith.constant dense<0.000000e+00> : vector<24x32xf32>
    %416 = tpu.matmul %410, %415, %cst_108 {dimension_numbers = #tpu.dot_dimension_numbers<[1], [0], [0], [1], [0, 0, 1, 1], [], []>} : vector<24x32xbf16>, vector<32x32xbf16>, vector<24x32xf32> -> vector<24x32xf32>
    %417 = vector.extract_strided_slice %1 {offsets = [2, 0, 0], sizes = [1, 32, 32], strides = [1, 1, 1]} : vector<3x32x32xbf16> to vector<1x32x32xbf16>
    %418 = vector.shape_cast %417 : vector<1x32x32xbf16> to vector<32x32xbf16>
    %cst_109 = arith.constant dense<0.000000e+00> : vector<24x32xf32>
    %419 = tpu.matmul %410, %418, %cst_109 {dimension_numbers = #tpu.dot_dimension_numbers<[1], [0], [0], [1], [0, 0, 1, 1], [], []>} : vector<24x32xbf16>, vector<32x32xbf16>, vector<24x32xf32> -> vector<24x32xf32>
    %420 = vector.extract_strided_slice %21 {offsets = [96, 0], sizes = [24, 32], strides = [1, 1]} : vector<144x32xf32> to vector<24x32xf32>
    %421 = arith.addf %420, %413 : vector<24x32xf32>
    %422 = arith.negf %421 : vector<24x32xf32>
    %423 = math.exp %422 : vector<24x32xf32>
    %cst_110 = arith.constant 1.000000e+00 : f32
    %424 = vector.broadcast %cst_110 : f32 to vector<24x32xf32>
    %425 = arith.addf %424, %423 : vector<24x32xf32>
    %426 = arith.divf %424, %425 : vector<24x32xf32>
    %427 = vector.extract_strided_slice %26 {offsets = [96, 0], sizes = [24, 32], strides = [1, 1]} : vector<144x32xf32> to vector<24x32xf32>
    %428 = arith.addf %427, %416 : vector<24x32xf32>
    %429 = arith.negf %428 : vector<24x32xf32>
    %430 = math.exp %429 : vector<24x32xf32>
    %cst_111 = arith.constant 1.000000e+00 : f32
    %431 = vector.broadcast %cst_111 : f32 to vector<24x32xf32>
    %432 = arith.addf %431, %430 : vector<24x32xf32>
    %433 = arith.divf %431, %432 : vector<24x32xf32>
    %434 = vector.extract_strided_slice %31 {offsets = [96, 0], sizes = [24, 32], strides = [1, 1]} : vector<144x32xf32> to vector<24x32xf32>
    %435 = vector.broadcast %9 : vector<1x32xf32> to vector<24x32xf32>
    %436 = arith.addf %419, %435 : vector<24x32xf32>
    %437 = arith.mulf %426, %436 : vector<24x32xf32>
    %438 = arith.addf %434, %437 : vector<24x32xf32>
    %439 = math.tanh %438 : vector<24x32xf32>
    %cst_112 = arith.constant 1.000000e+00 : f32
    %440 = vector.broadcast %cst_112 : f32 to vector<24x32xf32>
    %441 = arith.subf %440, %433 : vector<24x32xf32>
    %442 = arith.mulf %441, %439 : vector<24x32xf32>
    %443 = arith.mulf %433, %350 : vector<24x32xf32>
    %444 = arith.addf %442, %443 : vector<24x32xf32>
    %445 = arith.truncf %444 : vector<24x32xf32> to vector<24x32xbf16>
    %446 = arith.truncf %398 : vector<24x16xf32> to vector<24x16xbf16>
    %447 = vector.extract_strided_slice %2 {offsets = [0, 0, 0], sizes = [1, 32, 16], strides = [1, 1, 1]} : vector<3x32x16xbf16> to vector<1x32x16xbf16>
    %448 = vector.shape_cast %447 : vector<1x32x16xbf16> to vector<32x16xbf16>
    %cst_113 = arith.constant dense<0.000000e+00> : vector<24x16xf32>
    %449 = tpu.matmul %445, %448, %cst_113 {dimension_numbers = #tpu.dot_dimension_numbers<[1], [0], [0], [1], [0, 0, 1, 1], [], []>} : vector<24x32xbf16>, vector<32x16xbf16>, vector<24x16xf32> -> vector<24x16xf32>
    %450 = vector.extract_strided_slice %3 {offsets = [0, 0, 0], sizes = [1, 16, 16], strides = [1, 1, 1]} : vector<3x16x16xbf16> to vector<1x16x16xbf16>
    %451 = vector.shape_cast %450 : vector<1x16x16xbf16> to vector<16x16xbf16>
    %cst_114 = arith.constant dense<0.000000e+00> : vector<24x16xf32>
    %452 = tpu.matmul %446, %451, %cst_114 {dimension_numbers = #tpu.dot_dimension_numbers<[1], [0], [0], [1], [0, 0, 1, 1], [], []>} : vector<24x16xbf16>, vector<16x16xbf16>, vector<24x16xf32> -> vector<24x16xf32>
    %453 = arith.addf %449, %452 : vector<24x16xf32>
    %454 = vector.broadcast %10 : vector<1x16xf32> to vector<24x16xf32>
    %455 = arith.addf %453, %454 : vector<24x16xf32>
    %456 = arith.negf %455 : vector<24x16xf32>
    %457 = math.exp %456 : vector<24x16xf32>
    %cst_115 = arith.constant 1.000000e+00 : f32
    %458 = vector.broadcast %cst_115 : f32 to vector<24x16xf32>
    %459 = arith.addf %458, %457 : vector<24x16xf32>
    %460 = arith.divf %458, %459 : vector<24x16xf32>
    %461 = vector.extract_strided_slice %2 {offsets = [1, 0, 0], sizes = [1, 32, 16], strides = [1, 1, 1]} : vector<3x32x16xbf16> to vector<1x32x16xbf16>
    %462 = vector.shape_cast %461 : vector<1x32x16xbf16> to vector<32x16xbf16>
    %cst_116 = arith.constant dense<0.000000e+00> : vector<24x16xf32>
    %463 = tpu.matmul %445, %462, %cst_116 {dimension_numbers = #tpu.dot_dimension_numbers<[1], [0], [0], [1], [0, 0, 1, 1], [], []>} : vector<24x32xbf16>, vector<32x16xbf16>, vector<24x16xf32> -> vector<24x16xf32>
    %464 = vector.extract_strided_slice %3 {offsets = [1, 0, 0], sizes = [1, 16, 16], strides = [1, 1, 1]} : vector<3x16x16xbf16> to vector<1x16x16xbf16>
    %465 = vector.shape_cast %464 : vector<1x16x16xbf16> to vector<16x16xbf16>
    %cst_117 = arith.constant dense<0.000000e+00> : vector<24x16xf32>
    %466 = tpu.matmul %446, %465, %cst_117 {dimension_numbers = #tpu.dot_dimension_numbers<[1], [0], [0], [1], [0, 0, 1, 1], [], []>} : vector<24x16xbf16>, vector<16x16xbf16>, vector<24x16xf32> -> vector<24x16xf32>
    %467 = arith.addf %463, %466 : vector<24x16xf32>
    %468 = vector.broadcast %11 : vector<1x16xf32> to vector<24x16xf32>
    %469 = arith.addf %467, %468 : vector<24x16xf32>
    %470 = arith.negf %469 : vector<24x16xf32>
    %471 = math.exp %470 : vector<24x16xf32>
    %cst_118 = arith.constant 1.000000e+00 : f32
    %472 = vector.broadcast %cst_118 : f32 to vector<24x16xf32>
    %473 = arith.addf %472, %471 : vector<24x16xf32>
    %474 = arith.divf %472, %473 : vector<24x16xf32>
    %475 = vector.extract_strided_slice %2 {offsets = [2, 0, 0], sizes = [1, 32, 16], strides = [1, 1, 1]} : vector<3x32x16xbf16> to vector<1x32x16xbf16>
    %476 = vector.shape_cast %475 : vector<1x32x16xbf16> to vector<32x16xbf16>
    %cst_119 = arith.constant dense<0.000000e+00> : vector<24x16xf32>
    %477 = tpu.matmul %445, %476, %cst_119 {dimension_numbers = #tpu.dot_dimension_numbers<[1], [0], [0], [1], [0, 0, 1, 1], [], []>} : vector<24x32xbf16>, vector<32x16xbf16>, vector<24x16xf32> -> vector<24x16xf32>
    %478 = vector.broadcast %12 : vector<1x16xf32> to vector<24x16xf32>
    %479 = arith.addf %477, %478 : vector<24x16xf32>
    %480 = vector.extract_strided_slice %3 {offsets = [2, 0, 0], sizes = [1, 16, 16], strides = [1, 1, 1]} : vector<3x16x16xbf16> to vector<1x16x16xbf16>
    %481 = vector.shape_cast %480 : vector<1x16x16xbf16> to vector<16x16xbf16>
    %cst_120 = arith.constant dense<0.000000e+00> : vector<24x16xf32>
    %482 = tpu.matmul %446, %481, %cst_120 {dimension_numbers = #tpu.dot_dimension_numbers<[1], [0], [0], [1], [0, 0, 1, 1], [], []>} : vector<24x16xbf16>, vector<16x16xbf16>, vector<24x16xf32> -> vector<24x16xf32>
    %483 = vector.broadcast %13 : vector<1x16xf32> to vector<24x16xf32>
    %484 = arith.addf %482, %483 : vector<24x16xf32>
    %485 = arith.mulf %460, %484 : vector<24x16xf32>
    %486 = arith.addf %479, %485 : vector<24x16xf32>
    %487 = math.tanh %486 : vector<24x16xf32>
    %cst_121 = arith.constant 1.000000e+00 : f32
    %488 = vector.broadcast %cst_121 : f32 to vector<24x16xf32>
    %489 = arith.subf %488, %474 : vector<24x16xf32>
    %490 = arith.mulf %489, %487 : vector<24x16xf32>
    %491 = arith.mulf %474, %398 : vector<24x16xf32>
    %492 = arith.addf %490, %491 : vector<24x16xf32>
    %c4 = arith.constant 4 : index
    %c0_122 = arith.constant 0 : index
    %c0_123 = arith.constant 0 : index
    %493 = vector.load %arg2[%c4, %c0_122, %c0_123] : memref<6x24x16xf32, #tpu.memory_space<vmem>>, vector<1x24x16xf32>
    %494 = vector.shape_cast %493 : vector<1x24x16xf32> to vector<24x16xf32>
    %495 = arith.mulf %492, %494 : vector<24x16xf32>
    %496 = vector.extract_strided_slice %495 {offsets = [0, 0], sizes = [8, 16], strides = [1, 1]} : vector<24x16xf32> to vector<8x16xf32>
    %497 = vector.extract_strided_slice %495 {offsets = [8, 0], sizes = [8, 16], strides = [1, 1]} : vector<24x16xf32> to vector<8x16xf32>
    %498 = arith.addf %496, %497 : vector<8x16xf32>
    %499 = vector.extract_strided_slice %495 {offsets = [16, 0], sizes = [8, 16], strides = [1, 1]} : vector<24x16xf32> to vector<8x16xf32>
    %500 = arith.addf %498, %499 : vector<8x16xf32>
    %c0_124 = arith.constant 0 : index
    %c4_125 = arith.constant 4 : index
    %c0_126 = arith.constant 0 : index
    %c0_127 = arith.constant 0 : index
    %501 = vector.load %arg9[%c0_124, %c4_125, %c0_126, %c0_127] : memref<1x6x8x16xf32, #tpu.memory_space<vmem>>, vector<1x1x8x16xf32>
    %502 = vector.shape_cast %501 : vector<1x1x8x16xf32> to vector<8x16xf32>
    %503 = vector.shape_cast %500 : vector<8x16xf32> to vector<1x1x8x16xf32>
    tpu.vector_store %arg9[%c0_124, %c4_125, %c0_126, %c0_127], %503 {strides = array<i32>} : memref<1x6x8x16xf32, #tpu.memory_space<vmem>>, vector<1x1x8x16xf32>,
    %504 = arith.truncf %444 : vector<24x32xf32> to vector<24x32xbf16>
    %505 = vector.extract_strided_slice %1 {offsets = [0, 0, 0], sizes = [1, 32, 32], strides = [1, 1, 1]} : vector<3x32x32xbf16> to vector<1x32x32xbf16>
    %506 = vector.shape_cast %505 : vector<1x32x32xbf16> to vector<32x32xbf16>
    %cst_128 = arith.constant dense<0.000000e+00> : vector<24x32xf32>
    %507 = tpu.matmul %504, %506, %cst_128 {dimension_numbers = #tpu.dot_dimension_numbers<[1], [0], [0], [1], [0, 0, 1, 1], [], []>} : vector<24x32xbf16>, vector<32x32xbf16>, vector<24x32xf32> -> vector<24x32xf32>
    %508 = vector.extract_strided_slice %1 {offsets = [1, 0, 0], sizes = [1, 32, 32], strides = [1, 1, 1]} : vector<3x32x32xbf16> to vector<1x32x32xbf16>
    %509 = vector.shape_cast %508 : vector<1x32x32xbf16> to vector<32x32xbf16>
    %cst_129 = arith.constant dense<0.000000e+00> : vector<24x32xf32>
    %510 = tpu.matmul %504, %509, %cst_129 {dimension_numbers = #tpu.dot_dimension_numbers<[1], [0], [0], [1], [0, 0, 1, 1], [], []>} : vector<24x32xbf16>, vector<32x32xbf16>, vector<24x32xf32> -> vector<24x32xf32>
    %511 = vector.extract_strided_slice %1 {offsets = [2, 0, 0], sizes = [1, 32, 32], strides = [1, 1, 1]} : vector<3x32x32xbf16> to vector<1x32x32xbf16>
    %512 = vector.shape_cast %511 : vector<1x32x32xbf16> to vector<32x32xbf16>
    %cst_130 = arith.constant dense<0.000000e+00> : vector<24x32xf32>
    %513 = tpu.matmul %504, %512, %cst_130 {dimension_numbers = #tpu.dot_dimension_numbers<[1], [0], [0], [1], [0, 0, 1, 1], [], []>} : vector<24x32xbf16>, vector<32x32xbf16>, vector<24x32xf32> -> vector<24x32xf32>
    %514 = vector.extract_strided_slice %21 {offsets = [120, 0], sizes = [24, 32], strides = [1, 1]} : vector<144x32xf32> to vector<24x32xf32>
    %515 = arith.addf %514, %507 : vector<24x32xf32>
    %516 = arith.negf %515 : vector<24x32xf32>
    %517 = math.exp %516 : vector<24x32xf32>
    %cst_131 = arith.constant 1.000000e+00 : f32
    %518 = vector.broadcast %cst_131 : f32 to vector<24x32xf32>
    %519 = arith.addf %518, %517 : vector<24x32xf32>
    %520 = arith.divf %518, %519 : vector<24x32xf32>
    %521 = vector.extract_strided_slice %26 {offsets = [120, 0], sizes = [24, 32], strides = [1, 1]} : vector<144x32xf32> to vector<24x32xf32>
    %522 = arith.addf %521, %510 : vector<24x32xf32>
    %523 = arith.negf %522 : vector<24x32xf32>
    %524 = math.exp %523 : vector<24x32xf32>
    %cst_132 = arith.constant 1.000000e+00 : f32
    %525 = vector.broadcast %cst_132 : f32 to vector<24x32xf32>
    %526 = arith.addf %525, %524 : vector<24x32xf32>
    %527 = arith.divf %525, %526 : vector<24x32xf32>
    %528 = vector.extract_strided_slice %31 {offsets = [120, 0], sizes = [24, 32], strides = [1, 1]} : vector<144x32xf32> to vector<24x32xf32>
    %529 = vector.broadcast %9 : vector<1x32xf32> to vector<24x32xf32>
    %530 = arith.addf %513, %529 : vector<24x32xf32>
    %531 = arith.mulf %520, %530 : vector<24x32xf32>
    %532 = arith.addf %528, %531 : vector<24x32xf32>
    %533 = math.tanh %532 : vector<24x32xf32>
    %cst_133 = arith.constant 1.000000e+00 : f32
    %534 = vector.broadcast %cst_133 : f32 to vector<24x32xf32>
    %535 = arith.subf %534, %527 : vector<24x32xf32>
    %536 = arith.mulf %535, %533 : vector<24x32xf32>
    %537 = arith.mulf %527, %444 : vector<24x32xf32>
    %538 = arith.addf %536, %537 : vector<24x32xf32>
    %539 = arith.truncf %538 : vector<24x32xf32> to vector<24x32xbf16>
    %540 = arith.truncf %492 : vector<24x16xf32> to vector<24x16xbf16>
    %541 = vector.extract_strided_slice %2 {offsets = [0, 0, 0], sizes = [1, 32, 16], strides = [1, 1, 1]} : vector<3x32x16xbf16> to vector<1x32x16xbf16>
    %542 = vector.shape_cast %541 : vector<1x32x16xbf16> to vector<32x16xbf16>
    %cst_134 = arith.constant dense<0.000000e+00> : vector<24x16xf32>
    %543 = tpu.matmul %539, %542, %cst_134 {dimension_numbers = #tpu.dot_dimension_numbers<[1], [0], [0], [1], [0, 0, 1, 1], [], []>} : vector<24x32xbf16>, vector<32x16xbf16>, vector<24x16xf32> -> vector<24x16xf32>
    %544 = vector.extract_strided_slice %3 {offsets = [0, 0, 0], sizes = [1, 16, 16], strides = [1, 1, 1]} : vector<3x16x16xbf16> to vector<1x16x16xbf16>
    %545 = vector.shape_cast %544 : vector<1x16x16xbf16> to vector<16x16xbf16>
    %cst_135 = arith.constant dense<0.000000e+00> : vector<24x16xf32>
    %546 = tpu.matmul %540, %545, %cst_135 {dimension_numbers = #tpu.dot_dimension_numbers<[1], [0], [0], [1], [0, 0, 1, 1], [], []>} : vector<24x16xbf16>, vector<16x16xbf16>, vector<24x16xf32> -> vector<24x16xf32>
    %547 = arith.addf %543, %546 : vector<24x16xf32>
    %548 = vector.broadcast %10 : vector<1x16xf32> to vector<24x16xf32>
    %549 = arith.addf %547, %548 : vector<24x16xf32>
    %550 = arith.negf %549 : vector<24x16xf32>
    %551 = math.exp %550 : vector<24x16xf32>
    %cst_136 = arith.constant 1.000000e+00 : f32
    %552 = vector.broadcast %cst_136 : f32 to vector<24x16xf32>
    %553 = arith.addf %552, %551 : vector<24x16xf32>
    %554 = arith.divf %552, %553 : vector<24x16xf32>
    %555 = vector.extract_strided_slice %2 {offsets = [1, 0, 0], sizes = [1, 32, 16], strides = [1, 1, 1]} : vector<3x32x16xbf16> to vector<1x32x16xbf16>
    %556 = vector.shape_cast %555 : vector<1x32x16xbf16> to vector<32x16xbf16>
    %cst_137 = arith.constant dense<0.000000e+00> : vector<24x16xf32>
    %557 = tpu.matmul %539, %556, %cst_137 {dimension_numbers = #tpu.dot_dimension_numbers<[1], [0], [0], [1], [0, 0, 1, 1], [], []>} : vector<24x32xbf16>, vector<32x16xbf16>, vector<24x16xf32> -> vector<24x16xf32>
    %558 = vector.extract_strided_slice %3 {offsets = [1, 0, 0], sizes = [1, 16, 16], strides = [1, 1, 1]} : vector<3x16x16xbf16> to vector<1x16x16xbf16>
    %559 = vector.shape_cast %558 : vector<1x16x16xbf16> to vector<16x16xbf16>
    %cst_138 = arith.constant dense<0.000000e+00> : vector<24x16xf32>
    %560 = tpu.matmul %540, %559, %cst_138 {dimension_numbers = #tpu.dot_dimension_numbers<[1], [0], [0], [1], [0, 0, 1, 1], [], []>} : vector<24x16xbf16>, vector<16x16xbf16>, vector<24x16xf32> -> vector<24x16xf32>
    %561 = arith.addf %557, %560 : vector<24x16xf32>
    %562 = vector.broadcast %11 : vector<1x16xf32> to vector<24x16xf32>
    %563 = arith.addf %561, %562 : vector<24x16xf32>
    %564 = arith.negf %563 : vector<24x16xf32>
    %565 = math.exp %564 : vector<24x16xf32>
    %cst_139 = arith.constant 1.000000e+00 : f32
    %566 = vector.broadcast %cst_139 : f32 to vector<24x16xf32>
    %567 = arith.addf %566, %565 : vector<24x16xf32>
    %568 = arith.divf %566, %567 : vector<24x16xf32>
    %569 = vector.extract_strided_slice %2 {offsets = [2, 0, 0], sizes = [1, 32, 16], strides = [1, 1, 1]} : vector<3x32x16xbf16> to vector<1x32x16xbf16>
    %570 = vector.shape_cast %569 : vector<1x32x16xbf16> to vector<32x16xbf16>
    %cst_140 = arith.constant dense<0.000000e+00> : vector<24x16xf32>
    %571 = tpu.matmul %539, %570, %cst_140 {dimension_numbers = #tpu.dot_dimension_numbers<[1], [0], [0], [1], [0, 0, 1, 1], [], []>} : vector<24x32xbf16>, vector<32x16xbf16>, vector<24x16xf32> -> vector<24x16xf32>
    %572 = vector.broadcast %12 : vector<1x16xf32> to vector<24x16xf32>
    %573 = arith.addf %571, %572 : vector<24x16xf32>
    %574 = vector.extract_strided_slice %3 {offsets = [2, 0, 0], sizes = [1, 16, 16], strides = [1, 1, 1]} : vector<3x16x16xbf16> to vector<1x16x16xbf16>
    %575 = vector.shape_cast %574 : vector<1x16x16xbf16> to vector<16x16xbf16>
    %cst_141 = arith.constant dense<0.000000e+00> : vector<24x16xf32>
    %576 = tpu.matmul %540, %575, %cst_141 {dimension_numbers = #tpu.dot_dimension_numbers<[1], [0], [0], [1], [0, 0, 1, 1], [], []>} : vector<24x16xbf16>, vector<16x16xbf16>, vector<24x16xf32> -> vector<24x16xf32>
    %577 = vector.broadcast %13 : vector<1x16xf32> to vector<24x16xf32>
    %578 = arith.addf %576, %577 : vector<24x16xf32>
    %579 = arith.mulf %554, %578 : vector<24x16xf32>
    %580 = arith.addf %573, %579 : vector<24x16xf32>
    %581 = math.tanh %580 : vector<24x16xf32>
    %cst_142 = arith.constant 1.000000e+00 : f32
    %582 = vector.broadcast %cst_142 : f32 to vector<24x16xf32>
    %583 = arith.subf %582, %568 : vector<24x16xf32>
    %584 = arith.mulf %583, %581 : vector<24x16xf32>
    %585 = arith.mulf %568, %492 : vector<24x16xf32>
    %586 = arith.addf %584, %585 : vector<24x16xf32>
    %c5 = arith.constant 5 : index
    %c0_143 = arith.constant 0 : index
    %c0_144 = arith.constant 0 : index
    %587 = vector.load %arg2[%c5, %c0_143, %c0_144] : memref<6x24x16xf32, #tpu.memory_space<vmem>>, vector<1x24x16xf32>
    %588 = vector.shape_cast %587 : vector<1x24x16xf32> to vector<24x16xf32>
    %589 = arith.mulf %586, %588 : vector<24x16xf32>
    %590 = vector.extract_strided_slice %589 {offsets = [0, 0], sizes = [8, 16], strides = [1, 1]} : vector<24x16xf32> to vector<8x16xf32>
    %591 = vector.extract_strided_slice %589 {offsets = [8, 0], sizes = [8, 16], strides = [1, 1]} : vector<24x16xf32> to vector<8x16xf32>
    %592 = arith.addf %590, %591 : vector<8x16xf32>
    %593 = vector.extract_strided_slice %589 {offsets = [16, 0], sizes = [8, 16], strides = [1, 1]} : vector<24x16xf32> to vector<8x16xf32>
    %594 = arith.addf %592, %593 : vector<8x16xf32>
    %c0_145 = arith.constant 0 : index
    %c5_146 = arith.constant 5 : index
    %c0_147 = arith.constant 0 : index
    %c0_148 = arith.constant 0 : index
    %595 = vector.load %arg9[%c0_145, %c5_146, %c0_147, %c0_148] : memref<1x6x8x16xf32, #tpu.memory_space<vmem>>, vector<1x1x8x16xf32>
    %596 = vector.shape_cast %595 : vector<1x1x8x16xf32> to vector<8x16xf32>
    %597 = vector.shape_cast %594 : vector<8x16xf32> to vector<1x1x8x16xf32>
    tpu.vector_store %arg9[%c0_145, %c5_146, %c0_147, %c0_148], %597 {strides = array<i32>} : memref<1x6x8x16xf32, #tpu.memory_space<vmem>>, vector<1x1x8x16xf32>,
    return
  }
  func.func @transform_0(%arg0: i32) -> (i32, i32, i32) {
    %c0_i32 = arith.constant 0 : i32
    %c0_i32_0 = arith.constant 0 : i32
    %c0_i32_1 = arith.constant 0 : i32
    return %c0_i32, %arg0, %c0_i32_0 : i32, i32, i32
  }
  func.func @transform_1(%arg0: i32) -> (i32, i32, i32) {
    %c0_i32 = arith.constant 0 : i32
    %c0_i32_0 = arith.constant 0 : i32
    %c0_i32_1 = arith.constant 0 : i32
    return %c0_i32, %arg0, %c0_i32_0 : i32, i32, i32
  }
  func.func @transform_2(%arg0: i32) -> (i32, i32, i32) {
    %c0_i32 = arith.constant 0 : i32
    %c0_i32_0 = arith.constant 0 : i32
    %c0_i32_1 = arith.constant 0 : i32
    %c0_i32_2 = arith.constant 0 : i32
    return %c0_i32, %c0_i32_0, %c0_i32_1 : i32, i32, i32
  }
  func.func @transform_3(%arg0: i32) -> (i32, i32, i32) {
    %c0_i32 = arith.constant 0 : i32
    %c0_i32_0 = arith.constant 0 : i32
    %c0_i32_1 = arith.constant 0 : i32
    %c0_i32_2 = arith.constant 0 : i32
    return %c0_i32, %c0_i32_0, %c0_i32_1 : i32, i32, i32
  }
  func.func @transform_4(%arg0: i32) -> (i32, i32) {
    %c0_i32 = arith.constant 0 : i32
    %c0_i32_0 = arith.constant 0 : i32
    %c0_i32_1 = arith.constant 0 : i32
    return %c0_i32, %c0_i32_0 : i32, i32
  }
  func.func @transform_5(%arg0: i32) -> (i32, i32, i32) {
    %c0_i32 = arith.constant 0 : i32
    %c0_i32_0 = arith.constant 0 : i32
    %c0_i32_1 = arith.constant 0 : i32
    %c0_i32_2 = arith.constant 0 : i32
    return %c0_i32, %c0_i32_0, %c0_i32_1 : i32, i32, i32
  }
  func.func @transform_6(%arg0: i32) -> (i32, i32, i32) {
    %c0_i32 = arith.constant 0 : i32
    %c0_i32_0 = arith.constant 0 : i32
    %c0_i32_1 = arith.constant 0 : i32
    %c0_i32_2 = arith.constant 0 : i32
    return %c0_i32, %c0_i32_0, %c0_i32_1 : i32, i32, i32
  }
  func.func @transform_7(%arg0: i32) -> (i32, i32) {
    %c0_i32 = arith.constant 0 : i32
    %c0_i32_0 = arith.constant 0 : i32
    %c0_i32_1 = arith.constant 0 : i32
    return %c0_i32, %c0_i32_0 : i32, i32
  }
  func.func @transform_8(%arg0: i32) -> (i32, i32, i32, i32) {
    %c0_i32 = arith.constant 0 : i32
    %c0_i32_0 = arith.constant 0 : i32
    %c0_i32_1 = arith.constant 0 : i32
    %c0_i32_2 = arith.constant 0 : i32
    return %arg0, %c0_i32, %c0_i32_0, %c0_i32_1 : i32, i32, i32, i32
  }
}

</mosaic_0001>

<llo_original>
// kernel: gru_model_forward.1
$region0: #{gru_model_forward.1}
  #allocation0 [shape = 'u32[]', space=smem, size = 0x4, offset = 0x4, fixed_abs, tag = 'smem constant byte address 0x4 - core index']
  #allocation1 [shape = 'u32[144,128]{1,0:T(1,128)}', space=vmem, size = 0x12000, scoped, tag = 'internal scratch']
  %s0 = inlined_call_operand.vmem [shape: f32[6,48,16], index: 0, kind: input, shape index: {}]
  %s1 = inlined_call_operand.vmem [shape: f32[6,48,16], index: 1, kind: input, shape index: {}]
  %s2 = inlined_call_operand.vmem [shape: bf16[3,16,32], index: 2, kind: input, shape index: {}]
  %s3 = inlined_call_operand.vmem [shape: bf16[3,32,32], index: 3, kind: input, shape index: {}]
  %s4 = inlined_call_operand.vmem [shape: f32[4,32], index: 4, kind: input, shape index: {}]
  %s5 = inlined_call_operand.vmem [shape: bf16[3,32,16], index: 5, kind: input, shape index: {}]
  %s6 = inlined_call_operand.vmem [shape: bf16[3,16,16], index: 6, kind: input, shape index: {}]
  %s7 = inlined_call_operand.vmem [shape: f32[4,16], index: 7, kind: input, shape index: {}]
  %s8 = inlined_call_operand.vmem [shape: f32[2,6,8,16], index: 8, kind: output, shape index: {}]
  %s9 = sld [smem:[#allocation0]]
  $region141: #{gru_model_forward.1} parent=0
    _
  %s11 = ssub.s32 1, %s9
  %s12 = scalar_select 0, %s11, %s9
  $region1: #{gru_model_forward.1} parent=0
    #allocation2 [shape = 'u8[147456]{0}', space=vmem, size = 0x24000, scoped, tag = 'input window, operand 0']
    #allocation3 [shape = 'u8[147456]{0}', space=vmem, size = 0x24000, scoped, tag = 'input window, operand 1']
    loop: start=0, step=1, limit=4
    $region2: #{gru_model_forward.1} parent=1 // loop_pre_header
      _
    $region3: #{gru_model_forward.1} parent=1 // loop_header
      %s14 = sphi 0, %s18
      %p15 = scmp.ge.s32.totalorder %s14, 4
      %s24 = sphi 0, %s26
      %s27 = sphi 0, %s24
      %s28 = sphi 0, %s27
      %s44 = sphi 0, %s28
      %s50 = sphi 0, %s52
      %s53 = sphi 0, %s50
      %s54 = sphi 0, %s53
      %s70 = sphi 0, %s54
      %s74 = sphi 0, %s74
      %s76 = sphi 0, %s74
      %s77 = sphi 0, %s76
      %s91 = sphi 0, %s77
      %s95 = sphi 0, %s95
      %s97 = sphi 0, %s95
      %s98 = sphi 0, %s97
      %s112 = sphi 0, %s98
      %s116 = sphi 0, %s116
      %s118 = sphi 0, %s116
      %s119 = sphi 0, %s118
      %s133 = sphi 0, %s119
      %s137 = sphi 0, %s137
      %s139 = sphi 0, %s137
      %s140 = sphi 0, %s139
      %s154 = sphi 0, %s140
      %s158 = sphi 0, %s158
      %s160 = sphi 0, %s158
      %s161 = sphi 0, %s160
      %s175 = sphi 0, %s161
      %s179 = sphi 0, %s179
      %s181 = sphi 0, %s179
      %s182 = sphi 0, %s181
      %s196 = sphi 0, %s182
      %s202 = sphi 0, %s204
      %s205 = sphi 0, %s202
      %s206 = sphi 0, %s205
      %s222 = sphi 0, %s206
    $region4: #{gru_model_forward.1} parent=1 // loop_header_branch
      %17 = sbr.rel (%p15) target = $region8
    $region5: #{gru_model_forward.1} parent=1 // loop_body
      %s19 = ssub.s32 %s14, 1
      %s20 = ssub.s32 %s14, 2
      %s21 = sadd.s32 %s14, 1
      %s22 = ssub.s32 %s14, %s21
      %p23 = scmp.eq.s32.totalorder %s22, 0
      %s25 = sadd.s32 %s24, 1
      %s26 = scalar_select %p23, %s24, %s25
      %p29 = pneg %p23
      %p30 = scmp.eq.s32.totalorder %s14, 1
      %p31 = por %p29, %p30
      %p32 = scmp.ne.s32.totalorder %s24, %s27
      %p33 = scmp.eq.s32.totalorder %s14, 0
      %p34 = por %p32, %p33
      %p35 = scmp.ne.s32.totalorder %s24, %s27
      %p36 = scmp.eq.s32.totalorder %s19, 1
      %p37 = por %p35, %p36
      %p38 = scmp.ne.s32.totalorder %s27, %s28
      %p39 = scmp.eq.s32.totalorder %s19, 0
      %p40 = por %p38, %p39
      %p41 = scmp.ne.s32.totalorder %s27, %s28
      %p42 = scmp.eq.s32.totalorder %s20, 1
      %p43 = por %p41, %p42
      %p45 = scmp.ne.s32.totalorder %s28, %s44
      %p46 = scmp.eq.s32.totalorder %s20, 0
      %p47 = por %p45, %p46
      %s48 = ssub.s32 %s14, %s21
      %p49 = scmp.eq.s32.totalorder %s48, 0
      %s51 = sadd.s32 %s50, 1
      %s52 = scalar_select %p49, %s50, %s51
      %p55 = pneg %p49
      %p56 = scmp.eq.s32.totalorder %s14, 1
      %p57 = por %p55, %p56
      %p58 = scmp.ne.s32.totalorder %s50, %s53
      %p59 = scmp.eq.s32.totalorder %s14, 0
      %p60 = por %p58, %p59
      %p61 = scmp.ne.s32.totalorder %s50, %s53
      %p62 = scmp.eq.s32.totalorder %s19, 1
      %p63 = por %p61, %p62
      %p64 = scmp.ne.s32.totalorder %s53, %s54
      %p65 = scmp.eq.s32.totalorder %s19, 0
      %p66 = por %p64, %p65
      %p67 = scmp.ne.s32.totalorder %s53, %s54
      %p68 = scmp.eq.s32.totalorder %s20, 1
      %p69 = por %p67, %p68
      %p71 = scmp.ne.s32.totalorder %s54, %s70
      %p72 = scmp.eq.s32.totalorder %s20, 0
      %p73 = por %p71, %p72
      %s75 = sadd.s32 %s74, 1
      %p78 = scmp.eq.s32.totalorder %s14, 1
      %p79 = scmp.ne.s32.totalorder %s74, %s76
      %p80 = scmp.eq.s32.totalorder %s14, 0
      %p81 = por %p79, %p80
      %p82 = scmp.ne.s32.totalorder %s74, %s76
      %p83 = scmp.eq.s32.totalorder %s19, 1
      %p84 = por %p82, %p83
      %p85 = scmp.ne.s32.totalorder %s76, %s77
      %p86 = scmp.eq.s32.totalorder %s19, 0
      %p87 = por %p85, %p86
      %p88 = scmp.ne.s32.totalorder %s76, %s77
      %p89 = scmp.eq.s32.totalorder %s20, 1
      %p90 = por %p88, %p89
      %p92 = scmp.ne.s32.totalorder %s77, %s91
      %p93 = scmp.eq.s32.totalorder %s20, 0
      %p94 = por %p92, %p93
      %s96 = sadd.s32 %s95, 1
      %p99 = scmp.eq.s32.totalorder %s14, 1
      %p100 = scmp.ne.s32.totalorder %s95, %s97
      %p101 = scmp.eq.s32.totalorder %s14, 0
      %p102 = por %p100, %p101
      %p103 = scmp.ne.s32.totalorder %s95, %s97
      %p104 = scmp.eq.s32.totalorder %s19, 1
      %p105 = por %p103, %p104
      %p106 = scmp.ne.s32.totalorder %s97, %s98
      %p107 = scmp.eq.s32.totalorder %s19, 0
      %p108 = por %p106, %p107
      %p109 = scmp.ne.s32.totalorder %s97, %s98
      %p110 = scmp.eq.s32.totalorder %s20, 1
      %p111 = por %p109, %p110
      %p113 = scmp.ne.s32.totalorder %s98, %s112
      %p114 = scmp.eq.s32.totalorder %s20, 0
      %p115 = por %p113, %p114
      %s117 = sadd.s32 %s116, 1
      %p120 = scmp.eq.s32.totalorder %s14, 1
      %p121 = scmp.ne.s32.totalorder %s116, %s118
      %p122 = scmp.eq.s32.totalorder %s14, 0
      %p123 = por %p121, %p122
      %p124 = scmp.ne.s32.totalorder %s116, %s118
      %p125 = scmp.eq.s32.totalorder %s19, 1
      %p126 = por %p124, %p125
      %p127 = scmp.ne.s32.totalorder %s118, %s119
      %p128 = scmp.eq.s32.totalorder %s19, 0
      %p129 = por %p127, %p128
      %p130 = scmp.ne.s32.totalorder %s118, %s119
      %p131 = scmp.eq.s32.totalorder %s20, 1
      %p132 = por %p130, %p131
      %p134 = scmp.ne.s32.totalorder %s119, %s133
      %p135 = scmp.eq.s32.totalorder %s20, 0
      %p136 = por %p134, %p135
      %s138 = sadd.s32 %s137, 1
      %p141 = scmp.eq.s32.totalorder %s14, 1
      %p142 = scmp.ne.s32.totalorder %s137, %s139
      %p143 = scmp.eq.s32.totalorder %s14, 0
      %p144 = por %p142, %p143
      %p145 = scmp.ne.s32.totalorder %s137, %s139
      %p146 = scmp.eq.s32.totalorder %s19, 1
      %p147 = por %p145, %p146
      %p148 = scmp.ne.s32.totalorder %s139, %s140
      %p149 = scmp.eq.s32.totalorder %s19, 0
      %p150 = por %p148, %p149
      %p151 = scmp.ne.s32.totalorder %s139, %s140
      %p152 = scmp.eq.s32.totalorder %s20, 1
      %p153 = por %p151, %p152
      %p155 = scmp.ne.s32.totalorder %s140, %s154
      %p156 = scmp.eq.s32.totalorder %s20, 0
      %p157 = por %p155, %p156
      %s159 = sadd.s32 %s158, 1
      %p162 = scmp.eq.s32.totalorder %s14, 1
      %p163 = scmp.ne.s32.totalorder %s158, %s160
      %p164 = scmp.eq.s32.totalorder %s14, 0
      %p165 = por %p163, %p164
      %p166 = scmp.ne.s32.totalorder %s158, %s160
      %p167 = scmp.eq.s32.totalorder %s19, 1
      %p168 = por %p166, %p167
      %p169 = scmp.ne.s32.totalorder %s160, %s161
      %p170 = scmp.eq.s32.totalorder %s19, 0
      %p171 = por %p169, %p170
      %p172 = scmp.ne.s32.totalorder %s160, %s161
      %p173 = scmp.eq.s32.totalorder %s20, 1
      %p174 = por %p172, %p173
      %p176 = scmp.ne.s32.totalorder %s161, %s175
      %p177 = scmp.eq.s32.totalorder %s20, 0
      %p178 = por %p176, %p177
      %s180 = sadd.s32 %s179, 1
      %p183 = scmp.eq.s32.totalorder %s14, 1
      %p184 = scmp.ne.s32.totalorder %s179, %s181
      %p185 = scmp.eq.s32.totalorder %s14, 0
      %p186 = por %p184, %p185
      %p187 = scmp.ne.s32.totalorder %s179, %s181
      %p188 = scmp.eq.s32.totalorder %s19, 1
      %p189 = por %p187, %p188
      %p190 = scmp.ne.s32.totalorder %s181, %s182
      %p191 = scmp.eq.s32.totalorder %s19, 0
      %p192 = por %p190, %p191
      %p193 = scmp.ne.s32.totalorder %s181, %s182
      %p194 = scmp.eq.s32.totalorder %s20, 1
      %p195 = por %p193, %p194
      %p197 = scmp.ne.s32.totalorder %s182, %s196
      %p198 = scmp.eq.s32.totalorder %s20, 0
      %p199 = por %p197, %p198
      %s200 = ssub.s32 %s14, %s21
      %p201 = scmp.eq.s32.totalorder %s200, 0
      %s203 = sadd.s32 %s202, 1
      %s204 = scalar_select %p201, %s202, %s203
      %p207 = pneg %p201
      %p208 = scmp.eq.s32.totalorder %s14, 1
      %p209 = por %p207, %p208
      %p210 = scmp.ne.s32.totalorder %s202, %s205
      %p211 = scmp.eq.s32.totalorder %s14, 0
      %p212 = por %p210, %p211
      %p213 = scmp.ne.s32.totalorder %s202, %s205
      %p214 = scmp.eq.s32.totalorder %s19, 1
      %p215 = por %p213, %p214
      %p216 = scmp.ne.s32.totalorder %s205, %s206
      %p217 = scmp.eq.s32.totalorder %s19, 0
      %p218 = por %p216, %p217
      %p219 = scmp.ne.s32.totalorder %s205, %s206
      %p220 = scmp.eq.s32.totalorder %s20, 1
      %p221 = por %p219, %p220
      %p223 = scmp.ne.s32.totalorder %s206, %s222
      %p224 = scmp.eq.s32.totalorder %s20, 0
      %p225 = por %p223, %p224
      %p226 = scmp.le.s32.totalorder 1, %s14
      %p227 = scmp.lt.s32.totalorder %s14, 3
      %p228 = pnand %p226, %p227
      %p229 = pneg %p228
      // Predicated region
      $region9: #{gru_model_forward.1} parent=5 // pred_check
        _
      $region10: #{gru_model_forward.1} parent=5 // pred_check_branch
        %231 = sbr.rel (%p228) target = $region12
      $region11: #{gru_model_forward.1} parent=5 // pred_region
        %s232 = ssub.s32 %s14, 1
        // Predicated region
        $region13: #{gru_model_forward.1} parent=11 // pred_check
          %p233 = pneg %p87
        $region14: #{gru_model_forward.1} parent=11 // pred_check_branch
          %235 = sbr.rel (%p233) target = $region16
        $region15: #{gru_model_forward.1} parent=11 // pred_region
          _
        $region16: #{gru_model_forward.1} parent=11 // pred_fallthru
          _
        // Predicated region
        $region17: #{gru_model_forward.1} parent=11 // pred_check
          %p236 = pneg %p108
        $region18: #{gru_model_forward.1} parent=11 // pred_check_branch
          %238 = sbr.rel (%p236) target = $region20
        $region19: #{gru_model_forward.1} parent=11 // pred_region
          _
        $region20: #{gru_model_forward.1} parent=11 // pred_fallthru
          _
        // Predicated region
        $region21: #{gru_model_forward.1} parent=11 // pred_check
          %p239 = pneg %p129
        $region22: #{gru_model_forward.1} parent=11 // pred_check_branch
          %241 = sbr.rel (%p239) target = $region24
        $region23: #{gru_model_forward.1} parent=11 // pred_region
          _
        $region24: #{gru_model_forward.1} parent=11 // pred_fallthru
          _
        // Predicated region
        $region25: #{gru_model_forward.1} parent=11 // pred_check
          %p242 = pneg %p150
        $region26: #{gru_model_forward.1} parent=11 // pred_check_branch
          %244 = sbr.rel (%p242) target = $region28
        $region27: #{gru_model_forward.1} parent=11 // pred_region
          _
        $region28: #{gru_model_forward.1} parent=11 // pred_fallthru
          _
        // Predicated region
        $region29: #{gru_model_forward.1} parent=11 // pred_check
          %p245 = pneg %p171
        $region30: #{gru_model_forward.1} parent=11 // pred_check_branch
          %247 = sbr.rel (%p245) target = $region32
        $region31: #{gru_model_forward.1} parent=11 // pred_region
          _
        $region32: #{gru_model_forward.1} parent=11 // pred_fallthru
          _
        // Predicated region
        $region33: #{gru_model_forward.1} parent=11 // pred_check
          %p248 = pneg %p192
        $region34: #{gru_model_forward.1} parent=11 // pred_check_branch
          %250 = sbr.rel (%p248) target = $region36
        $region35: #{gru_model_forward.1} parent=11 // pred_region
          _
        $region36: #{gru_model_forward.1} parent=11 // pred_fallthru
          _
      $region12: #{gru_model_forward.1} parent=5 // pred_fallthru
        _
      %p251 = scmp.lt.s32.totalorder %s14, 2
      // Predicated region
      $region37: #{gru_model_forward.1} parent=5 // pred_check
        %p252 = pneg %p251
      $region38: #{gru_model_forward.1} parent=5 // pred_check_branch
        %254 = sbr.rel (%p252) target = $region40
      $region39: #{gru_model_forward.1} parent=5 // pred_region
        // Predicated region
        $region41: #{gru_model_forward.1} parent=39 // pred_check
          %p255 = pneg %p34
        $region42: #{gru_model_forward.1} parent=39 // pred_check_branch
          %257 = sbr.rel (%p255) target = $region44
        $region43: #{gru_model_forward.1} parent=39 // pred_region
          %s258 = sand.u32 %s24, 1
          %s259 = sand.u32 %s24, 1
          %s260 = smul.addr %s259, 144
          %s261 = scalar_lea.vmem [#allocation2], %s260
          %s262 = smul.u32 3, %s14
          %s263 = smul.addr %s262, 8
          %s264 = scalar_lea.vmem %s0, %s263
          // Predicated region
          $region45: #{gru_model_forward.1} parent=43 // pred_check
            _
          $region46: #{gru_model_forward.1} parent=43 // pred_check_branch
            %266 = sbr.rel (0) target = $region48
          $region47: #{gru_model_forward.1} parent=43 // pred_region
            // Predicated region
            $region49: #{gru_model_forward.1} parent=47 // pred_check
              _
            $region50: #{gru_model_forward.1} parent=47 // pred_check_branch
              %268 = sbr.rel (0) target = $region52
            $region51: #{gru_model_forward.1} parent=47 // pred_region
              // Predicated region
              $region64: #{gru_model_forward.1} parent=51 // pred_check
                _
              $region65: #{gru_model_forward.1} parent=51 // pred_check_branch
                %317 = sbr.rel (0) target = $region67
              $region66: #{gru_model_forward.1} parent=51 // pred_region
                loop: start=0, step=1, limit=1
                $region68: #{gru_model_forward.1} parent=66 // loop_pre_header
                  _
                $region69: #{gru_model_forward.1} parent=66 // loop_header
                  %s319 = sphi 0, %s323
                  %p320 = scmp.ge.s32.totalorder %s319, 1
                  %s324 = sphi %s264, %s264
                  %s325 = sphi %s261, %s261
                $region70: #{gru_model_forward.1} parent=66 // loop_header_branch
                  %322 = sbr.rel (%p320) target = $region74
                $region71: #{gru_model_forward.1} parent=66 // loop_body
                  %v326 = vld [vmem:[%s324] sm:$0xff]
                  %327 = vst [vmem:[%s325] sm:$0xff] %v326
                  %v328 = vld [vmem:[%s324 + $0x8] sm:$0xff]
                  %329 = vst [vmem:[%s325 + $0x8] sm:$0xff] %v328
                  %v330 = vld [vmem:[%s324 + $0x10] sm:$0xff]
                  %331 = vst [vmem:[%s325 + $0x10] sm:$0xff] %v330
                  %v332 = vld [vmem:[%s324 + $0x30] sm:$0xff]
                  %333 = vst [vmem:[%s325 + $0x18] sm:$0xff] %v332
                  %v334 = vld [vmem:[%s324 + $0x38] sm:$0xff]
                  %335 = vst [vmem:[%s325 + $0x20] sm:$0xff] %v334
                  %v336 = vld [vmem:[%s324 + $0x40] sm:$0xff]
                  %337 = vst [vmem:[%s325 + $0x28] sm:$0xff] %v336
                  %v338 = vld [vmem:[%s324 + $0x60] sm:$0xff]
                  %339 = vst [vmem:[%s325 + $0x30] sm:$0xff] %v338
                  %v340 = vld [vmem:[%s324 + $0x68] sm:$0xff]
                  %341 = vst [vmem:[%s325 + $0x38] sm:$0xff] %v340
                  %v342 = vld [vmem:[%s324 + $0x70] sm:$0xff]
                  %343 = vst [vmem:[%s325 + $0x40] sm:$0xff] %v342
                  %v344 = vld [vmem:[%s324 + $0x90] sm:$0xff]
                  %345 = vst [vmem:[%s325 + $0x48] sm:$0xff] %v344
                  %v346 = vld [vmem:[%s324 + $0x98] sm:$0xff]
                  %347 = vst [vmem:[%s325 + $0x50] sm:$0xff] %v346
                  %v348 = vld [vmem:[%s324 + $0xa0] sm:$0xff]
                  %349 = vst [vmem:[%s325 + $0x58] sm:$0xff] %v348
                  %v350 = vld [vmem:[%s324 + $0xc0] sm:$0xff]
                  %351 = vst [vmem:[%s325 + $0x60] sm:$0xff] %v350
                  %v352 = vld [vmem:[%s324 + $0xc8] sm:$0xff]
                  %353 = vst [vmem:[%s325 + $0x68] sm:$0xff] %v352
                  %v354 = vld [vmem:[%s324 + $0xd0] sm:$0xff]
                  %355 = vst [vmem:[%s325 + $0x70] sm:$0xff] %v354
                  %v356 = vld [vmem:[%s324 + $0xf0] sm:$0xff]
                  %357 = vst [vmem:[%s325 + $0x78] sm:$0xff] %v356
                  %v358 = vld [vmem:[%s324 + $0xf8] sm:$0xff]
                  %359 = vst [vmem:[%s325 + $0x80] sm:$0xff] %v358
                  %v360 = vld [vmem:[%s324 + $0x100] sm:$0xff]
                  %361 = vst [vmem:[%s325 + $0x88] sm:$0xff] %v360
                $region72: #{gru_model_forward.1} parent=66 // loop_footer
                  %s323 = sadd.s32 1, %s319
                $region73: #{gru_model_forward.1} parent=66 // loop_footer_branch
                  %318 = sbr.rel target = $region69
                $region74: #{gru_model_forward.1} parent=66 // loop_exit
                  _
              $region67: #{gru_model_forward.1} parent=51 // pred_fallthru
                _
              // Predicated region
              $region75: #{gru_model_forward.1} parent=51 // pred_check
                _
              $region76: #{gru_model_forward.1} parent=51 // pred_check_branch
                %363 = sbr.rel target = $region78
              $region77: #{gru_model_forward.1} parent=51 // pred_region
                _
              $region78: #{gru_model_forward.1} parent=51 // pred_fallthru
                _
            $region52: #{gru_model_forward.1} parent=47 // pred_fallthru
              _
            // Predicated region
            $region53: #{gru_model_forward.1} parent=47 // pred_check
              _
            $region54: #{gru_model_forward.1} parent=47 // pred_check_branch
              %270 = sbr.rel target = $region56
            $region55: #{gru_model_forward.1} parent=47 // pred_region
              loop: start=0, step=1, limit=1
              $region57: #{gru_model_forward.1} parent=55 // loop_pre_header
                _
              $region58: #{gru_model_forward.1} parent=55 // loop_header
                %s273 = sphi 0, %s277
                %p274 = scmp.ge.s32.totalorder %s273, 1
                %s278 = sphi %s264, %s264
                %s279 = sphi %s261, %s261
              $region59: #{gru_model_forward.1} parent=55 // loop_header_branch
                %276 = sbr.rel (%p274) target = $region63
              $region60: #{gru_model_forward.1} parent=55 // loop_body
                %v280 = vld [vmem:[%s278] sm:$0xff]
                %281 = vst [vmem:[%s279] sm:$0xff] %v280
                %v282 = vld [vmem:[%s278 + $0x8] sm:$0xff]
                %283 = vst [vmem:[%s279 + $0x8] sm:$0xff] %v282
                %v284 = vld [vmem:[%s278 + $0x10] sm:$0xff]
                %285 = vst [vmem:[%s279 + $0x10] sm:$0xff] %v284
                %v286 = vld [vmem:[%s278 + $0x30] sm:$0xff]
                %287 = vst [vmem:[%s279 + $0x18] sm:$0xff] %v286
                %v288 = vld [vmem:[%s278 + $0x38] sm:$0xff]
                %289 = vst [vmem:[%s279 + $0x20] sm:$0xff] %v288
                %v290 = vld [vmem:[%s278 + $0x40] sm:$0xff]
                %291 = vst [vmem:[%s279 + $0x28] sm:$0xff] %v290
                %v292 = vld [vmem:[%s278 + $0x60] sm:$0xff]
                %293 = vst [vmem:[%s279 + $0x30] sm:$0xff] %v292
                %v294 = vld [vmem:[%s278 + $0x68] sm:$0xff]
                %295 = vst [vmem:[%s279 + $0x38] sm:$0xff] %v294
                %v296 = vld [vmem:[%s278 + $0x70] sm:$0xff]
                %297 = vst [vmem:[%s279 + $0x40] sm:$0xff] %v296
                %v298 = vld [vmem:[%s278 + $0x90] sm:$0xff]
                %299 = vst [vmem:[%s279 + $0x48] sm:$0xff] %v298
                %v300 = vld [vmem:[%s278 + $0x98] sm:$0xff]
                %301 = vst [vmem:[%s279 + $0x50] sm:$0xff] %v300
                %v302 = vld [vmem:[%s278 + $0xa0] sm:$0xff]
                %303 = vst [vmem:[%s279 + $0x58] sm:$0xff] %v302
                %v304 = vld [vmem:[%s278 + $0xc0] sm:$0xff]
                %305 = vst [vmem:[%s279 + $0x60] sm:$0xff] %v304
                %v306 = vld [vmem:[%s278 + $0xc8] sm:$0xff]
                %307 = vst [vmem:[%s279 + $0x68] sm:$0xff] %v306
                %v308 = vld [vmem:[%s278 + $0xd0] sm:$0xff]
                %309 = vst [vmem:[%s279 + $0x70] sm:$0xff] %v308
                %v310 = vld [vmem:[%s278 + $0xf0] sm:$0xff]
                %311 = vst [vmem:[%s279 + $0x78] sm:$0xff] %v310
                %v312 = vld [vmem:[%s278 + $0xf8] sm:$0xff]
                %313 = vst [vmem:[%s279 + $0x80] sm:$0xff] %v312
                %v314 = vld [vmem:[%s278 + $0x100] sm:$0xff]
                %315 = vst [vmem:[%s279 + $0x88] sm:$0xff] %v314
              $region61: #{gru_model_forward.1} parent=55 // loop_footer
                %s277 = sadd.s32 1, %s273
              $region62: #{gru_model_forward.1} parent=55 // loop_footer_branch
                %272 = sbr.rel target = $region58
              $region63: #{gru_model_forward.1} parent=55 // loop_exit
                _
            $region56: #{gru_model_forward.1} parent=47 // pred_fallthru
              _
          $region48: #{gru_model_forward.1} parent=43 // pred_fallthru
            _
          %364 = vnop
        $region44: #{gru_model_forward.1} parent=39 // pred_fallthru
          _
        // Predicated region
        $region79: #{gru_model_forward.1} parent=39 // pred_check
          %p365 = pneg %p60
        $region80: #{gru_model_forward.1} parent=39 // pred_check_branch
          %367 = sbr.rel (%p365) target = $region82
        $region81: #{gru_model_forward.1} parent=39 // pred_region
          %s368 = sand.u32 %s50, 1
          %s369 = sand.u32 %s50, 1
          %s370 = smul.addr %s369, 144
          %s371 = scalar_lea.vmem [#allocation3], %s370
          %s372 = smul.u32 3, %s14
          %s373 = smul.addr %s372, 8
          %s374 = scalar_lea.vmem %s1, %s373
          // Predicated region
          $region83: #{gru_model_forward.1} parent=81 // pred_check
            _
          $region84: #{gru_model_forward.1} parent=81 // pred_check_branch
            %376 = sbr.rel (0) target = $region86
          $region85: #{gru_model_forward.1} parent=81 // pred_region
            // Predicated region
            $region87: #{gru_model_forward.1} parent=85 // pred_check
              _
            $region88: #{gru_model_forward.1} parent=85 // pred_check_branch
              %378 = sbr.rel (0) target = $region90
            $region89: #{gru_model_forward.1} parent=85 // pred_region
              // Predicated region
              $region102: #{gru_model_forward.1} parent=89 // pred_check
                _
              $region103: #{gru_model_forward.1} parent=89 // pred_check_branch
                %427 = sbr.rel (0) target = $region105
              $region104: #{gru_model_forward.1} parent=89 // pred_region
                loop: start=0, step=1, limit=1
                $region106: #{gru_model_forward.1} parent=104 // loop_pre_header
                  _
                $region107: #{gru_model_forward.1} parent=104 // loop_header
                  %s429 = sphi 0, %s433
                  %p430 = scmp.ge.s32.totalorder %s429, 1
                  %s434 = sphi %s374, %s374
                  %s435 = sphi %s371, %s371
                $region108: #{gru_model_forward.1} parent=104 // loop_header_branch
                  %432 = sbr.rel (%p430) target = $region112
                $region109: #{gru_model_forward.1} parent=104 // loop_body
                  %v436 = vld [vmem:[%s434] sm:$0xff]
                  %437 = vst [vmem:[%s435] sm:$0xff] %v436
                  %v438 = vld [vmem:[%s434 + $0x8] sm:$0xff]
                  %439 = vst [vmem:[%s435 + $0x8] sm:$0xff] %v438
                  %v440 = vld [vmem:[%s434 + $0x10] sm:$0xff]
                  %441 = vst [vmem:[%s435 + $0x10] sm:$0xff] %v440
                  %v442 = vld [vmem:[%s434 + $0x30] sm:$0xff]
                  %443 = vst [vmem:[%s435 + $0x18] sm:$0xff] %v442
                  %v444 = vld [vmem:[%s434 + $0x38] sm:$0xff]
                  %445 = vst [vmem:[%s435 + $0x20] sm:$0xff] %v444
                  %v446 = vld [vmem:[%s434 + $0x40] sm:$0xff]
                  %447 = vst [vmem:[%s435 + $0x28] sm:$0xff] %v446
                  %v448 = vld [vmem:[%s434 + $0x60] sm:$0xff]
                  %449 = vst [vmem:[%s435 + $0x30] sm:$0xff] %v448
                  %v450 = vld [vmem:[%s434 + $0x68] sm:$0xff]
                  %451 = vst [vmem:[%s435 + $0x38] sm:$0xff] %v450
                  %v452 = vld [vmem:[%s434 + $0x70] sm:$0xff]
                  %453 = vst [vmem:[%s435 + $0x40] sm:$0xff] %v452
                  %v454 = vld [vmem:[%s434 + $0x90] sm:$0xff]
                  %455 = vst [vmem:[%s435 + $0x48] sm:$0xff] %v454
                  %v456 = vld [vmem:[%s434 + $0x98] sm:$0xff]
                  %457 = vst [vmem:[%s435 + $0x50] sm:$0xff] %v456
                  %v458 = vld [vmem:[%s434 + $0xa0] sm:$0xff]
                  %459 = vst [vmem:[%s435 + $0x58] sm:$0xff] %v458
                  %v460 = vld [vmem:[%s434 + $0xc0] sm:$0xff]
                  %461 = vst [vmem:[%s435 + $0x60] sm:$0xff] %v460
                  %v462 = vld [vmem:[%s434 + $0xc8] sm:$0xff]
                  %463 = vst [vmem:[%s435 + $0x68] sm:$0xff] %v462
                  %v464 = vld [vmem:[%s434 + $0xd0] sm:$0xff]
                  %465 = vst [vmem:[%s435 + $0x70] sm:$0xff] %v464
                  %v466 = vld [vmem:[%s434 + $0xf0] sm:$0xff]
                  %467 = vst [vmem:[%s435 + $0x78] sm:$0xff] %v466
                  %v468 = vld [vmem:[%s434 + $0xf8] sm:$0xff]
                  %469 = vst [vmem:[%s435 + $0x80] sm:$0xff] %v468
                  %v470 = vld [vmem:[%s434 + $0x100] sm:$0xff]
                  %471 = vst [vmem:[%s435 + $0x88] sm:$0xff] %v470
                $region110: #{gru_model_forward.1} parent=104 // loop_footer
                  %s433 = sadd.s32 1, %s429
                $region111: #{gru_model_forward.1} parent=104 // loop_footer_branch
                  %428 = sbr.rel target = $region107
                $region112: #{gru_model_forward.1} parent=104 // loop_exit
                  _
              $region105: #{gru_model_forward.1} parent=89 // pred_fallthru
                _
              // Predicated region
              $region113: #{gru_model_forward.1} parent=89 // pred_check
                _
              $region114: #{gru_model_forward.1} parent=89 // pred_check_branch
                %473 = sbr.rel target = $region116
              $region115: #{gru_model_forward.1} parent=89 // pred_region
                _
              $region116: #{gru_model_forward.1} parent=89 // pred_fallthru
                _
            $region90: #{gru_model_forward.1} parent=85 // pred_fallthru
              _
            // Predicated region
            $region91: #{gru_model_forward.1} parent=85 // pred_check
              _
            $region92: #{gru_model_forward.1} parent=85 // pred_check_branch
              %380 = sbr.rel target = $region94
            $region93: #{gru_model_forward.1} parent=85 // pred_region
              loop: start=0, step=1, limit=1
              $region95: #{gru_model_forward.1} parent=93 // loop_pre_header
                _
              $region96: #{gru_model_forward.1} parent=93 // loop_header
                %s383 = sphi 0, %s387
                %p384 = scmp.ge.s32.totalorder %s383, 1
                %s388 = sphi %s374, %s374
                %s389 = sphi %s371, %s371
              $region97: #{gru_model_forward.1} parent=93 // loop_header_branch
                %386 = sbr.rel (%p384) target = $region101
              $region98: #{gru_model_forward.1} parent=93 // loop_body
                %v390 = vld [vmem:[%s388] sm:$0xff]
                %391 = vst [vmem:[%s389] sm:$0xff] %v390
                %v392 = vld [vmem:[%s388 + $0x8] sm:$0xff]
                %393 = vst [vmem:[%s389 + $0x8] sm:$0xff] %v392
                %v394 = vld [vmem:[%s388 + $0x10] sm:$0xff]
                %395 = vst [vmem:[%s389 + $0x10] sm:$0xff] %v394
                %v396 = vld [vmem:[%s388 + $0x30] sm:$0xff]
                %397 = vst [vmem:[%s389 + $0x18] sm:$0xff] %v396
                %v398 = vld [vmem:[%s388 + $0x38] sm:$0xff]
                %399 = vst [vmem:[%s389 + $0x20] sm:$0xff] %v398
                %v400 = vld [vmem:[%s388 + $0x40] sm:$0xff]
                %401 = vst [vmem:[%s389 + $0x28] sm:$0xff] %v400
                %v402 = vld [vmem:[%s388 + $0x60] sm:$0xff]
                %403 = vst [vmem:[%s389 + $0x30] sm:$0xff] %v402
                %v404 = vld [vmem:[%s388 + $0x68] sm:$0xff]
                %405 = vst [vmem:[%s389 + $0x38] sm:$0xff] %v404
                %v406 = vld [vmem:[%s388 + $0x70] sm:$0xff]
                %407 = vst [vmem:[%s389 + $0x40] sm:$0xff] %v406
                %v408 = vld [vmem:[%s388 + $0x90] sm:$0xff]
                %409 = vst [vmem:[%s389 + $0x48] sm:$0xff] %v408
                %v410 = vld [vmem:[%s388 + $0x98] sm:$0xff]
                %411 = vst [vmem:[%s389 + $0x50] sm:$0xff] %v410
                %v412 = vld [vmem:[%s388 + $0xa0] sm:$0xff]
                %413 = vst [vmem:[%s389 + $0x58] sm:$0xff] %v412
                %v414 = vld [vmem:[%s388 + $0xc0] sm:$0xff]
                %415 = vst [vmem:[%s389 + $0x60] sm:$0xff] %v414
                %v416 = vld [vmem:[%s388 + $0xc8] sm:$0xff]
                %417 = vst [vmem:[%s389 + $0x68] sm:$0xff] %v416
                %v418 = vld [vmem:[%s388 + $0xd0] sm:$0xff]
                %419 = vst [vmem:[%s389 + $0x70] sm:$0xff] %v418
                %v420 = vld [vmem:[%s388 + $0xf0] sm:$0xff]
                %421 = vst [vmem:[%s389 + $0x78] sm:$0xff] %v420
                %v422 = vld [vmem:[%s388 + $0xf8] sm:$0xff]
                %423 = vst [vmem:[%s389 + $0x80] sm:$0xff] %v422
                %v424 = vld [vmem:[%s388 + $0x100] sm:$0xff]
                %425 = vst [vmem:[%s389 + $0x88] sm:$0xff] %v424
              $region99: #{gru_model_forward.1} parent=93 // loop_footer
                %s387 = sadd.s32 1, %s383
              $region100: #{gru_model_forward.1} parent=93 // loop_footer_branch
                %382 = sbr.rel target = $region96
              $region101: #{gru_model_forward.1} parent=93 // loop_exit
                _
            $region94: #{gru_model_forward.1} parent=85 // pred_fallthru
              _
          $region86: #{gru_model_forward.1} parent=81 // pred_fallthru
            _
          %474 = vnop
        $region82: #{gru_model_forward.1} parent=39 // pred_fallthru
          _
      $region40: #{gru_model_forward.1} parent=5 // pred_fallthru
        _
      %p475 = scmp.le.s32.totalorder 1, %s14
      %p476 = scmp.lt.s32.totalorder %s14, 3
      %p477 = pnand %p475, %p476
      %p478 = pneg %p477
      // Predicated region
      $region117: #{gru_model_forward.1} parent=5 // pred_check
        _
      $region118: #{gru_model_forward.1} parent=5 // pred_check_branch
        %480 = sbr.rel (%p477) target = $region120
      $region119: #{gru_model_forward.1} parent=5 // pred_region
        %s481 = ssub.s32 %s14, 1
        %s482 = sand.u32 %s27, 1
        %s483 = sand.u32 %s27, 1
        %s484 = smul.addr %s483, 144
        %s485 = scalar_lea.vmem [#allocation2], %s484
        // Predicated region
        $region121: #{gru_model_forward.1} parent=119 // pred_check
          %p486 = pneg %p40
        $region122: #{gru_model_forward.1} parent=119 // pred_check_branch
          %488 = sbr.rel (%p486) target = $region124
        $region123: #{gru_model_forward.1} parent=119 // pred_region
          _
        $region124: #{gru_model_forward.1} parent=119 // pred_fallthru
          _
        %s489 = sand.u32 %s53, 1
        %s490 = sand.u32 %s53, 1
        %s491 = smul.addr %s490, 144
        %s492 = scalar_lea.vmem [#allocation3], %s491
        // Predicated region
        $region125: #{gru_model_forward.1} parent=119 // pred_check
          %p493 = pneg %p66
        $region126: #{gru_model_forward.1} parent=119 // pred_check_branch
          %495 = sbr.rel (%p493) target = $region128
        $region127: #{gru_model_forward.1} parent=119 // pred_region
          _
        $region128: #{gru_model_forward.1} parent=119 // pred_fallthru
          _
        %s496 = sand.u32 %s27, 1
        %s497 = sand.u32 %s27, 1
        %s498 = smul.addr %s497, 144
        %s499 = scalar_lea.vmem [#allocation2], %s498
        %p500 = pneg %p40
        %p501 = pneg %p37
        %s502 = sand.u32 %s53, 1
        %s503 = sand.u32 %s53, 1
        %s504 = smul.addr %s503, 144
        %s505 = scalar_lea.vmem [#allocation3], %s504
        %p506 = pneg %p66
        %p507 = pneg %p63
        %p508 = pneg %p87
        %p509 = pneg %p84
        %p510 = pneg %p108
        %p511 = pneg %p105
        %p512 = pneg %p129
        %p513 = pneg %p126
        %p514 = pneg %p150
        %p515 = pneg %p147
        %p516 = pneg %p171
        %p517 = pneg %p168
        %p518 = pneg %p192
        %p519 = pneg %p189
        %p520 = pneg %p218
        %p521 = pneg %p215
        %p522 = scmp.lt.s32.totalorder %s19, 1
        %s523 = scalar_select %p522, %s19, 1
        %s524 = smul.addr %s523, 6
        %s525 = smul.addr %s524, 8
        %s526 = scalar_lea.vmem %s8, %s525
        %s527 = smul.u32 3, %s19
        %s528 = smul.u32 3, %s19
        %p529 = scmp.lt.s32.totalorder %s19, 1
        %s530 = scalar_select %p529, %s19, 1
        %s531 = smul.addr %s530, 6
        %s532 = smul.addr %s531, 8
        %s533 = scalar_lea.vmem %s8, %s532
        %v535 = vld [vmem:[%s2] sm:$0xf]
        %v536 = vld [vmem:[%s2 + $0x4] sm:$0xf]
        %v537 = vld [vmem:[%s2 + $0x8] sm:$0xf]
        %v538 = vld [vmem:[%s2 + $0xc] sm:$0xf]
        %v539 = vld [vmem:[%s2 + $0x10] sm:$0xf]
        %v540 = vld [vmem:[%s2 + $0x14] sm:$0xf]
        %v541 = vld [vmem:[%s3] sm:$0xf]
        %v542 = vld [vmem:[%s3 + $0x4] sm:$0xf]
        %v543 = vld [vmem:[%s3 + $0x8] sm:$0xf]
        %v544 = vld [vmem:[%s3 + $0xc] sm:$0xf]
        %v545 = vld [vmem:[%s3 + $0x10] sm:$0xf]
        %v546 = vld [vmem:[%s3 + $0x14] sm:$0xf]
        %v547 = vld [vmem:[%s3 + $0x18] sm:$0xf]
        %v548 = vld [vmem:[%s3 + $0x1c] sm:$0xf]
        %v549 = vld [vmem:[%s3 + $0x20] sm:$0xf]
        %v550 = vld [vmem:[%s3 + $0x24] sm:$0xf]
        %v551 = vld [vmem:[%s3 + $0x28] sm:$0xf]
        %v552 = vld [vmem:[%s3 + $0x2c] sm:$0xf]
        %v553 = vld [vmem:[%s5] sm:$0xf]
        %v554 = vld [vmem:[%s5 + $0x4] sm:$0xf]
        %v555 = vld [vmem:[%s5 + $0x8] sm:$0xf]
        %v556 = vld [vmem:[%s5 + $0xc] sm:$0xf]
        %v557 = vld [vmem:[%s5 + $0x10] sm:$0xf]
        %v558 = vld [vmem:[%s5 + $0x14] sm:$0xf]
        %v559 = vld [vmem:[%s5 + $0x18] sm:$0xf]
        %v560 = vld [vmem:[%s5 + $0x1c] sm:$0xf]
        %v561 = vld [vmem:[%s5 + $0x20] sm:$0xf]
        %v562 = vld [vmem:[%s5 + $0x24] sm:$0xf]
        %v563 = vld [vmem:[%s5 + $0x28] sm:$0xf]
        %v564 = vld [vmem:[%s5 + $0x2c] sm:$0xf]
        %v565 = vld [vmem:[%s6] sm:$0xf]
        %v566 = vld [vmem:[%s6 + $0x4] sm:$0xf]
        %v567 = vld [vmem:[%s6 + $0x8] sm:$0xf]
        %v568 = vld [vmem:[%s6 + $0xc] sm:$0xf]
        %v569 = vld [vmem:[%s6 + $0x10] sm:$0xf]
        %v570 = vld [vmem:[%s6 + $0x14] sm:$0xf]
        %v571 = vld [vmem:[%s4] sm:$0xf]
        %v572 = vld [vmem:[%s7] sm:$0xf]
        %v573 = vld [vmem:[%s485] sm:$0xff]
        %v574 = vld [vmem:[%s485 + $0x8] sm:$0xff]
        %v575 = vld [vmem:[%s485 + $0x10] sm:$0xff]
        %v576 = vld [vmem:[%s485 + $0x18] sm:$0xff]
        %v577 = vld [vmem:[%s485 + $0x20] sm:$0xff]
        %v578 = vld [vmem:[%s485 + $0x28] sm:$0xff]
        %v579 = vld [vmem:[%s485 + $0x30] sm:$0xff]
        %v580 = vld [vmem:[%s485 + $0x38] sm:$0xff]
        %v581 = vld [vmem:[%s485 + $0x40] sm:$0xff]
        %v582 = vld [vmem:[%s485 + $0x48] sm:$0xff]
        %v583 = vld [vmem:[%s485 + $0x50] sm:$0xff]
        %v584 = vld [vmem:[%s485 + $0x58] sm:$0xff]
        %v585 = vld [vmem:[%s485 + $0x60] sm:$0xff]
        %v586 = vld [vmem:[%s485 + $0x68] sm:$0xff]
        %v587 = vld [vmem:[%s485 + $0x70] sm:$0xff]
        %v588 = vld [vmem:[%s485 + $0x78] sm:$0xff]
        %v589 = vld [vmem:[%s485 + $0x80] sm:$0xff]
        %v590 = vld [vmem:[%s485 + $0x88] sm:$0xff]
        %v591 = vpack.c.bf16 %v574, %v573
        %v592 = vpack.c.bf16 %v576, %v575
        %v593 = vpack.c.bf16 %v578, %v577
        %v594 = vpack.c.bf16 %v580, %v579
        %v595 = vpack.c.bf16 %v582, %v581
        %v596 = vpack.c.bf16 %v584, %v583
        %v597 = vpack.c.bf16 %v586, %v585
        %v598 = vpack.c.bf16 %v588, %v587
        %v599 = vpack.c.bf16 %v590, %v589
        %v600 = vlaneseq
        %v601 = vshrl.u32 %v600, 7
        %v602 = vsub.s32 0, %v601
        %v603 = vrot.slane %v571, %v602
        %v606 = vunpack.c.l.b16 %v535
        %v607 = vunpack.c.l.b16 %v536
        %v608 = vpack.c.b16 %v607, %v606
        %vm610 = vcmask 130048
        %v612 = vsel %vm610, %v591, 0
        %v615 = vsel %vm610, %v592, 0
        %v618 = vsel %vm610, %v593, 0
        %v621 = vsel %vm610, %v594, 0
        %v624 = vsel %vm610, %v595, 0
        %v627 = vsel %vm610, %v596, 0
        %v630 = vsel %vm610, %v597, 0
        %v633 = vsel %vm610, %v598, 0
        %v636 = vsel %vm610, %v599, 0
        %638 = vmatprep.subr.bf16.mxu0 0
        %639 = vmatpush1.bf16.msra.mxu0 %v608
        %640 = vmatprep.subr.bf16.mxu0 0
        %641 = vmatpush1.bf16.msra.mxu0 0
        %642 = vmatprep.subr.bf16.mxu0 0
        %643 = vmatpush1.bf16.msra.mxu0 0
        %644 = vmatprep.subr.bf16.mxu0 0
        %645 = vmatpush1.bf16.msra.mxu0 0
        %646 = vmatprep.subr.bf16.mxu0 0
        %647 = vmatpush1.bf16.msra.mxu0 0
        %648 = vmatprep.subr.bf16.mxu0 0
        %649 = vmatpush1.bf16.msra.mxu0 0
        %650 = vmatprep.subr.bf16.mxu0 0
        %651 = vmatpush1.bf16.msra.mxu0 0
        %652 = vmatprep.subr.bf16.mxu0 0
        %653 = vmatpush1.bf16.msra.mxu0 0
        %654 = vmatprep.subr.bf16.mxu0 0
        %655 = vmatpush1.bf16.msra.mxu0 0
        %656 = vmatprep.subr.bf16.mxu0 0
        %657 = vmatpush1.bf16.msra.mxu0 0
        %658 = vmatprep.subr.bf16.mxu0 0
        %659 = vmatpush1.bf16.msra.mxu0 0
        %660 = vmatprep.subr.bf16.mxu0 0
        %661 = vmatpush1.bf16.msra.mxu0 0
        %662 = vmatprep.subr.bf16.mxu0 0
        %663 = vmatpush1.bf16.msra.mxu0 0
        %664 = vmatprep.subr.bf16.mxu0 0
        %665 = vmatpush1.bf16.msra.mxu0 0
        %666 = vmatprep.subr.bf16.mxu0 0
        %667 = vmatpush1.bf16.msra.mxu0 0
        %668 = vmatprep.subr.bf16.mxu0 0
        %669 = vmatpush1.bf16.msra.mxu0 0
        %670 = vmatprep.mubr.bf16.mxu0 0
        %671 = vmatmul.mubr.bf16.gmra.mrb[0].mxu0 %v612
        %v672 = vpop.f32.mrb[0].mxu0
        %v673 = vadd.f32 %v603, %v672
        %v674 = vpop.f32.mrb[0].mxu0
        %v675 = vpop.f32.mrb[0].mxu0
        %v676 = vadd.f32 %v603, %v675
        %v677 = vpop.f32.mrb[0].mxu0
        %678 = vmatprep.mubr.bf16.mxu0 0
        %679 = vmatmul.mubr.bf16.gmra.mrb[0].mxu0 %v615
        %v680 = vpop.f32.mrb[0].mxu0
        %v681 = vadd.f32 %v603, %v680
        %v682 = vpop.f32.mrb[0].mxu0
        %v683 = vpop.f32.mrb[0].mxu0
        %v684 = vadd.f32 %v603, %v683
        %v685 = vpop.f32.mrb[0].mxu0
        %686 = vmatprep.mubr.bf16.mxu0 0
        %687 = vmatmul.mubr.bf16.gmra.mrb[0].mxu0 %v618
        %v688 = vpop.f32.mrb[0].mxu0
        %v689 = vadd.f32 %v603, %v688
        %v690 = vpop.f32.mrb[0].mxu0
        %v691 = vpop.f32.mrb[0].mxu0
        %v692 = vadd.f32 %v603, %v691
        %v693 = vpop.f32.mrb[0].mxu0
        %694 = vmatprep.mubr.bf16.mxu0 0
        %695 = vmatmul.mubr.bf16.gmra.mrb[0].mxu0 %v621
        %v696 = vpop.f32.mrb[0].mxu0
        %v697 = vadd.f32 %v603, %v696
        %v698 = vpop.f32.mrb[0].mxu0
        %v699 = vpop.f32.mrb[0].mxu0
        %v700 = vadd.f32 %v603, %v699
        %v701 = vpop.f32.mrb[0].mxu0
        %702 = vmatprep.mubr.bf16.mxu0 0
        %703 = vmatmul.mubr.bf16.gmra.mrb[0].mxu0 %v624
        %v704 = vpop.f32.mrb[0].mxu0
        %v705 = vadd.f32 %v603, %v704
        %v706 = vpop.f32.mrb[0].mxu0
        %v707 = vpop.f32.mrb[0].mxu0
        %v708 = vadd.f32 %v603, %v707
        %v709 = vpop.f32.mrb[0].mxu0
        %710 = vmatprep.mubr.bf16.mxu0 0
        %711 = vmatmul.mubr.bf16.gmra.mrb[0].mxu0 %v627
        %v712 = vpop.f32.mrb[0].mxu0
        %v713 = vadd.f32 %v603, %v712
        %v714 = vpop.f32.mrb[0].mxu0
        %v715 = vpop.f32.mrb[0].mxu0
        %v716 = vadd.f32 %v603, %v715
        %v717 = vpop.f32.mrb[0].mxu0
        %718 = vmatprep.mubr.bf16.mxu0 0
        %719 = vmatmul.mubr.bf16.gmra.mrb[0].mxu0 %v630
        %v720 = vpop.f32.mrb[0].mxu0
        %v721 = vadd.f32 %v603, %v720
        %v722 = vpop.f32.mrb[0].mxu0
        %v723 = vpop.f32.mrb[0].mxu0
        %v724 = vadd.f32 %v603, %v723
        %v725 = vpop.f32.mrb[0].mxu0
        %726 = vmatprep.mubr.bf16.mxu0 0
        %727 = vmatmul.mubr.bf16.gmra.mrb[0].mxu0 %v633
        %v728 = vpop.f32.mrb[0].mxu0
        %v729 = vadd.f32 %v603, %v728
        %v730 = vpop.f32.mrb[0].mxu0
        %v731 = vpop.f32.mrb[0].mxu0
        %v732 = vadd.f32 %v603, %v731
        %v733 = vpop.f32.mrb[0].mxu0
        %734 = vmatprep.mubr.bf16.mxu0 0
        %735 = vmatmul.mubr.bf16.gmra.mrb[0].mxu0 %v636
        %v736 = vpop.f32.mrb[0].mxu0
        %v737 = vadd.f32 %v603, %v736
        %v738 = vpop.f32.mrb[0].mxu0
        %v739 = vpop.f32.mrb[0].mxu0
        %v740 = vadd.f32 %v603, %v739
        %v741 = vpop.f32.mrb[0].mxu0
        %742 = vdwg.mxu0
        %v743 = vlaneseq
        %v744 = vshrl.u32 %v743, 7
        %v745 = vsub.s32 1, %v744
        %v746 = vrot.slane %v571, %v745
        %v749 = vunpack.c.l.b16 %v537
        %v750 = vunpack.c.l.b16 %v538
        %v751 = vpack.c.b16 %v750, %v749
        %753 = vmatprep.subr.bf16.mxu0 0
        %754 = vmatpush1.bf16.msra.mxu0 %v751
        %755 = vmatprep.subr.bf16.mxu0 0
        %756 = vmatpush1.bf16.msra.mxu0 0
        %757 = vmatprep.subr.bf16.mxu0 0
        %758 = vmatpush1.bf16.msra.mxu0 0
        %759 = vmatprep.subr.bf16.mxu0 0
        %760 = vmatpush1.bf16.msra.mxu0 0
        %761 = vmatprep.subr.bf16.mxu0 0
        %762 = vmatpush1.bf16.msra.mxu0 0
        %763 = vmatprep.subr.bf16.mxu0 0
        %764 = vmatpush1.bf16.msra.mxu0 0
        %765 = vmatprep.subr.bf16.mxu0 0
        %766 = vmatpush1.bf16.msra.mxu0 0
        %767 = vmatprep.subr.bf16.mxu0 0
        %768 = vmatpush1.bf16.msra.mxu0 0
        %769 = vmatprep.subr.bf16.mxu0 0
        %770 = vmatpush1.bf16.msra.mxu0 0
        %771 = vmatprep.subr.bf16.mxu0 0
        %772 = vmatpush1.bf16.msra.mxu0 0
        %773 = vmatprep.subr.bf16.mxu0 0
        %774 = vmatpush1.bf16.msra.mxu0 0
        %775 = vmatprep.subr.bf16.mxu0 0
        %776 = vmatpush1.bf16.msra.mxu0 0
        %777 = vmatprep.subr.bf16.mxu0 0
        %778 = vmatpush1.bf16.msra.mxu0 0
        %779 = vmatprep.subr.bf16.mxu0 0
        %780 = vmatpush1.bf16.msra.mxu0 0
        %781 = vmatprep.subr.bf16.mxu0 0
        %782 = vmatpush1.bf16.msra.mxu0 0
        %783 = vmatprep.subr.bf16.mxu0 0
        %784 = vmatpush1.bf16.msra.mxu0 0
        %785 = vmatprep.mubr.bf16.mxu0 0
        %786 = vmatmul.mubr.bf16.gmra.mrb[0].mxu0 %v612
        %v787 = vpop.f32.mrb[0].mxu0
        %v788 = vadd.f32 %v746, %v787
        %v789 = vpop.f32.mrb[0].mxu0
        %v790 = vpop.f32.mrb[0].mxu0
        %v791 = vadd.f32 %v746, %v790
        %v792 = vpop.f32.mrb[0].mxu0
        %793 = vmatprep.mubr.bf16.mxu0 0
        %794 = vmatmul.mubr.bf16.gmra.mrb[0].mxu0 %v615
        %v795 = vpop.f32.mrb[0].mxu0
        %v796 = vadd.f32 %v746, %v795
        %v797 = vpop.f32.mrb[0].mxu0
        %v798 = vpop.f32.mrb[0].mxu0
        %v799 = vadd.f32 %v746, %v798
        %v800 = vpop.f32.mrb[0].mxu0
        %801 = vmatprep.mubr.bf16.mxu0 0
        %802 = vmatmul.mubr.bf16.gmra.mrb[0].mxu0 %v618
        %v803 = vpop.f32.mrb[0].mxu0
        %v804 = vadd.f32 %v746, %v803
        %v805 = vpop.f32.mrb[0].mxu0
        %v806 = vpop.f32.mrb[0].mxu0
        %v807 = vadd.f32 %v746, %v806
        %v808 = vpop.f32.mrb[0].mxu0
        %809 = vmatprep.mubr.bf16.mxu0 0
        %810 = vmatmul.mubr.bf16.gmra.mrb[0].mxu0 %v621
        %v811 = vpop.f32.mrb[0].mxu0
        %v812 = vadd.f32 %v746, %v811
        %v813 = vpop.f32.mrb[0].mxu0
        %v814 = vpop.f32.mrb[0].mxu0
        %v815 = vadd.f32 %v746, %v814
        %v816 = vpop.f32.mrb[0].mxu0
        %817 = vmatprep.mubr.bf16.mxu0 0
        %818 = vmatmul.mubr.bf16.gmra.mrb[0].mxu0 %v624
        %v819 = vpop.f32.mrb[0].mxu0
        %v820 = vadd.f32 %v746, %v819
        %v821 = vpop.f32.mrb[0].mxu0
        %v822 = vpop.f32.mrb[0].mxu0
        %v823 = vadd.f32 %v746, %v822
        %v824 = vpop.f32.mrb[0].mxu0
        %825 = vmatprep.mubr.bf16.mxu0 0
        %826 = vmatmul.mubr.bf16.gmra.mrb[0].mxu0 %v627
        %v827 = vpop.f32.mrb[0].mxu0
        %v828 = vadd.f32 %v746, %v827
        %v829 = vpop.f32.mrb[0].mxu0
        %v830 = vpop.f32.mrb[0].mxu0
        %v831 = vadd.f32 %v746, %v830
        %v832 = vpop.f32.mrb[0].mxu0
        %833 = vmatprep.mubr.bf16.mxu0 0
        %834 = vmatmul.mubr.bf16.gmra.mrb[0].mxu0 %v630
        %v835 = vpop.f32.mrb[0].mxu0
        %v836 = vadd.f32 %v746, %v835
        %v837 = vpop.f32.mrb[0].mxu0
        %v838 = vpop.f32.mrb[0].mxu0
        %v839 = vadd.f32 %v746, %v838
        %v840 = vpop.f32.mrb[0].mxu0
        %841 = vmatprep.mubr.bf16.mxu0 0
        %842 = vmatmul.mubr.bf16.gmra.mrb[0].mxu0 %v633
        %v843 = vpop.f32.mrb[0].mxu0
        %v844 = vadd.f32 %v746, %v843
        %v845 = vpop.f32.mrb[0].mxu0
        %v846 = vpop.f32.mrb[0].mxu0
        %v847 = vadd.f32 %v746, %v846
        %v848 = vpop.f32.mrb[0].mxu0
        %849 = vmatprep.mubr.bf16.mxu0 0
        %850 = vmatmul.mubr.bf16.gmra.mrb[0].mxu0 %v636
        %v851 = vpop.f32.mrb[0].mxu0
        %v852 = vadd.f32 %v746, %v851
        %v853 = vpop.f32.mrb[0].mxu0
        %v854 = vpop.f32.mrb[0].mxu0
        %v855 = vadd.f32 %v746, %v854
        %v856 = vpop.f32.mrb[0].mxu0
        %857 = vdwg.mxu0
        %v858 = vlaneseq
        %v859 = vshrl.u32 %v858, 7
        %v860 = vsub.s32 2, %v859
        %v861 = vrot.slane %v571, %v860
        %v864 = vunpack.c.l.b16 %v539
        %v865 = vunpack.c.l.b16 %v540
        %v866 = vpack.c.b16 %v865, %v864
        %868 = vmatprep.subr.bf16.mxu0 0
        %869 = vmatpush1.bf16.msra.mxu0 %v866
        %870 = vmatprep.subr.bf16.mxu0 0
        %871 = vmatpush1.bf16.msra.mxu0 0
        %872 = vmatprep.subr.bf16.mxu0 0
        %873 = vmatpush1.bf16.msra.mxu0 0
        %874 = vmatprep.subr.bf16.mxu0 0
        %875 = vmatpush1.bf16.msra.mxu0 0
        %876 = vmatprep.subr.bf16.mxu0 0
        %877 = vmatpush1.bf16.msra.mxu0 0
        %878 = vmatprep.subr.bf16.mxu0 0
        %879 = vmatpush1.bf16.msra.mxu0 0
        %880 = vmatprep.subr.bf16.mxu0 0
        %881 = vmatpush1.bf16.msra.mxu0 0
        %882 = vmatprep.subr.bf16.mxu0 0
        %883 = vmatpush1.bf16.msra.mxu0 0
        %884 = vmatprep.subr.bf16.mxu0 0
        %885 = vmatpush1.bf16.msra.mxu0 0
        %886 = vmatprep.subr.bf16.mxu0 0
        %887 = vmatpush1.bf16.msra.mxu0 0
        %888 = vmatprep.subr.bf16.mxu0 0
        %889 = vmatpush1.bf16.msra.mxu0 0
        %890 = vmatprep.subr.bf16.mxu0 0
        %891 = vmatpush1.bf16.msra.mxu0 0
        %892 = vmatprep.subr.bf16.mxu0 0
        %893 = vmatpush1.bf16.msra.mxu0 0
        %894 = vmatprep.subr.bf16.mxu0 0
        %895 = vmatpush1.bf16.msra.mxu0 0
        %896 = vmatprep.subr.bf16.mxu0 0
        %897 = vmatpush1.bf16.msra.mxu0 0
        %898 = vmatprep.subr.bf16.mxu0 0
        %899 = vmatpush1.bf16.msra.mxu0 0
        %900 = vmatprep.mubr.bf16.mxu0 0
        %901 = vmatmul.mubr.bf16.gmra.mrb[0].mxu0 %v612
        %v902 = vpop.f32.mrb[0].mxu0
        %v903 = vadd.f32 %v861, %v902
        %v904 = vpop.f32.mrb[0].mxu0
        %v905 = vpop.f32.mrb[0].mxu0
        %v906 = vadd.f32 %v861, %v905
        %v907 = vpop.f32.mrb[0].mxu0
        %908 = vmatprep.mubr.bf16.mxu0 0
        %909 = vmatmul.mubr.bf16.gmra.mrb[0].mxu0 %v615
        %v910 = vpop.f32.mrb[0].mxu0
        %v911 = vadd.f32 %v861, %v910
        %v912 = vpop.f32.mrb[0].mxu0
        %v913 = vpop.f32.mrb[0].mxu0
        %v914 = vadd.f32 %v861, %v913
        %v915 = vpop.f32.mrb[0].mxu0
        %916 = vmatprep.mubr.bf16.mxu0 0
        %917 = vmatmul.mubr.bf16.gmra.mrb[0].mxu0 %v618
        %v918 = vpop.f32.mrb[0].mxu0
        %v919 = vadd.f32 %v861, %v918
        %v920 = vpop.f32.mrb[0].mxu0
        %v921 = vpop.f32.mrb[0].mxu0
        %v922 = vadd.f32 %v861, %v921
        %v923 = vpop.f32.mrb[0].mxu0
        %924 = vmatprep.mubr.bf16.mxu0 0
        %925 = vmatmul.mubr.bf16.gmra.mrb[0].mxu0 %v621
        %v926 = vpop.f32.mrb[0].mxu0
        %v927 = vadd.f32 %v861, %v926
        %v928 = vpop.f32.mrb[0].mxu0
        %v929 = vpop.f32.mrb[0].mxu0
        %v930 = vadd.f32 %v861, %v929
        %v931 = vpop.f32.mrb[0].mxu0
        %932 = vmatprep.mubr.bf16.mxu0 0
        %933 = vmatmul.mubr.bf16.gmra.mrb[0].mxu0 %v624
        %v934 = vpop.f32.mrb[0].mxu0
        %v935 = vadd.f32 %v861, %v934
        %v936 = vpop.f32.mrb[0].mxu0
        %v937 = vpop.f32.mrb[0].mxu0
        %v938 = vadd.f32 %v861, %v937
        %v939 = vpop.f32.mrb[0].mxu0
        %940 = vmatprep.mubr.bf16.mxu0 0
        %941 = vmatmul.mubr.bf16.gmra.mrb[0].mxu0 %v627
        %v942 = vpop.f32.mrb[0].mxu0
        %v943 = vadd.f32 %v861, %v942
        %v944 = vpop.f32.mrb[0].mxu0
        %v945 = vpop.f32.mrb[0].mxu0
        %v946 = vadd.f32 %v861, %v945
        %v947 = vpop.f32.mrb[0].mxu0
        %948 = vmatprep.mubr.bf16.mxu0 0
        %949 = vmatmul.mubr.bf16.gmra.mrb[0].mxu0 %v630
        %v950 = vpop.f32.mrb[0].mxu0
        %v951 = vadd.f32 %v861, %v950
        %v952 = vpop.f32.mrb[0].mxu0
        %v953 = vpop.f32.mrb[0].mxu0
        %v954 = vadd.f32 %v861, %v953
        %v955 = vpop.f32.mrb[0].mxu0
        %956 = vmatprep.mubr.bf16.mxu0 0
        %957 = vmatmul.mubr.bf16.gmra.mrb[0].mxu0 %v633
        %v958 = vpop.f32.mrb[0].mxu0
        %v959 = vadd.f32 %v861, %v958
        %v960 = vpop.f32.mrb[0].mxu0
        %v961 = vpop.f32.mrb[0].mxu0
        %v962 = vadd.f32 %v861, %v961
        %v963 = vpop.f32.mrb[0].mxu0
        %964 = vmatprep.mubr.bf16.mxu0 0
        %965 = vmatmul.mubr.bf16.gmra.mrb[0].mxu0 %v636
        %v966 = vpop.f32.mrb[0].mxu0
        %v967 = vadd.f32 %v861, %v966
        %v968 = vpop.f32.mrb[0].mxu0
        %v969 = vpop.f32.mrb[0].mxu0
        %v970 = vadd.f32 %v861, %v969
        %v971 = vpop.f32.mrb[0].mxu0
        %972 = vdwg.mxu0
        %v977 = vunpack.c.l.b16 %v541
        %v978 = vunpack.c.l.b16 %v542
        %v979 = vunpack.c.l.b16 %v543
        %v980 = vunpack.c.l.b16 %v544
        %v981 = vpack.c.b16 %v978, %v977
        %v982 = vpack.c.b16 %v980, %v979
        %vm985 = vcmask 261120
        %v987 = vsel %vm985, 0, 0
        %989 = vmatprep.subr.bf16.mxu0 0
        %990 = vmatpush1.bf16.msra.mxu0 %v981
        %991 = vmatprep.subr.bf16.mxu0 0
        %992 = vmatpush1.bf16.msra.mxu0 %v982
        %993 = vmatprep.subr.bf16.mxu0 0
        %994 = vmatpush1.bf16.msra.mxu0 0
        %995 = vmatprep.subr.bf16.mxu0 0
        %996 = vmatpush1.bf16.msra.mxu0 0
        %997 = vmatprep.subr.bf16.mxu0 0
        %998 = vmatpush1.bf16.msra.mxu0 0
        %999 = vmatprep.subr.bf16.mxu0 0
        %1000 = vmatpush1.bf16.msra.mxu0 0
        %1001 = vmatprep.subr.bf16.mxu0 0
        %1002 = vmatpush1.bf16.msra.mxu0 0
        %1003 = vmatprep.subr.bf16.mxu0 0
        %1004 = vmatpush1.bf16.msra.mxu0 0
        %1005 = vmatprep.subr.bf16.mxu0 0
        %1006 = vmatpush1.bf16.msra.mxu0 0
        %1007 = vmatprep.subr.bf16.mxu0 0
        %1008 = vmatpush1.bf16.msra.mxu0 0
        %1009 = vmatprep.subr.bf16.mxu0 0
        %1010 = vmatpush1.bf16.msra.mxu0 0
        %1011 = vmatprep.subr.bf16.mxu0 0
        %1012 = vmatpush1.bf16.msra.mxu0 0
        %1013 = vmatprep.subr.bf16.mxu0 0
        %1014 = vmatpush1.bf16.msra.mxu0 0
        %1015 = vmatprep.subr.bf16.mxu0 0
        %1016 = vmatpush1.bf16.msra.mxu0 0
        %1017 = vmatprep.subr.bf16.mxu0 0
        %1018 = vmatpush1.bf16.msra.mxu0 0
        %1019 = vmatprep.subr.bf16.mxu0 0
        %1020 = vmatpush1.bf16.msra.mxu0 0
        %1021 = vmatprep.mubr.bf16.mxu0 0
        %1022 = vmatmul.mubr.bf16.gmra.mrb[0].mxu0 %v987
        %v1023 = vpop.f32.mrb[0].mxu0
        %v1024 = vadd.f32 0.0, %v1023
        %v1025 = vpop.f32.mrb[0].mxu0
        %v1026 = vpop.f32.mrb[0].mxu0
        %v1027 = vadd.f32 0.0, %v1026
        %v1028 = vpop.f32.mrb[0].mxu0
        %1029 = vmatprep.mubr.bf16.mxu0 0
        %1030 = vmatmul.mubr.bf16.gmra.mrb[0].mxu0 %v987
        %v1031 = vpop.f32.mrb[0].mxu0
        %v1032 = vadd.f32 0.0, %v1031
        %v1033 = vpop.f32.mrb[0].mxu0
        %v1034 = vpop.f32.mrb[0].mxu0
        %v1035 = vpop.f32.mrb[0].mxu0
        %1036 = vdwg.mxu0
        %v1041 = vunpack.c.l.b16 %v545
        %v1042 = vunpack.c.l.b16 %v546
        %v1043 = vunpack.c.l.b16 %v547
        %v1044 = vunpack.c.l.b16 %v548
        %v1045 = vpack.c.b16 %v1042, %v1041
        %v1046 = vpack.c.b16 %v1044, %v1043
        %1049 = vmatprep.subr.bf16.mxu0 0
        %1050 = vmatpush1.bf16.msra.mxu0 %v1045
        %1051 = vmatprep.subr.bf16.mxu0 0
        %1052 = vmatpush1.bf16.msra.mxu0 %v1046
        %1053 = vmatprep.subr.bf16.mxu0 0
        %1054 = vmatpush1.bf16.msra.mxu0 0
        %1055 = vmatprep.subr.bf16.mxu0 0
        %1056 = vmatpush1.bf16.msra.mxu0 0
        %1057 = vmatprep.subr.bf16.mxu0 0
        %1058 = vmatpush1.bf16.msra.mxu0 0
        %1059 = vmatprep.subr.bf16.mxu0 0
        %1060 = vmatpush1.bf16.msra.mxu0 0
        %1061 = vmatprep.subr.bf16.mxu0 0
        %1062 = vmatpush1.bf16.msra.mxu0 0
        %1063 = vmatprep.subr.bf16.mxu0 0
        %1064 = vmatpush1.bf16.msra.mxu0 0
        %1065 = vmatprep.subr.bf16.mxu0 0
        %1066 = vmatpush1.bf16.msra.mxu0 0
        %1067 = vmatprep.subr.bf16.mxu0 0
        %1068 = vmatpush1.bf16.msra.mxu0 0
        %1069 = vmatprep.subr.bf16.mxu0 0
        %1070 = vmatpush1.bf16.msra.mxu0 0
        %1071 = vmatprep.subr.bf16.mxu0 0
        %1072 = vmatpush1.bf16.msra.mxu0 0
        %1073 = vmatprep.subr.bf16.mxu0 0
        %1074 = vmatpush1.bf16.msra.mxu0 0
        %1075 = vmatprep.subr.bf16.mxu0 0
        %1076 = vmatpush1.bf16.msra.mxu0 0
        %1077 = vmatprep.subr.bf16.mxu0 0
        %1078 = vmatpush1.bf16.msra.mxu0 0
        %1079 = vmatprep.subr.bf16.mxu0 0
        %1080 = vmatpush1.bf16.msra.mxu0 0
        %1081 = vmatprep.mubr.bf16.mxu0 0
        %1082 = vmatmul.mubr.bf16.gmra.mrb[0].mxu0 %v987
        %v1083 = vpop.f32.mrb[0].mxu0
        %v1084 = vadd.f32 0.0, %v1083
        %v1085 = vpop.f32.mrb[0].mxu0
        %v1086 = vpop.f32.mrb[0].mxu0
        %v1087 = vadd.f32 0.0, %v1086
        %v1088 = vpop.f32.mrb[0].mxu0
        %1089 = vmatprep.mubr.bf16.mxu0 0
        %1090 = vmatmul.mubr.bf16.gmra.mrb[0].mxu0 %v987
        %v1091 = vpop.f32.mrb[0].mxu0
        %v1092 = vadd.f32 0.0, %v1091
        %v1093 = vpop.f32.mrb[0].mxu0
        %v1094 = vpop.f32.mrb[0].mxu0
        %v1095 = vpop.f32.mrb[0].mxu0
        %1096 = vdwg.mxu0
        %v1097 = vadd.f32 %v673, %v1024
        %v1098 = vadd.f32 %v676, %v1027
        %v1099 = vadd.f32 %v681, %v1032
        %v1100 = vxor.u32 %v1097, 2147483648
        %v1101 = vxor.u32 %v1098, 2147483648
        %v1102 = vxor.u32 %v1099, 2147483648
        %v1103 = vmul.f32 %v1100, 1.442695
        %v1104 = vpow.pop %v1103
        %v1105 = vmul.f32 %v1101, 1.442695
        %v1106 = vpow.pop %v1105
        %v1107 = vmul.f32 %v1102, 1.442695
        %v1108 = vpow.pop %v1107
        %v1109 = vadd.f32 %v1104, 1.0
        %v1110 = vadd.f32 %v1106, 1.0
        %v1111 = vadd.f32 %v1108, 1.0
        %v1112 = vrcp.pop %v1109
        %v1113 = vmul.f32 1.0, %v1112
        %v1114 = vrcp.pop %v1110
        %v1115 = vmul.f32 1.0, %v1114
        %v1116 = vrcp.pop %v1111
        %v1117 = vmul.f32 1.0, %v1116
        %v1118 = vadd.f32 %v788, %v1084
        %v1119 = vadd.f32 %v791, %v1087
        %v1120 = vadd.f32 %v796, %v1092
        %v1121 = vxor.u32 %v1118, 2147483648
        %v1122 = vxor.u32 %v1119, 2147483648
        %v1123 = vxor.u32 %v1120, 2147483648
        %v1124 = vmul.f32 %v1121, 1.442695
        %v1125 = vpow.pop %v1124
        %v1126 = vmul.f32 %v1122, 1.442695
        %v1127 = vpow.pop %v1126
        %v1128 = vmul.f32 %v1123, 1.442695
        %v1129 = vpow.pop %v1128
        %v1130 = vadd.f32 %v1125, 1.0
        %v1131 = vadd.f32 %v1127, 1.0
        %v1132 = vadd.f32 %v1129, 1.0
        %v1133 = vrcp.pop %v1130
        %v1134 = vmul.f32 1.0, %v1133
        %v1135 = vrcp.pop %v1131
        %v1136 = vmul.f32 1.0, %v1135
        %v1137 = vrcp.pop %v1132
        %v1138 = vmul.f32 1.0, %v1137
        %v1139 = vlaneseq
        %v1140 = vshrl.u32 %v1139, 7
        %v1141 = vsub.s32 3, %v1140
        %v1142 = vrot.slane %v571, %v1141
        %v1147 = vunpack.c.l.b16 %v549
        %v1148 = vunpack.c.l.b16 %v550
        %v1149 = vunpack.c.l.b16 %v551
        %v1150 = vunpack.c.l.b16 %v552
        %v1151 = vpack.c.b16 %v1148, %v1147
        %v1152 = vpack.c.b16 %v1150, %v1149
        %1155 = vmatprep.subr.bf16.mxu0 0
        %1156 = vmatpush1.bf16.msra.mxu0 %v1151
        %1157 = vmatprep.subr.bf16.mxu0 0
        %1158 = vmatpush1.bf16.msra.mxu0 %v1152
        %1159 = vmatprep.subr.bf16.mxu0 0
        %1160 = vmatpush1.bf16.msra.mxu0 0
        %1161 = vmatprep.subr.bf16.mxu0 0
        %1162 = vmatpush1.bf16.msra.mxu0 0
        %1163 = vmatprep.subr.bf16.mxu0 0
        %1164 = vmatpush1.bf16.msra.mxu0 0
        %1165 = vmatprep.subr.bf16.mxu0 0
        %1166 = vmatpush1.bf16.msra.mxu0 0
        %1167 = vmatprep.subr.bf16.mxu0 0
        %1168 = vmatpush1.bf16.msra.mxu0 0
        %1169 = vmatprep.subr.bf16.mxu0 0
        %1170 = vmatpush1.bf16.msra.mxu0 0
        %1171 = vmatprep.subr.bf16.mxu0 0
        %1172 = vmatpush1.bf16.msra.mxu0 0
        %1173 = vmatprep.subr.bf16.mxu0 0
        %1174 = vmatpush1.bf16.msra.mxu0 0
        %1175 = vmatprep.subr.bf16.mxu0 0
        %1176 = vmatpush1.bf16.msra.mxu0 0
        %1177 = vmatprep.subr.bf16.mxu0 0
        %1178 = vmatpush1.bf16.msra.mxu0 0
        %1179 = vmatprep.subr.bf16.mxu0 0
        %1180 = vmatpush1.bf16.msra.mxu0 0
        %1181 = vmatprep.subr.bf16.mxu0 0
        %1182 = vmatpush1.bf16.msra.mxu0 0
        %1183 = vmatprep.subr.bf16.mxu0 0
        %1184 = vmatpush1.bf16.msra.mxu0 0
        %1185 = vmatprep.subr.bf16.mxu0 0
        %1186 = vmatpush1.bf16.msra.mxu0 0
        %1187 = vmatprep.mubr.bf16.mxu0 0
        %1188 = vmatmul.mubr.bf16.gmra.mrb[0].mxu0 %v987
        %v1189 = vpop.f32.mrb[0].mxu0
        %v1190 = vadd.f32 %v1142, %v1189
        %v1191 = vpop.f32.mrb[0].mxu0
        %v1192 = vpop.f32.mrb[0].mxu0
        %v1193 = vadd.f32 %v1142, %v1192
        %v1194 = vpop.f32.mrb[0].mxu0
        %1195 = vmatprep.mubr.bf16.mxu0 0
        %1196 = vmatmul.mubr.bf16.gmra.mrb[0].mxu0 %v987
        %v1197 = vpop.f32.mrb[0].mxu0
        %v1198 = vadd.f32 %v1142, %v1197
        %v1199 = vpop.f32.mrb[0].mxu0
        %v1200 = vpop.f32.mrb[0].mxu0
        %v1201 = vpop.f32.mrb[0].mxu0
        %1202 = vdwg.mxu0
        %v1203 = vmul.f32 %v1113, %v1190
        %v1204 = vmul.f32 %v1115, %v1193
        %v1205 = vmul.f32 %v1117, %v1198
        %v1206 = vadd.f32 %v903, %v1203
        %v1207 = vadd.f32 %v906, %v1204
        %v1208 = vadd.f32 %v911, %v1205
        %v1209 = vtanh.pop %v1206
        %v1210 = vtanh.pop %v1207
        %v1211 = vtanh.pop %v1208
        %v1212 = vsub.f32 1.0, %v1134
        %v1213 = vsub.f32 1.0, %v1136
        %v1214 = vsub.f32 1.0, %v1138
        %v1215 = vmul.f32 %v1212, %v1209
        %v1216 = vmul.f32 %v1213, %v1210
        %v1217 = vmul.f32 %v1214, %v1211
        %v1218 = vmul.f32 %v1134, 0.0
        %v1219 = vmul.f32 %v1136, 0.0
        %v1220 = vmul.f32 %v1138, 0.0
        %v1221 = vadd.f32 %v1215, %v1218
        %v1222 = vadd.f32 %v1216, %v1219
        %v1223 = vadd.f32 %v1217, %v1220
        %v1224 = vpack.c.bf16 %v1222, %v1221
        %v1225 = vpack.c.bf16 %v1223, %v1223
        %v1228 = vunpack.c.l.b16 %v565
        %v1229 = vunpack.c.l.b16 %v566
        %v1230 = vpack.c.b16 %v1229, %v1228
        %v1232 = vsel %vm610, 0, 0
        %1234 = vmatprep.subr.bf16.mxu0 0
        %1235 = vmatpush1.bf16.msra.mxu0 %v1230
        %1236 = vmatprep.subr.bf16.mxu0 0
        %1237 = vmatpush1.bf16.msra.mxu0 0
        %1238 = vmatprep.subr.bf16.mxu0 0
        %1239 = vmatpush1.bf16.msra.mxu0 0
        %1240 = vmatprep.subr.bf16.mxu0 0
        %1241 = vmatpush1.bf16.msra.mxu0 0
        %1242 = vmatprep.subr.bf16.mxu0 0
        %1243 = vmatpush1.bf16.msra.mxu0 0
        %1244 = vmatprep.subr.bf16.mxu0 0
        %1245 = vmatpush1.bf16.msra.mxu0 0
        %1246 = vmatprep.subr.bf16.mxu0 0
        %1247 = vmatpush1.bf16.msra.mxu0 0
        %1248 = vmatprep.subr.bf16.mxu0 0
        %1249 = vmatpush1.bf16.msra.mxu0 0
        %1250 = vmatprep.subr.bf16.mxu0 0
        %1251 = vmatpush1.bf16.msra.mxu0 0
        %1252 = vmatprep.subr.bf16.mxu0 0
        %1253 = vmatpush1.bf16.msra.mxu0 0
        %1254 = vmatprep.subr.bf16.mxu0 0
        %1255 = vmatpush1.bf16.msra.mxu0 0
        %1256 = vmatprep.subr.bf16.mxu0 0
        %1257 = vmatpush1.bf16.msra.mxu0 0
        %1258 = vmatprep.subr.bf16.mxu0 0
        %1259 = vmatpush1.bf16.msra.mxu0 0
        %1260 = vmatprep.subr.bf16.mxu0 0
        %1261 = vmatpush1.bf16.msra.mxu0 0
        %1262 = vmatprep.subr.bf16.mxu0 0
        %1263 = vmatpush1.bf16.msra.mxu0 0
        %1264 = vmatprep.subr.bf16.mxu0 0
        %1265 = vmatpush1.bf16.msra.mxu0 0
        %1266 = vmatprep.mubr.bf16.mxu0 0
        %1267 = vmatmul.mubr.bf16.gmra.mrb[0].mxu0 %v1232
        %v1268 = vpop.f32.mrb[0].mxu0
        %v1269 = vadd.f32 0.0, %v1268
        %v1270 = vpop.f32.mrb[0].mxu0
        %v1271 = vpop.f32.mrb[0].mxu0
        %v1272 = vadd.f32 0.0, %v1271
        %v1273 = vpop.f32.mrb[0].mxu0
        %1274 = vmatprep.mubr.bf16.mxu0 0
        %1275 = vmatmul.mubr.bf16.gmra.mrb[0].mxu0 %v1232
        %v1276 = vpop.f32.mrb[0].mxu0
        %v1277 = vadd.f32 0.0, %v1276
        %v1278 = vpop.f32.mrb[0].mxu0
        %v1279 = vpop.f32.mrb[0].mxu0
        %v1280 = vpop.f32.mrb[0].mxu0
        %1281 = vdwg.mxu0
        %v1286 = vunpack.c.l.b16 %v553
        %v1287 = vunpack.c.l.b16 %v554
        %v1288 = vunpack.c.l.b16 %v555
        %v1289 = vunpack.c.l.b16 %v556
        %v1290 = vpack.c.b16 %v1287, %v1286
        %v1291 = vpack.c.b16 %v1289, %v1288
        %v1295 = vsel %vm985, %v1224, 0
        %v1298 = vsel %vm985, %v1225, 0
        %1300 = vmatprep.subr.bf16.mxu0 0
        %1301 = vmatpush1.bf16.msra.mxu0 %v1290
        %1302 = vmatprep.subr.bf16.mxu0 0
        %1303 = vmatpush1.bf16.msra.mxu0 %v1291
        %1304 = vmatprep.subr.bf16.mxu0 0
        %1305 = vmatpush1.bf16.msra.mxu0 0
        %1306 = vmatprep.subr.bf16.mxu0 0
        %1307 = vmatpush1.bf16.msra.mxu0 0
        %1308 = vmatprep.subr.bf16.mxu0 0
        %1309 = vmatpush1.bf16.msra.mxu0 0
        %1310 = vmatprep.subr.bf16.mxu0 0
        %1311 = vmatpush1.bf16.msra.mxu0 0
        %1312 = vmatprep.subr.bf16.mxu0 0
        %1313 = vmatpush1.bf16.msra.mxu0 0
        %1314 = vmatprep.subr.bf16.mxu0 0
        %1315 = vmatpush1.bf16.msra.mxu0 0
        %1316 = vmatprep.subr.bf16.mxu0 0
        %1317 = vmatpush1.bf16.msra.mxu0 0
        %1318 = vmatprep.subr.bf16.mxu0 0
        %1319 = vmatpush1.bf16.msra.mxu0 0
        %1320 = vmatprep.subr.bf16.mxu0 0
        %1321 = vmatpush1.bf16.msra.mxu0 0
        %1322 = vmatprep.subr.bf16.mxu0 0
        %1323 = vmatpush1.bf16.msra.mxu0 0
        %1324 = vmatprep.subr.bf16.mxu0 0
        %1325 = vmatpush1.bf16.msra.mxu0 0
        %1326 = vmatprep.subr.bf16.mxu0 0
        %1327 = vmatpush1.bf16.msra.mxu0 0
        %1328 = vmatprep.subr.bf16.mxu0 0
        %1329 = vmatpush1.bf16.msra.mxu0 0
        %1330 = vmatprep.subr.bf16.mxu0 0
        %1331 = vmatpush1.bf16.msra.mxu0 0
        %1332 = vmatprep.mubr.bf16.mxu0 0
        %1333 = vmatmul.mubr.bf16.gmra.mrb[0].mxu0 %v1295
        %v1334 = vpop.f32.mrb[0].mxu0
        %v1335 = vadd.f32 %v1269, %v1334
        %v1336 = vpop.f32.mrb[0].mxu0
        %v1337 = vpop.f32.mrb[0].mxu0
        %v1338 = vadd.f32 %v1272, %v1337
        %v1339 = vpop.f32.mrb[0].mxu0
        %1340 = vmatprep.mubr.bf16.mxu0 0
        %1341 = vmatmul.mubr.bf16.gmra.mrb[0].mxu0 %v1298
        %v1342 = vpop.f32.mrb[0].mxu0
        %v1343 = vadd.f32 %v1277, %v1342
        %v1344 = vpop.f32.mrb[0].mxu0
        %v1345 = vpop.f32.mrb[0].mxu0
        %v1346 = vpop.f32.mrb[0].mxu0
        %1347 = vdwg.mxu0
        %v1348 = vlaneseq
        %v1349 = vshrl.u32 %v1348, 7
        %v1350 = vsub.s32 0, %v1349
        %v1351 = vrot.slane %v572, %v1350
        %v1352 = vadd.f32 %v1335, %v1351
        %v1353 = vadd.f32 %v1338, %v1351
        %v1354 = vadd.f32 %v1343, %v1351
        %v1355 = vxor.u32 %v1352, 2147483648
        %v1356 = vxor.u32 %v1353, 2147483648
        %v1357 = vxor.u32 %v1354, 2147483648
        %v1358 = vmul.f32 %v1355, 1.442695
        %v1359 = vpow.pop %v1358
        %v1360 = vmul.f32 %v1356, 1.442695
        %v1361 = vpow.pop %v1360
        %v1362 = vmul.f32 %v1357, 1.442695
        %v1363 = vpow.pop %v1362
        %v1364 = vadd.f32 %v1359, 1.0
        %v1365 = vadd.f32 %v1361, 1.0
        %v1366 = vadd.f32 %v1363, 1.0
        %v1367 = vrcp.pop %v1364
        %v1368 = vmul.f32 1.0, %v1367
        %v1369 = vrcp.pop %v1365
        %v1370 = vmul.f32 1.0, %v1369
        %v1371 = vrcp.pop %v1366
        %v1372 = vmul.f32 1.0, %v1371
        %v1375 = vunpack.c.l.b16 %v567
        %v1376 = vunpack.c.l.b16 %v568
        %v1377 = vpack.c.b16 %v1376, %v1375
        %1379 = vmatprep.subr.bf16.mxu0 0
        %1380 = vmatpush1.bf16.msra.mxu0 %v1377
        %1381 = vmatprep.subr.bf16.mxu0 0
        %1382 = vmatpush1.bf16.msra.mxu0 0
        %1383 = vmatprep.subr.bf16.mxu0 0
        %1384 = vmatpush1.bf16.msra.mxu0 0
        %1385 = vmatprep.subr.bf16.mxu0 0
        %1386 = vmatpush1.bf16.msra.mxu0 0
        %1387 = vmatprep.subr.bf16.mxu0 0
        %1388 = vmatpush1.bf16.msra.mxu0 0
        %1389 = vmatprep.subr.bf16.mxu0 0
        %1390 = vmatpush1.bf16.msra.mxu0 0
        %1391 = vmatprep.subr.bf16.mxu0 0
        %1392 = vmatpush1.bf16.msra.mxu0 0
        %1393 = vmatprep.subr.bf16.mxu0 0
        %1394 = vmatpush1.bf16.msra.mxu0 0
        %1395 = vmatprep.subr.bf16.mxu0 0
        %1396 = vmatpush1.bf16.msra.mxu0 0
        %1397 = vmatprep.subr.bf16.mxu0 0
        %1398 = vmatpush1.bf16.msra.mxu0 0
        %1399 = vmatprep.subr.bf16.mxu0 0
        %1400 = vmatpush1.bf16.msra.mxu0 0
        %1401 = vmatprep.subr.bf16.mxu0 0
        %1402 = vmatpush1.bf16.msra.mxu0 0
        %1403 = vmatprep.subr.bf16.mxu0 0
        %1404 = vmatpush1.bf16.msra.mxu0 0
        %1405 = vmatprep.subr.bf16.mxu0 0
        %1406 = vmatpush1.bf16.msra.mxu0 0
        %1407 = vmatprep.subr.bf16.mxu0 0
        %1408 = vmatpush1.bf16.msra.mxu0 0
        %1409 = vmatprep.subr.bf16.mxu0 0
        %1410 = vmatpush1.bf16.msra.mxu0 0
        %1411 = vmatprep.mubr.bf16.mxu0 0
        %1412 = vmatmul.mubr.bf16.gmra.mrb[0].mxu0 %v1232
        %v1413 = vpop.f32.mrb[0].mxu0
        %v1414 = vadd.f32 0.0, %v1413
        %v1415 = vpop.f32.mrb[0].mxu0
        %v1416 = vpop.f32.mrb[0].mxu0
        %v1417 = vadd.f32 0.0, %v1416
        %v1418 = vpop.f32.mrb[0].mxu0
        %1419 = vmatprep.mubr.bf16.mxu0 0
        %1420 = vmatmul.mubr.bf16.gmra.mrb[0].mxu0 %v1232
        %v1421 = vpop.f32.mrb[0].mxu0
        %v1422 = vadd.f32 0.0, %v1421
        %v1423 = vpop.f32.mrb[0].mxu0
        %v1424 = vpop.f32.mrb[0].mxu0
        %v1425 = vpop.f32.mrb[0].mxu0
        %1426 = vdwg.mxu0
        %v1431 = vunpack.c.l.b16 %v557
        %v1432 = vunpack.c.l.b16 %v558
        %v1433 = vunpack.c.l.b16 %v559
        %v1434 = vunpack.c.l.b16 %v560
        %v1435 = vpack.c.b16 %v1432, %v1431
        %v1436 = vpack.c.b16 %v1434, %v1433
        %1439 = vmatprep.subr.bf16.mxu0 0
        %1440 = vmatpush1.bf16.msra.mxu0 %v1435
        %1441 = vmatprep.subr.bf16.mxu0 0
        %1442 = vmatpush1.bf16.msra.mxu0 %v1436
        %1443 = vmatprep.subr.bf16.mxu0 0
        %1444 = vmatpush1.bf16.msra.mxu0 0
        %1445 = vmatprep.subr.bf16.mxu0 0
        %1446 = vmatpush1.bf16.msra.mxu0 0
        %1447 = vmatprep.subr.bf16.mxu0 0
        %1448 = vmatpush1.bf16.msra.mxu0 0
        %1449 = vmatprep.subr.bf16.mxu0 0
        %1450 = vmatpush1.bf16.msra.mxu0 0
        %1451 = vmatprep.subr.bf16.mxu0 0
        %1452 = vmatpush1.bf16.msra.mxu0 0
        %1453 = vmatprep.subr.bf16.mxu0 0
        %1454 = vmatpush1.bf16.msra.mxu0 0
        %1455 = vmatprep.subr.bf16.mxu0 0
        %1456 = vmatpush1.bf16.msra.mxu0 0
        %1457 = vmatprep.subr.bf16.mxu0 0
        %1458 = vmatpush1.bf16.msra.mxu0 0
        %1459 = vmatprep.subr.bf16.mxu0 0
        %1460 = vmatpush1.bf16.msra.mxu0 0
        %1461 = vmatprep.subr.bf16.mxu0 0
        %1462 = vmatpush1.bf16.msra.mxu0 0
        %1463 = vmatprep.subr.bf16.mxu0 0
        %1464 = vmatpush1.bf16.msra.mxu0 0
        %1465 = vmatprep.subr.bf16.mxu0 0
        %1466 = vmatpush1.bf16.msra.mxu0 0
        %1467 = vmatprep.subr.bf16.mxu0 0
        %1468 = vmatpush1.bf16.msra.mxu0 0
        %1469 = vmatprep.subr.bf16.mxu0 0
        %1470 = vmatpush1.bf16.msra.mxu0 0
        %1471 = vmatprep.mubr.bf16.mxu0 0
        %1472 = vmatmul.mubr.bf16.gmra.mrb[0].mxu0 %v1295
        %v1473 = vpop.f32.mrb[0].mxu0
        %v1474 = vadd.f32 %v1414, %v1473
        %v1475 = vpop.f32.mrb[0].mxu0
        %v1476 = vpop.f32.mrb[0].mxu0
        %v1477 = vadd.f32 %v1417, %v1476
        %v1478 = vpop.f32.mrb[0].mxu0
        %1479 = vmatprep.mubr.bf16.mxu0 0
        %1480 = vmatmul.mubr.bf16.gmra.mrb[0].mxu0 %v1298
        %v1481 = vpop.f32.mrb[0].mxu0
        %v1482 = vadd.f32 %v1422, %v1481
        %v1483 = vpop.f32.mrb[0].mxu0
        %v1484 = vpop.f32.mrb[0].mxu0
        %v1485 = vpop.f32.mrb[0].mxu0
        %1486 = vdwg.mxu0
        %v1487 = vlaneseq
        %v1488 = vshrl.u32 %v1487, 7
        %v1489 = vsub.s32 1, %v1488
        %v1490 = vrot.slane %v572, %v1489
        %v1491 = vadd.f32 %v1474, %v1490
        %v1492 = vadd.f32 %v1477, %v1490
        %v1493 = vadd.f32 %v1482, %v1490
        %v1494 = vxor.u32 %v1491, 2147483648
        %v1495 = vxor.u32 %v1492, 2147483648
        %v1496 = vxor.u32 %v1493, 2147483648
        %v1497 = vmul.f32 %v1494, 1.442695
        %v1498 = vpow.pop %v1497
        %v1499 = vmul.f32 %v1495, 1.442695
        %v1500 = vpow.pop %v1499
        %v1501 = vmul.f32 %v1496, 1.442695
        %v1502 = vpow.pop %v1501
        %v1503 = vadd.f32 %v1498, 1.0
        %v1504 = vadd.f32 %v1500, 1.0
        %v1505 = vadd.f32 %v1502, 1.0
        %v1506 = vrcp.pop %v1503
        %v1507 = vmul.f32 1.0, %v1506
        %v1508 = vrcp.pop %v1504
        %v1509 = vmul.f32 1.0, %v1508
        %v1510 = vrcp.pop %v1505
        %v1511 = vmul.f32 1.0, %v1510
        %v1512 = vlaneseq
        %v1513 = vshrl.u32 %v1512, 7
        %v1514 = vsub.s32 2, %v1513
        %v1515 = vrot.slane %v572, %v1514
        %v1520 = vunpack.c.l.b16 %v561
        %v1521 = vunpack.c.l.b16 %v562
        %v1522 = vunpack.c.l.b16 %v563
        %v1523 = vunpack.c.l.b16 %v564
        %v1524 = vpack.c.b16 %v1521, %v1520
        %v1525 = vpack.c.b16 %v1523, %v1522
        %1528 = vmatprep.subr.bf16.mxu0 0
        %1529 = vmatpush1.bf16.msra.mxu0 %v1524
        %1530 = vmatprep.subr.bf16.mxu0 0
        %1531 = vmatpush1.bf16.msra.mxu0 %v1525
        %1532 = vmatprep.subr.bf16.mxu0 0
        %1533 = vmatpush1.bf16.msra.mxu0 0
        %1534 = vmatprep.subr.bf16.mxu0 0
        %1535 = vmatpush1.bf16.msra.mxu0 0
        %1536 = vmatprep.subr.bf16.mxu0 0
        %1537 = vmatpush1.bf16.msra.mxu0 0
        %1538 = vmatprep.subr.bf16.mxu0 0
        %1539 = vmatpush1.bf16.msra.mxu0 0
        %1540 = vmatprep.subr.bf16.mxu0 0
        %1541 = vmatpush1.bf16.msra.mxu0 0
        %1542 = vmatprep.subr.bf16.mxu0 0
        %1543 = vmatpush1.bf16.msra.mxu0 0
        %1544 = vmatprep.subr.bf16.mxu0 0
        %1545 = vmatpush1.bf16.msra.mxu0 0
        %1546 = vmatprep.subr.bf16.mxu0 0
        %1547 = vmatpush1.bf16.msra.mxu0 0
        %1548 = vmatprep.subr.bf16.mxu0 0
        %1549 = vmatpush1.bf16.msra.mxu0 0
        %1550 = vmatprep.subr.bf16.mxu0 0
        %1551 = vmatpush1.bf16.msra.mxu0 0
        %1552 = vmatprep.subr.bf16.mxu0 0
        %1553 = vmatpush1.bf16.msra.mxu0 0
        %1554 = vmatprep.subr.bf16.mxu0 0
        %1555 = vmatpush1.bf16.msra.mxu0 0
        %1556 = vmatprep.subr.bf16.mxu0 0
        %1557 = vmatpush1.bf16.msra.mxu0 0
        %1558 = vmatprep.subr.bf16.mxu0 0
        %1559 = vmatpush1.bf16.msra.mxu0 0
        %1560 = vmatprep.mubr.bf16.mxu0 0
        %1561 = vmatmul.mubr.bf16.gmra.mrb[0].mxu0 %v1295
        %v1562 = vpop.f32.mrb[0].mxu0
        %v1563 = vadd.f32 %v1515, %v1562
        %v1564 = vpop.f32.mrb[0].mxu0
        %v1565 = vpop.f32.mrb[0].mxu0
        %v1566 = vadd.f32 %v1515, %v1565
        %v1567 = vpop.f32.mrb[0].mxu0
        %1568 = vmatprep.mubr.bf16.mxu0 0
        %1569 = vmatmul.mubr.bf16.gmra.mrb[0].mxu0 %v1298
        %v1570 = vpop.f32.mrb[0].mxu0
        %v1571 = vadd.f32 %v1515, %v1570
        %v1572 = vpop.f32.mrb[0].mxu0
        %v1573 = vpop.f32.mrb[0].mxu0
        %v1574 = vpop.f32.mrb[0].mxu0
        %1575 = vdwg.mxu0
        %v1576 = vlaneseq
        %v1577 = vshrl.u32 %v1576, 7
        %v1578 = vsub.s32 3, %v1577
        %v1579 = vrot.slane %v572, %v1578
        %v1582 = vunpack.c.l.b16 %v569
        %v1583 = vunpack.c.l.b16 %v570
        %v1584 = vpack.c.b16 %v1583, %v1582
        %1586 = vmatprep.subr.bf16.mxu0 0
        %1587 = vmatpush1.bf16.msra.mxu0 %v1584
        %1588 = vmatprep.subr.bf16.mxu0 0
        %1589 = vmatpush1.bf16.msra.mxu0 0
        %1590 = vmatprep.subr.bf16.mxu0 0
        %1591 = vmatpush1.bf16.msra.mxu0 0
        %1592 = vmatprep.subr.bf16.mxu0 0
        %1593 = vmatpush1.bf16.msra.mxu0 0
        %1594 = vmatprep.subr.bf16.mxu0 0
        %1595 = vmatpush1.bf16.msra.mxu0 0
        %1596 = vmatprep.subr.bf16.mxu0 0
        %1597 = vmatpush1.bf16.msra.mxu0 0
        %1598 = vmatprep.subr.bf16.mxu0 0
        %1599 = vmatpush1.bf16.msra.mxu0 0
        %1600 = vmatprep.subr.bf16.mxu0 0
        %1601 = vmatpush1.bf16.msra.mxu0 0
        %1602 = vmatprep.subr.bf16.mxu0 0
        %1603 = vmatpush1.bf16.msra.mxu0 0
        %1604 = vmatprep.subr.bf16.mxu0 0
        %1605 = vmatpush1.bf16.msra.mxu0 0
        %1606 = vmatprep.subr.bf16.mxu0 0
        %1607 = vmatpush1.bf16.msra.mxu0 0
        %1608 = vmatprep.subr.bf16.mxu0 0
        %1609 = vmatpush1.bf16.msra.mxu0 0
        %1610 = vmatprep.subr.bf16.mxu0 0
        %1611 = vmatpush1.bf16.msra.mxu0 0
        %1612 = vmatprep.subr.bf16.mxu0 0
        %1613 = vmatpush1.bf16.msra.mxu0 0
        %1614 = vmatprep.subr.bf16.mxu0 0
        %1615 = vmatpush1.bf16.msra.mxu0 0
        %1616 = vmatprep.subr.bf16.mxu0 0
        %1617 = vmatpush1.bf16.msra.mxu0 0
        %1618 = vmatprep.mubr.bf16.mxu0 0
        %1619 = vmatmul.mubr.bf16.gmra.mrb[0].mxu0 %v1232
        %v1620 = vpop.f32.mrb[0].mxu0
        %v1621 = vadd.f32 %v1579, %v1620
        %v1622 = vpop.f32.mrb[0].mxu0
        %v1623 = vpop.f32.mrb[0].mxu0
        %v1624 = vadd.f32 %v1579, %v1623
        %v1625 = vpop.f32.mrb[0].mxu0
        %1626 = vmatprep.mubr.bf16.mxu0 0
        %1627 = vmatmul.mubr.bf16.gmra.mrb[0].mxu0 %v1232
        %v1628 = vpop.f32.mrb[0].mxu0
        %v1629 = vadd.f32 %v1579, %v1628
        %v1630 = vpop.f32.mrb[0].mxu0
        %v1631 = vpop.f32.mrb[0].mxu0
        %v1632 = vpop.f32.mrb[0].mxu0
        %1633 = vdwg.mxu0
        %v1634 = vmul.f32 %v1368, %v1621
        %v1635 = vmul.f32 %v1370, %v1624
        %v1636 = vmul.f32 %v1372, %v1629
        %v1637 = vadd.f32 %v1563, %v1634
        %v1638 = vadd.f32 %v1566, %v1635
        %v1639 = vadd.f32 %v1571, %v1636
        %v1640 = vtanh.pop %v1637
        %v1641 = vtanh.pop %v1638
        %v1642 = vtanh.pop %v1639
        %v1643 = vsub.f32 1.0, %v1507
        %v1644 = vsub.f32 1.0, %v1509
        %v1645 = vsub.f32 1.0, %v1511
        %v1646 = vmul.f32 %v1643, %v1640
        %v1647 = vmul.f32 %v1644, %v1641
        %v1648 = vmul.f32 %v1645, %v1642
        %v1649 = vmul.f32 %v1507, 0.0
        %v1650 = vmul.f32 %v1509, 0.0
        %v1651 = vmul.f32 %v1511, 0.0
        %v1652 = vadd.f32 %v1646, %v1649
        %v1653 = vadd.f32 %v1647, %v1650
        %v1654 = vadd.f32 %v1648, %v1651
        %v1655 = vld [vmem:[%s492] sm:$0xff]
        %v1656 = vld [vmem:[%s492 + $0x8] sm:$0xff]
        %v1657 = vld [vmem:[%s492 + $0x10] sm:$0xff]
        %v1658 = vmul.f32 %v1652, %v1655
        %v1659 = vmul.f32 %v1653, %v1656
        %v1660 = vmul.f32 %v1654, %v1657
        %v1661 = vadd.f32 %v1658, %v1659
        %v1662 = vadd.f32 %v1661, %v1660
        %1663 = vst.msk [vmem:[%s533] sm:$0xff] %vm610, %v1662
        %1664 = vmatprep.subr.bf16.mxu0 0
        %1665 = vmatpush1.bf16.msra.mxu0 %v981
        %1666 = vmatprep.subr.bf16.mxu0 0
        %1667 = vmatpush1.bf16.msra.mxu0 %v982
        %1668 = vmatprep.subr.bf16.mxu0 0
        %1669 = vmatpush1.bf16.msra.mxu0 0
        %1670 = vmatprep.subr.bf16.mxu0 0
        %1671 = vmatpush1.bf16.msra.mxu0 0
        %1672 = vmatprep.subr.bf16.mxu0 0
        %1673 = vmatpush1.bf16.msra.mxu0 0
        %1674 = vmatprep.subr.bf16.mxu0 0
        %1675 = vmatpush1.bf16.msra.mxu0 0
        %1676 = vmatprep.subr.bf16.mxu0 0
        %1677 = vmatpush1.bf16.msra.mxu0 0
        %1678 = vmatprep.subr.bf16.mxu0 0
        %1679 = vmatpush1.bf16.msra.mxu0 0
        %1680 = vmatprep.subr.bf16.mxu0 0
        %1681 = vmatpush1.bf16.msra.mxu0 0
        %1682 = vmatprep.subr.bf16.mxu0 0
        %1683 = vmatpush1.bf16.msra.mxu0 0
        %1684 = vmatprep.subr.bf16.mxu0 0
        %1685 = vmatpush1.bf16.msra.mxu0 0
        %1686 = vmatprep.subr.bf16.mxu0 0
        %1687 = vmatpush1.bf16.msra.mxu0 0
        %1688 = vmatprep.subr.bf16.mxu0 0
        %1689 = vmatpush1.bf16.msra.mxu0 0
        %1690 = vmatprep.subr.bf16.mxu0 0
        %1691 = vmatpush1.bf16.msra.mxu0 0
        %1692 = vmatprep.subr.bf16.mxu0 0
        %1693 = vmatpush1.bf16.msra.mxu0 0
        %1694 = vmatprep.subr.bf16.mxu0 0
        %1695 = vmatpush1.bf16.msra.mxu0 0
        %1696 = vmatprep.mubr.bf16.mxu0 0
        %1697 = vmatmul.mubr.bf16.gmra.mrb[0].mxu0 %v1295
        %v1698 = vpop.f32.mrb[0].mxu0
        %v1699 = vadd.f32 0.0, %v1698
        %v1700 = vpop.f32.mrb[0].mxu0
        %v1701 = vpop.f32.mrb[0].mxu0
        %v1702 = vadd.f32 0.0, %v1701
        %v1703 = vpop.f32.mrb[0].mxu0
        %1704 = vmatprep.mubr.bf16.mxu0 0
        %1705 = vmatmul.mubr.bf16.gmra.mrb[0].mxu0 %v1298
        %v1706 = vpop.f32.mrb[0].mxu0
        %v1707 = vadd.f32 0.0, %v1706
        %v1708 = vpop.f32.mrb[0].mxu0
        %v1709 = vpop.f32.mrb[0].mxu0
        %v1710 = vpop.f32.mrb[0].mxu0
        %1711 = vdwg.mxu0
        %1712 = vmatprep.subr.bf16.mxu0 0
        %1713 = vmatpush1.bf16.msra.mxu0 %v1045
        %1714 = vmatprep.subr.bf16.mxu0 0
        %1715 = vmatpush1.bf16.msra.mxu0 %v1046
        %1716 = vmatprep.subr.bf16.mxu0 0
        %1717 = vmatpush1.bf16.msra.mxu0 0
        %1718 = vmatprep.subr.bf16.mxu0 0
        %1719 = vmatpush1.bf16.msra.mxu0 0
        %1720 = vmatprep.subr.bf16.mxu0 0
        %1721 = vmatpush1.bf16.msra.mxu0 0
        %1722 = vmatprep.subr.bf16.mxu0 0
        %1723 = vmatpush1.bf16.msra.mxu0 0
        %1724 = vmatprep.subr.bf16.mxu0 0
        %1725 = vmatpush1.bf16.msra.mxu0 0
        %1726 = vmatprep.subr.bf16.mxu0 0
        %1727 = vmatpush1.bf16.msra.mxu0 0
        %1728 = vmatprep.subr.bf16.mxu0 0
        %1729 = vmatpush1.bf16.msra.mxu0 0
        %1730 = vmatprep.subr.bf16.mxu0 0
        %1731 = vmatpush1.bf16.msra.mxu0 0
        %1732 = vmatprep.subr.bf16.mxu0 0
        %1733 = vmatpush1.bf16.msra.mxu0 0
        %1734 = vmatprep.subr.bf16.mxu0 0
        %1735 = vmatpush1.bf16.msra.mxu0 0
        %1736 = vmatprep.subr.bf16.mxu0 0
        %1737 = vmatpush1.bf16.msra.mxu0 0
        %1738 = vmatprep.subr.bf16.mxu0 0
        %1739 = vmatpush1.bf16.msra.mxu0 0
        %1740 = vmatprep.subr.bf16.mxu0 0
        %1741 = vmatpush1.bf16.msra.mxu0 0
        %1742 = vmatprep.subr.bf16.mxu0 0
        %1743 = vmatpush1.bf16.msra.mxu0 0
        %1744 = vmatprep.mubr.bf16.mxu0 0
        %1745 = vmatmul.mubr.bf16.gmra.mrb[0].mxu0 %v1295
        %v1746 = vpop.f32.mrb[0].mxu0
        %v1747 = vadd.f32 0.0, %v1746
        %v1748 = vpop.f32.mrb[0].mxu0
        %v1749 = vpop.f32.mrb[0].mxu0
        %v1750 = vadd.f32 0.0, %v1749
        %v1751 = vpop.f32.mrb[0].mxu0
        %1752 = vmatprep.mubr.bf16.mxu0 0
        %1753 = vmatmul.mubr.bf16.gmra.mrb[0].mxu0 %v1298
        %v1754 = vpop.f32.mrb[0].mxu0
        %v1755 = vadd.f32 0.0, %v1754
        %v1756 = vpop.f32.mrb[0].mxu0
        %v1757 = vpop.f32.mrb[0].mxu0
        %v1758 = vpop.f32.mrb[0].mxu0
        %1759 = vdwg.mxu0
        %v1760 = vadd.f32 %v684, %v1699
        %v1761 = vadd.f32 %v689, %v1702
        %v1762 = vadd.f32 %v692, %v1707
        %v1763 = vxor.u32 %v1760, 2147483648
        %v1764 = vxor.u32 %v1761, 2147483648
        %v1765 = vxor.u32 %v1762, 2147483648
        %v1766 = vmul.f32 %v1763, 1.442695
        %v1767 = vpow.pop %v1766
        %v1768 = vmul.f32 %v1764, 1.442695
        %v1769 = vpow.pop %v1768
        %v1770 = vmul.f32 %v1765, 1.442695
        %v1771 = vpow.pop %v1770
        %v1772 = vadd.f32 %v1767, 1.0
        %v1773 = vadd.f32 %v1769, 1.0
        %v1774 = vadd.f32 %v1771, 1.0
        %v1775 = vrcp.pop %v1772
        %v1776 = vmul.f32 1.0, %v1775
        %v1777 = vrcp.pop %v1773
        %v1778 = vmul.f32 1.0, %v1777
        %v1779 = vrcp.pop %v1774
        %v1780 = vmul.f32 1.0, %v1779
        %v1781 = vadd.f32 %v799, %v1747
        %v1782 = vadd.f32 %v804, %v1750
        %v1783 = vadd.f32 %v807, %v1755
        %v1784 = vxor.u32 %v1781, 2147483648
        %v1785 = vxor.u32 %v1782, 2147483648
        %v1786 = vxor.u32 %v1783, 2147483648
        %v1787 = vmul.f32 %v1784, 1.442695
        %v1788 = vpow.pop %v1787
        %v1789 = vmul.f32 %v1785, 1.442695
        %v1790 = vpow.pop %v1789
        %v1791 = vmul.f32 %v1786, 1.442695
        %v1792 = vpow.pop %v1791
        %v1793 = vadd.f32 %v1788, 1.0
        %v1794 = vadd.f32 %v1790, 1.0
        %v1795 = vadd.f32 %v1792, 1.0
        %v1796 = vrcp.pop %v1793
        %v1797 = vmul.f32 1.0, %v1796
        %v1798 = vrcp.pop %v1794
        %v1799 = vmul.f32 1.0, %v1798
        %v1800 = vrcp.pop %v1795
        %v1801 = vmul.f32 1.0, %v1800
        %1802 = vmatprep.subr.bf16.mxu0 0
        %1803 = vmatpush1.bf16.msra.mxu0 %v1151
        %1804 = vmatprep.subr.bf16.mxu0 0
        %1805 = vmatpush1.bf16.msra.mxu0 %v1152
        %1806 = vmatprep.subr.bf16.mxu0 0
        %1807 = vmatpush1.bf16.msra.mxu0 0
        %1808 = vmatprep.subr.bf16.mxu0 0
        %1809 = vmatpush1.bf16.msra.mxu0 0
        %1810 = vmatprep.subr.bf16.mxu0 0
        %1811 = vmatpush1.bf16.msra.mxu0 0
        %1812 = vmatprep.subr.bf16.mxu0 0
        %1813 = vmatpush1.bf16.msra.mxu0 0
        %1814 = vmatprep.subr.bf16.mxu0 0
        %1815 = vmatpush1.bf16.msra.mxu0 0
        %1816 = vmatprep.subr.bf16.mxu0 0
        %1817 = vmatpush1.bf16.msra.mxu0 0
        %1818 = vmatprep.subr.bf16.mxu0 0
        %1819 = vmatpush1.bf16.msra.mxu0 0
        %1820 = vmatprep.subr.bf16.mxu0 0
        %1821 = vmatpush1.bf16.msra.mxu0 0
        %1822 = vmatprep.subr.bf16.mxu0 0
        %1823 = vmatpush1.bf16.msra.mxu0 0
        %1824 = vmatprep.subr.bf16.mxu0 0
        %1825 = vmatpush1.bf16.msra.mxu0 0
        %1826 = vmatprep.subr.bf16.mxu0 0
        %1827 = vmatpush1.bf16.msra.mxu0 0
        %1828 = vmatprep.subr.bf16.mxu0 0
        %1829 = vmatpush1.bf16.msra.mxu0 0
        %1830 = vmatprep.subr.bf16.mxu0 0
        %1831 = vmatpush1.bf16.msra.mxu0 0
        %1832 = vmatprep.subr.bf16.mxu0 0
        %1833 = vmatpush1.bf16.msra.mxu0 0
        %1834 = vmatprep.mubr.bf16.mxu0 0
        %1835 = vmatmul.mubr.bf16.gmra.mrb[0].mxu0 %v1295
        %v1836 = vpop.f32.mrb[0].mxu0
        %v1837 = vadd.f32 %v1142, %v1836
        %v1838 = vpop.f32.mrb[0].mxu0
        %v1839 = vpop.f32.mrb[0].mxu0
        %v1840 = vadd.f32 %v1142, %v1839
        %v1841 = vpop.f32.mrb[0].mxu0
        %1842 = vmatprep.mubr.bf16.mxu0 0
        %1843 = vmatmul.mubr.bf16.gmra.mrb[0].mxu0 %v1298
        %v1844 = vpop.f32.mrb[0].mxu0
        %v1845 = vadd.f32 %v1142, %v1844
        %v1846 = vpop.f32.mrb[0].mxu0
        %v1847 = vpop.f32.mrb[0].mxu0
        %v1848 = vpop.f32.mrb[0].mxu0
        %1849 = vdwg.mxu0
        %v1850 = vmul.f32 %v1776, %v1837
        %v1851 = vmul.f32 %v1778, %v1840
        %v1852 = vmul.f32 %v1780, %v1845
        %v1853 = vadd.f32 %v914, %v1850
        %v1854 = vadd.f32 %v919, %v1851
        %v1855 = vadd.f32 %v922, %v1852
        %v1856 = vtanh.pop %v1853
        %v1857 = vtanh.pop %v1854
        %v1858 = vtanh.pop %v1855
        %v1859 = vsub.f32 1.0, %v1797
        %v1860 = vsub.f32 1.0, %v1799
        %v1861 = vsub.f32 1.0, %v1801
        %v1862 = vmul.f32 %v1859, %v1856
        %v1863 = vmul.f32 %v1860, %v1857
        %v1864 = vmul.f32 %v1861, %v1858
        %v1865 = vmul.f32 %v1797, %v1221
        %v1866 = vmul.f32 %v1799, %v1222
        %v1867 = vmul.f32 %v1801, %v1223
        %v1868 = vadd.f32 %v1862, %v1865
        %v1869 = vadd.f32 %v1863, %v1866
        %v1870 = vadd.f32 %v1864, %v1867
        %v1871 = vpack.c.bf16 %v1869, %v1868
        %v1872 = vpack.c.bf16 %v1870, %v1870
        %v1873 = vpack.c.bf16 %v1653, %v1652
        %v1874 = vpack.c.bf16 %v1654, %v1654
        %v1876 = vsel %vm610, %v1873, 0
        %v1879 = vsel %vm610, %v1874, 0
        %1881 = vmatprep.subr.bf16.mxu0 0
        %1882 = vmatpush1.bf16.msra.mxu0 %v1230
        %1883 = vmatprep.subr.bf16.mxu0 0
        %1884 = vmatpush1.bf16.msra.mxu0 0
        %1885 = vmatprep.subr.bf16.mxu0 0
        %1886 = vmatpush1.bf16.msra.mxu0 0
        %1887 = vmatprep.subr.bf16.mxu0 0
        %1888 = vmatpush1.bf16.msra.mxu0 0
        %1889 = vmatprep.subr.bf16.mxu0 0
        %1890 = vmatpush1.bf16.msra.mxu0 0
        %1891 = vmatprep.subr.bf16.mxu0 0
        %1892 = vmatpush1.bf16.msra.mxu0 0
        %1893 = vmatprep.subr.bf16.mxu0 0
        %1894 = vmatpush1.bf16.msra.mxu0 0
        %1895 = vmatprep.subr.bf16.mxu0 0
        %1896 = vmatpush1.bf16.msra.mxu0 0
        %1897 = vmatprep.subr.bf16.mxu0 0
        %1898 = vmatpush1.bf16.msra.mxu0 0
        %1899 = vmatprep.subr.bf16.mxu0 0
        %1900 = vmatpush1.bf16.msra.mxu0 0
        %1901 = vmatprep.subr.bf16.mxu0 0
        %1902 = vmatpush1.bf16.msra.mxu0 0
        %1903 = vmatprep.subr.bf16.mxu0 0
        %1904 = vmatpush1.bf16.msra.mxu0 0
        %1905 = vmatprep.subr.bf16.mxu0 0
        %1906 = vmatpush1.bf16.msra.mxu0 0
        %1907 = vmatprep.subr.bf16.mxu0 0
        %1908 = vmatpush1.bf16.msra.mxu0 0
        %1909 = vmatprep.subr.bf16.mxu0 0
        %1910 = vmatpush1.bf16.msra.mxu0 0
        %1911 = vmatprep.subr.bf16.mxu0 0
        %1912 = vmatpush1.bf16.msra.mxu0 0
        %1913 = vmatprep.mubr.bf16.mxu0 0
        %1914 = vmatmul.mubr.bf16.gmra.mrb[0].mxu0 %v1876
        %v1915 = vpop.f32.mrb[0].mxu0
        %v1916 = vadd.f32 0.0, %v1915
        %v1917 = vpop.f32.mrb[0].mxu0
        %v1918 = vpop.f32.mrb[0].mxu0
        %v1919 = vadd.f32 0.0, %v1918
        %v1920 = vpop.f32.mrb[0].mxu0
        %1921 = vmatprep.mubr.bf16.mxu0 0
        %1922 = vmatmul.mubr.bf16.gmra.mrb[0].mxu0 %v1879
        %v1923 = vpop.f32.mrb[0].mxu0
        %v1924 = vadd.f32 0.0, %v1923
        %v1925 = vpop.f32.mrb[0].mxu0
        %v1926 = vpop.f32.mrb[0].mxu0
        %v1927 = vpop.f32.mrb[0].mxu0
        %1928 = vdwg.mxu0
        %v1930 = vsel %vm985, %v1871, 0
        %v1933 = vsel %vm985, %v1872, 0
        %1935 = vmatprep.subr.bf16.mxu0 0
        %1936 = vmatpush1.bf16.msra.mxu0 %v1290
        %1937 = vmatprep.subr.bf16.mxu0 0
        %1938 = vmatpush1.bf16.msra.mxu0 %v1291
        %1939 = vmatprep.subr.bf16.mxu0 0
        %1940 = vmatpush1.bf16.msra.mxu0 0
        %1941 = vmatprep.subr.bf16.mxu0 0
        %1942 = vmatpush1.bf16.msra.mxu0 0
        %1943 = vmatprep.subr.bf16.mxu0 0
        %1944 = vmatpush1.bf16.msra.mxu0 0
        %1945 = vmatprep.subr.bf16.mxu0 0
        %1946 = vmatpush1.bf16.msra.mxu0 0
        %1947 = vmatprep.subr.bf16.mxu0 0
        %1948 = vmatpush1.bf16.msra.mxu0 0
        %1949 = vmatprep.subr.bf16.mxu0 0
        %1950 = vmatpush1.bf16.msra.mxu0 0
        %1951 = vmatprep.subr.bf16.mxu0 0
        %1952 = vmatpush1.bf16.msra.mxu0 0
        %1953 = vmatprep.subr.bf16.mxu0 0
        %1954 = vmatpush1.bf16.msra.mxu0 0
        %1955 = vmatprep.subr.bf16.mxu0 0
        %1956 = vmatpush1.bf16.msra.mxu0 0
        %1957 = vmatprep.subr.bf16.mxu0 0
        %1958 = vmatpush1.bf16.msra.mxu0 0
        %1959 = vmatprep.subr.bf16.mxu0 0
        %1960 = vmatpush1.bf16.msra.mxu0 0
        %1961 = vmatprep.subr.bf16.mxu0 0
        %1962 = vmatpush1.bf16.msra.mxu0 0
        %1963 = vmatprep.subr.bf16.mxu0 0
        %1964 = vmatpush1.bf16.msra.mxu0 0
        %1965 = vmatprep.subr.bf16.mxu0 0
        %1966 = vmatpush1.bf16.msra.mxu0 0
        %1967 = vmatprep.mubr.bf16.mxu0 0
        %1968 = vmatmul.mubr.bf16.gmra.mrb[0].mxu0 %v1930
        %v1969 = vpop.f32.mrb[0].mxu0
        %v1970 = vadd.f32 %v1916, %v1969
        %v1971 = vpop.f32.mrb[0].mxu0
        %v1972 = vpop.f32.mrb[0].mxu0
        %v1973 = vadd.f32 %v1919, %v1972
        %v1974 = vpop.f32.mrb[0].mxu0
        %1975 = vmatprep.mubr.bf16.mxu0 0
        %1976 = vmatmul.mubr.bf16.gmra.mrb[0].mxu0 %v1933
        %v1977 = vpop.f32.mrb[0].mxu0
        %v1978 = vadd.f32 %v1924, %v1977
        %v1979 = vpop.f32.mrb[0].mxu0
        %v1980 = vpop.f32.mrb[0].mxu0
        %v1981 = vpop.f32.mrb[0].mxu0
        %1982 = vdwg.mxu0
        %v1983 = vadd.f32 %v1970, %v1351
        %v1984 = vadd.f32 %v1973, %v1351
        %v1985 = vadd.f32 %v1978, %v1351
        %v1986 = vxor.u32 %v1983, 2147483648
        %v1987 = vxor.u32 %v1984, 2147483648
        %v1988 = vxor.u32 %v1985, 2147483648
        %v1989 = vmul.f32 %v1986, 1.442695
        %v1990 = vpow.pop %v1989
        %v1991 = vmul.f32 %v1987, 1.442695
        %v1992 = vpow.pop %v1991
        %v1993 = vmul.f32 %v1988, 1.442695
        %v1994 = vpow.pop %v1993
        %v1995 = vadd.f32 %v1990, 1.0
        %v1996 = vadd.f32 %v1992, 1.0
        %v1997 = vadd.f32 %v1994, 1.0
        %v1998 = vrcp.pop %v1995
        %v1999 = vmul.f32 1.0, %v1998
        %v2000 = vrcp.pop %v1996
        %v2001 = vmul.f32 1.0, %v2000
        %v2002 = vrcp.pop %v1997
        %v2003 = vmul.f32 1.0, %v2002
        %2004 = vmatprep.subr.bf16.mxu0 0
        %2005 = vmatpush1.bf16.msra.mxu0 %v1377
        %2006 = vmatprep.subr.bf16.mxu0 0
        %2007 = vmatpush1.bf16.msra.mxu0 0
        %2008 = vmatprep.subr.bf16.mxu0 0
        %2009 = vmatpush1.bf16.msra.mxu0 0
        %2010 = vmatprep.subr.bf16.mxu0 0
        %2011 = vmatpush1.bf16.msra.mxu0 0
        %2012 = vmatprep.subr.bf16.mxu0 0
        %2013 = vmatpush1.bf16.msra.mxu0 0
        %2014 = vmatprep.subr.bf16.mxu0 0
        %2015 = vmatpush1.bf16.msra.mxu0 0
        %2016 = vmatprep.subr.bf16.mxu0 0
        %2017 = vmatpush1.bf16.msra.mxu0 0
        %2018 = vmatprep.subr.bf16.mxu0 0
        %2019 = vmatpush1.bf16.msra.mxu0 0
        %2020 = vmatprep.subr.bf16.mxu0 0
        %2021 = vmatpush1.bf16.msra.mxu0 0
        %2022 = vmatprep.subr.bf16.mxu0 0
        %2023 = vmatpush1.bf16.msra.mxu0 0
        %2024 = vmatprep.subr.bf16.mxu0 0
        %2025 = vmatpush1.bf16.msra.mxu0 0
        %2026 = vmatprep.subr.bf16.mxu0 0
        %2027 = vmatpush1.bf16.msra.mxu0 0
        %2028 = vmatprep.subr.bf16.mxu0 0
        %2029 = vmatpush1.bf16.msra.mxu0 0
        %2030 = vmatprep.subr.bf16.mxu0 0
        %2031 = vmatpush1.bf16.msra.mxu0 0
        %2032 = vmatprep.subr.bf16.mxu0 0
        %2033 = vmatpush1.bf16.msra.mxu0 0
        %2034 = vmatprep.subr.bf16.mxu0 0
        %2035 = vmatpush1.bf16.msra.mxu0 0
        %2036 = vmatprep.mubr.bf16.mxu0 0
        %2037 = vmatmul.mubr.bf16.gmra.mrb[0].mxu0 %v1876
        %v2038 = vpop.f32.mrb[0].mxu0
        %v2039 = vadd.f32 0.0, %v2038
        %v2040 = vpop.f32.mrb[0].mxu0
        %v2041 = vpop.f32.mrb[0].mxu0
        %v2042 = vadd.f32 0.0, %v2041
        %v2043 = vpop.f32.mrb[0].mxu0
        %2044 = vmatprep.mubr.bf16.mxu0 0
        %2045 = vmatmul.mubr.bf16.gmra.mrb[0].mxu0 %v1879
        %v2046 = vpop.f32.mrb[0].mxu0
        %v2047 = vadd.f32 0.0, %v2046
        %v2048 = vpop.f32.mrb[0].mxu0
        %v2049 = vpop.f32.mrb[0].mxu0
        %v2050 = vpop.f32.mrb[0].mxu0
        %2051 = vdwg.mxu0
        %2052 = vmatprep.subr.bf16.mxu0 0
        %2053 = vmatpush1.bf16.msra.mxu0 %v1435
        %2054 = vmatprep.subr.bf16.mxu0 0
        %2055 = vmatpush1.bf16.msra.mxu0 %v1436
        %2056 = vmatprep.subr.bf16.mxu0 0
        %2057 = vmatpush1.bf16.msra.mxu0 0
        %2058 = vmatprep.subr.bf16.mxu0 0
        %2059 = vmatpush1.bf16.msra.mxu0 0
        %2060 = vmatprep.subr.bf16.mxu0 0
        %2061 = vmatpush1.bf16.msra.mxu0 0
        %2062 = vmatprep.subr.bf16.mxu0 0
        %2063 = vmatpush1.bf16.msra.mxu0 0
        %2064 = vmatprep.subr.bf16.mxu0 0
        %2065 = vmatpush1.bf16.msra.mxu0 0
        %2066 = vmatprep.subr.bf16.mxu0 0
        %2067 = vmatpush1.bf16.msra.mxu0 0
        %2068 = vmatprep.subr.bf16.mxu0 0
        %2069 = vmatpush1.bf16.msra.mxu0 0
        %2070 = vmatprep.subr.bf16.mxu0 0
        %2071 = vmatpush1.bf16.msra.mxu0 0
        %2072 = vmatprep.subr.bf16.mxu0 0
        %2073 = vmatpush1.bf16.msra.mxu0 0
        %2074 = vmatprep.subr.bf16.mxu0 0
        %2075 = vmatpush1.bf16.msra.mxu0 0
        %2076 = vmatprep.subr.bf16.mxu0 0
        %2077 = vmatpush1.bf16.msra.mxu0 0
        %2078 = vmatprep.subr.bf16.mxu0 0
        %2079 = vmatpush1.bf16.msra.mxu0 0
        %2080 = vmatprep.subr.bf16.mxu0 0
        %2081 = vmatpush1.bf16.msra.mxu0 0
        %2082 = vmatprep.subr.bf16.mxu0 0
        %2083 = vmatpush1.bf16.msra.mxu0 0
        %2084 = vmatprep.mubr.bf16.mxu0 0
        %2085 = vmatmul.mubr.bf16.gmra.mrb[0].mxu0 %v1930
        %v2086 = vpop.f32.mrb[0].mxu0
        %v2087 = vadd.f32 %v2039, %v2086
        %v2088 = vpop.f32.mrb[0].mxu0
        %v2089 = vpop.f32.mrb[0].mxu0
        %v2090 = vadd.f32 %v2042, %v2089
        %v2091 = vpop.f32.mrb[0].mxu0
        %2092 = vmatprep.mubr.bf16.mxu0 0
        %2093 = vmatmul.mubr.bf16.gmra.mrb[0].mxu0 %v1933
        %v2094 = vpop.f32.mrb[0].mxu0
        %v2095 = vadd.f32 %v2047, %v2094
        %v2096 = vpop.f32.mrb[0].mxu0
        %v2097 = vpop.f32.mrb[0].mxu0
        %v2098 = vpop.f32.mrb[0].mxu0
        %2099 = vdwg.mxu0
        %v2100 = vadd.f32 %v2087, %v1490
        %v2101 = vadd.f32 %v2090, %v1490
        %v2102 = vadd.f32 %v2095, %v1490
        %v2103 = vxor.u32 %v2100, 2147483648
        %v2104 = vxor.u32 %v2101, 2147483648
        %v2105 = vxor.u32 %v2102, 2147483648
        %v2106 = vmul.f32 %v2103, 1.442695
        %v2107 = vpow.pop %v2106
        %v2108 = vmul.f32 %v2104, 1.442695
        %v2109 = vpow.pop %v2108
        %v2110 = vmul.f32 %v2105, 1.442695
        %v2111 = vpow.pop %v2110
        %v2112 = vadd.f32 %v2107, 1.0
        %v2113 = vadd.f32 %v2109, 1.0
        %v2114 = vadd.f32 %v2111, 1.0
        %v2115 = vrcp.pop %v2112
        %v2116 = vmul.f32 1.0, %v2115
        %v2117 = vrcp.pop %v2113
        %v2118 = vmul.f32 1.0, %v2117
        %v2119 = vrcp.pop %v2114
        %v2120 = vmul.f32 1.0, %v2119
        %2121 = vmatprep.subr.bf16.mxu0 0
        %2122 = vmatpush1.bf16.msra.mxu0 %v1524
        %2123 = vmatprep.subr.bf16.mxu0 0
        %2124 = vmatpush1.bf16.msra.mxu0 %v1525
        %2125 = vmatprep.subr.bf16.mxu0 0
        %2126 = vmatpush1.bf16.msra.mxu0 0
        %2127 = vmatprep.subr.bf16.mxu0 0
        %2128 = vmatpush1.bf16.msra.mxu0 0
        %2129 = vmatprep.subr.bf16.mxu0 0
        %2130 = vmatpush1.bf16.msra.mxu0 0
        %2131 = vmatprep.subr.bf16.mxu0 0
        %2132 = vmatpush1.bf16.msra.mxu0 0
        %2133 = vmatprep.subr.bf16.mxu0 0
        %2134 = vmatpush1.bf16.msra.mxu0 0
        %2135 = vmatprep.subr.bf16.mxu0 0
        %2136 = vmatpush1.bf16.msra.mxu0 0
        %2137 = vmatprep.subr.bf16.mxu0 0
        %2138 = vmatpush1.bf16.msra.mxu0 0
        %2139 = vmatprep.subr.bf16.mxu0 0
        %2140 = vmatpush1.bf16.msra.mxu0 0
        %2141 = vmatprep.subr.bf16.mxu0 0
        %2142 = vmatpush1.bf16.msra.mxu0 0
        %2143 = vmatprep.subr.bf16.mxu0 0
        %2144 = vmatpush1.bf16.msra.mxu0 0
        %2145 = vmatprep.subr.bf16.mxu0 0
        %2146 = vmatpush1.bf16.msra.mxu0 0
        %2147 = vmatprep.subr.bf16.mxu0 0
        %2148 = vmatpush1.bf16.msra.mxu0 0
        %2149 = vmatprep.subr.bf16.mxu0 0
        %2150 = vmatpush1.bf16.msra.mxu0 0
        %2151 = vmatprep.subr.bf16.mxu0 0
        %2152 = vmatpush1.bf16.msra.mxu0 0
        %2153 = vmatprep.mubr.bf16.mxu0 0
        %2154 = vmatmul.mubr.bf16.gmra.mrb[0].mxu0 %v1930
        %v2155 = vpop.f32.mrb[0].mxu0
        %v2156 = vadd.f32 %v1515, %v2155
        %v2157 = vpop.f32.mrb[0].mxu0
        %v2158 = vpop.f32.mrb[0].mxu0
        %v2159 = vadd.f32 %v1515, %v2158
        %v2160 = vpop.f32.mrb[0].mxu0
        %2161 = vmatprep.mubr.bf16.mxu0 0
        %2162 = vmatmul.mubr.bf16.gmra.mrb[0].mxu0 %v1933
        %v2163 = vpop.f32.mrb[0].mxu0
        %v2164 = vadd.f32 %v1515, %v2163
        %v2165 = vpop.f32.mrb[0].mxu0
        %v2166 = vpop.f32.mrb[0].mxu0
        %v2167 = vpop.f32.mrb[0].mxu0
        %2168 = vdwg.mxu0
        %2169 = vmatprep.subr.bf16.mxu0 0
        %2170 = vmatpush1.bf16.msra.mxu0 %v1584
        %2171 = vmatprep.subr.bf16.mxu0 0
        %2172 = vmatpush1.bf16.msra.mxu0 0
        %2173 = vmatprep.subr.bf16.mxu0 0
        %2174 = vmatpush1.bf16.msra.mxu0 0
        %2175 = vmatprep.subr.bf16.mxu0 0
        %2176 = vmatpush1.bf16.msra.mxu0 0
        %2177 = vmatprep.subr.bf16.mxu0 0
        %2178 = vmatpush1.bf16.msra.mxu0 0
        %2179 = vmatprep.subr.bf16.mxu0 0
        %2180 = vmatpush1.bf16.msra.mxu0 0
        %2181 = vmatprep.subr.bf16.mxu0 0
        %2182 = vmatpush1.bf16.msra.mxu0 0
        %2183 = vmatprep.subr.bf16.mxu0 0
        %2184 = vmatpush1.bf16.msra.mxu0 0
        %2185 = vmatprep.subr.bf16.mxu0 0
        %2186 = vmatpush1.bf16.msra.mxu0 0
        %2187 = vmatprep.subr.bf16.mxu0 0
        %2188 = vmatpush1.bf16.msra.mxu0 0
        %2189 = vmatprep.subr.bf16.mxu0 0
        %2190 = vmatpush1.bf16.msra.mxu0 0
        %2191 = vmatprep.subr.bf16.mxu0 0
        %2192 = vmatpush1.bf16.msra.mxu0 0
        %2193 = vmatprep.subr.bf16.mxu0 0
        %2194 = vmatpush1.bf16.msra.mxu0 0
        %2195 = vmatprep.subr.bf16.mxu0 0
        %2196 = vmatpush1.bf16.msra.mxu0 0
        %2197 = vmatprep.subr.bf16.mxu0 0
        %2198 = vmatpush1.bf16.msra.mxu0 0
        %2199 = vmatprep.subr.bf16.mxu0 0
        %2200 = vmatpush1.bf16.msra.mxu0 0
        %2201 = vmatprep.mubr.bf16.mxu0 0
        %2202 = vmatmul.mubr.bf16.gmra.mrb[0].mxu0 %v1876
        %v2203 = vpop.f32.mrb[0].mxu0
        %v2204 = vadd.f32 %v1579, %v2203
        %v2205 = vpop.f32.mrb[0].mxu0
        %v2206 = vpop.f32.mrb[0].mxu0
        %v2207 = vadd.f32 %v1579, %v2206
        %v2208 = vpop.f32.mrb[0].mxu0
        %2209 = vmatprep.mubr.bf16.mxu0 0
        %2210 = vmatmul.mubr.bf16.gmra.mrb[0].mxu0 %v1879
        %v2211 = vpop.f32.mrb[0].mxu0
        %v2212 = vadd.f32 %v1579, %v2211
        %v2213 = vpop.f32.mrb[0].mxu0
        %v2214 = vpop.f32.mrb[0].mxu0
        %v2215 = vpop.f32.mrb[0].mxu0
        %2216 = vdwg.mxu0
        %v2217 = vmul.f32 %v1999, %v2204
        %v2218 = vmul.f32 %v2001, %v2207
        %v2219 = vmul.f32 %v2003, %v2212
        %v2220 = vadd.f32 %v2156, %v2217
        %v2221 = vadd.f32 %v2159, %v2218
        %v2222 = vadd.f32 %v2164, %v2219
        %v2223 = vtanh.pop %v2220
        %v2224 = vtanh.pop %v2221
        %v2225 = vtanh.pop %v2222
        %v2226 = vsub.f32 1.0, %v2116
        %v2227 = vsub.f32 1.0, %v2118
        %v2228 = vsub.f32 1.0, %v2120
        %v2229 = vmul.f32 %v2226, %v2223
        %v2230 = vmul.f32 %v2227, %v2224
        %v2231 = vmul.f32 %v2228, %v2225
        %v2232 = vmul.f32 %v2116, %v1652
        %v2233 = vmul.f32 %v2118, %v1653
        %v2234 = vmul.f32 %v2120, %v1654
        %v2235 = vadd.f32 %v2229, %v2232
        %v2236 = vadd.f32 %v2230, %v2233
        %v2237 = vadd.f32 %v2231, %v2234
        %s2238 = scalar_lea.vmem %s492, 24 [#allocation3]
        %v2239 = vld [vmem:[%s2238] sm:$0xff]
        %v2240 = vld [vmem:[%s2238 + $0x8] sm:$0xff]
        %v2241 = vld [vmem:[%s2238 + $0x10] sm:$0xff]
        %v2242 = vmul.f32 %v2235, %v2239
        %v2243 = vmul.f32 %v2236, %v2240
        %v2244 = vmul.f32 %v2237, %v2241
        %v2245 = vadd.f32 %v2242, %v2243
        %v2246 = vadd.f32 %v2245, %v2244
        %s2247 = scalar_lea.vmem %s533, 8
        %2248 = vst.msk [vmem:[%s2247] sm:$0xff] %vm610, %v2246
        %2249 = vmatprep.subr.bf16.mxu0 0
        %2250 = vmatpush1.bf16.msra.mxu0 %v981
        %2251 = vmatprep.subr.bf16.mxu0 0
        %2252 = vmatpush1.bf16.msra.mxu0 %v982
        %2253 = vmatprep.subr.bf16.mxu0 0
        %2254 = vmatpush1.bf16.msra.mxu0 0
        %2255 = vmatprep.subr.bf16.mxu0 0
        %2256 = vmatpush1.bf16.msra.mxu0 0
        %2257 = vmatprep.subr.bf16.mxu0 0
        %2258 = vmatpush1.bf16.msra.mxu0 0
        %2259 = vmatprep.subr.bf16.mxu0 0
        %2260 = vmatpush1.bf16.msra.mxu0 0
        %2261 = vmatprep.subr.bf16.mxu0 0
        %2262 = vmatpush1.bf16.msra.mxu0 0
        %2263 = vmatprep.subr.bf16.mxu0 0
        %2264 = vmatpush1.bf16.msra.mxu0 0
        %2265 = vmatprep.subr.bf16.mxu0 0
        %2266 = vmatpush1.bf16.msra.mxu0 0
        %2267 = vmatprep.subr.bf16.mxu0 0
        %2268 = vmatpush1.bf16.msra.mxu0 0
        %2269 = vmatprep.subr.bf16.mxu0 0
        %2270 = vmatpush1.bf16.msra.mxu0 0
        %2271 = vmatprep.subr.bf16.mxu0 0
        %2272 = vmatpush1.bf16.msra.mxu0 0
        %2273 = vmatprep.subr.bf16.mxu0 0
        %2274 = vmatpush1.bf16.msra.mxu0 0
        %2275 = vmatprep.subr.bf16.mxu0 0
        %2276 = vmatpush1.bf16.msra.mxu0 0
        %2277 = vmatprep.subr.bf16.mxu0 0
        %2278 = vmatpush1.bf16.msra.mxu0 0
        %2279 = vmatprep.subr.bf16.mxu0 0
        %2280 = vmatpush1.bf16.msra.mxu0 0
        %2281 = vmatprep.mubr.bf16.mxu0 0
        %2282 = vmatmul.mubr.bf16.gmra.mrb[0].mxu0 %v1930
        %v2283 = vpop.f32.mrb[0].mxu0
        %v2284 = vadd.f32 0.0, %v2283
        %v2285 = vpop.f32.mrb[0].mxu0
        %v2286 = vpop.f32.mrb[0].mxu0
        %v2287 = vadd.f32 0.0, %v2286
        %v2288 = vpop.f32.mrb[0].mxu0
        %2289 = vmatprep.mubr.bf16.mxu0 0
        %2290 = vmatmul.mubr.bf16.gmra.mrb[0].mxu0 %v1933
        %v2291 = vpop.f32.mrb[0].mxu0
        %v2292 = vadd.f32 0.0, %v2291
        %v2293 = vpop.f32.mrb[0].mxu0
        %v2294 = vpop.f32.mrb[0].mxu0
        %v2295 = vpop.f32.mrb[0].mxu0
        %2296 = vdwg.mxu0
        %2297 = vmatprep.subr.bf16.mxu0 0
        %2298 = vmatpush1.bf16.msra.mxu0 %v1045
        %2299 = vmatprep.subr.bf16.mxu0 0
        %2300 = vmatpush1.bf16.msra.mxu0 %v1046
        %2301 = vmatprep.subr.bf16.mxu0 0
        %2302 = vmatpush1.bf16.msra.mxu0 0
        %2303 = vmatprep.subr.bf16.mxu0 0
        %2304 = vmatpush1.bf16.msra.mxu0 0
        %2305 = vmatprep.subr.bf16.mxu0 0
        %2306 = vmatpush1.bf16.msra.mxu0 0
        %2307 = vmatprep.subr.bf16.mxu0 0
        %2308 = vmatpush1.bf16.msra.mxu0 0
        %2309 = vmatprep.subr.bf16.mxu0 0
        %2310 = vmatpush1.bf16.msra.mxu0 0
        %2311 = vmatprep.subr.bf16.mxu0 0
        %2312 = vmatpush1.bf16.msra.mxu0 0
        %2313 = vmatprep.subr.bf16.mxu0 0
        %2314 = vmatpush1.bf16.msra.mxu0 0
        %2315 = vmatprep.subr.bf16.mxu0 0
        %2316 = vmatpush1.bf16.msra.mxu0 0
        %2317 = vmatprep.subr.bf16.mxu0 0
        %2318 = vmatpush1.bf16.msra.mxu0 0
        %2319 = vmatprep.subr.bf16.mxu0 0
        %2320 = vmatpush1.bf16.msra.mxu0 0
        %2321 = vmatprep.subr.bf16.mxu0 0
        %2322 = vmatpush1.bf16.msra.mxu0 0
        %2323 = vmatprep.subr.bf16.mxu0 0
        %2324 = vmatpush1.bf16.msra.mxu0 0
        %2325 = vmatprep.subr.bf16.mxu0 0
        %2326 = vmatpush1.bf16.msra.mxu0 0
        %2327 = vmatprep.subr.bf16.mxu0 0
        %2328 = vmatpush1.bf16.msra.mxu0 0
        %2329 = vmatprep.mubr.bf16.mxu0 0
        %2330 = vmatmul.mubr.bf16.gmra.mrb[0].mxu0 %v1930
        %v2331 = vpop.f32.mrb[0].mxu0
        %v2332 = vadd.f32 0.0, %v2331
        %v2333 = vpop.f32.mrb[0].mxu0
        %v2334 = vpop.f32.mrb[0].mxu0
        %v2335 = vadd.f32 0.0, %v2334
        %v2336 = vpop.f32.mrb[0].mxu0
        %2337 = vmatprep.mubr.bf16.mxu0 0
        %2338 = vmatmul.mubr.bf16.gmra.mrb[0].mxu0 %v1933
        %v2339 = vpop.f32.mrb[0].mxu0
        %v2340 = vadd.f32 0.0, %v2339
        %v2341 = vpop.f32.mrb[0].mxu0
        %v2342 = vpop.f32.mrb[0].mxu0
        %v2343 = vpop.f32.mrb[0].mxu0
        %2344 = vdwg.mxu0
        %v2345 = vadd.f32 %v697, %v2284
        %v2346 = vadd.f32 %v700, %v2287
        %v2347 = vadd.f32 %v705, %v2292
        %v2348 = vxor.u32 %v2345, 2147483648
        %v2349 = vxor.u32 %v2346, 2147483648
        %v2350 = vxor.u32 %v2347, 2147483648
        %v2351 = vmul.f32 %v2348, 1.442695
        %v2352 = vpow.pop %v2351
        %v2353 = vmul.f32 %v2349, 1.442695
        %v2354 = vpow.pop %v2353
        %v2355 = vmul.f32 %v2350, 1.442695
        %v2356 = vpow.pop %v2355
        %v2357 = vadd.f32 %v2352, 1.0
        %v2358 = vadd.f32 %v2354, 1.0
        %v2359 = vadd.f32 %v2356, 1.0
        %v2360 = vrcp.pop %v2357
        %v2361 = vmul.f32 1.0, %v2360
        %v2362 = vrcp.pop %v2358
        %v2363 = vmul.f32 1.0, %v2362
        %v2364 = vrcp.pop %v2359
        %v2365 = vmul.f32 1.0, %v2364
        %v2366 = vadd.f32 %v812, %v2332
        %v2367 = vadd.f32 %v815, %v2335
        %v2368 = vadd.f32 %v820, %v2340
        %v2369 = vxor.u32 %v2366, 2147483648
        %v2370 = vxor.u32 %v2367, 2147483648
        %v2371 = vxor.u32 %v2368, 2147483648
        %v2372 = vmul.f32 %v2369, 1.442695
        %v2373 = vpow.pop %v2372
        %v2374 = vmul.f32 %v2370, 1.442695
        %v2375 = vpow.pop %v2374
        %v2376 = vmul.f32 %v2371, 1.442695
        %v2377 = vpow.pop %v2376
        %v2378 = vadd.f32 %v2373, 1.0
        %v2379 = vadd.f32 %v2375, 1.0
        %v2380 = vadd.f32 %v2377, 1.0
        %v2381 = vrcp.pop %v2378
        %v2382 = vmul.f32 1.0, %v2381
        %v2383 = vrcp.pop %v2379
        %v2384 = vmul.f32 1.0, %v2383
        %v2385 = vrcp.pop %v2380
        %v2386 = vmul.f32 1.0, %v2385
        %2387 = vmatprep.subr.bf16.mxu0 0
        %2388 = vmatpush1.bf16.msra.mxu0 %v1151
        %2389 = vmatprep.subr.bf16.mxu0 0
        %2390 = vmatpush1.bf16.msra.mxu0 %v1152
        %2391 = vmatprep.subr.bf16.mxu0 0
        %2392 = vmatpush1.bf16.msra.mxu0 0
        %2393 = vmatprep.subr.bf16.mxu0 0
        %2394 = vmatpush1.bf16.msra.mxu0 0
        %2395 = vmatprep.subr.bf16.mxu0 0
        %2396 = vmatpush1.bf16.msra.mxu0 0
        %2397 = vmatprep.subr.bf16.mxu0 0
        %2398 = vmatpush1.bf16.msra.mxu0 0
        %2399 = vmatprep.subr.bf16.mxu0 0
        %2400 = vmatpush1.bf16.msra.mxu0 0
        %2401 = vmatprep.subr.bf16.mxu0 0
        %2402 = vmatpush1.bf16.msra.mxu0 0
        %2403 = vmatprep.subr.bf16.mxu0 0
        %2404 = vmatpush1.bf16.msra.mxu0 0
        %2405 = vmatprep.subr.bf16.mxu0 0
        %2406 = vmatpush1.bf16.msra.mxu0 0
        %2407 = vmatprep.subr.bf16.mxu0 0
        %2408 = vmatpush1.bf16.msra.mxu0 0
        %2409 = vmatprep.subr.bf16.mxu0 0
        %2410 = vmatpush1.bf16.msra.mxu0 0
        %2411 = vmatprep.subr.bf16.mxu0 0
        %2412 = vmatpush1.bf16.msra.mxu0 0
        %2413 = vmatprep.subr.bf16.mxu0 0
        %2414 = vmatpush1.bf16.msra.mxu0 0
        %2415 = vmatprep.subr.bf16.mxu0 0
        %2416 = vmatpush1.bf16.msra.mxu0 0
        %2417 = vmatprep.subr.bf16.mxu0 0
        %2418 = vmatpush1.bf16.msra.mxu0 0
        %2419 = vmatprep.mubr.bf16.mxu0 0
        %2420 = vmatmul.mubr.bf16.gmra.mrb[0].mxu0 %v1930
        %v2421 = vpop.f32.mrb[0].mxu0
        %v2422 = vadd.f32 %v1142, %v2421
        %v2423 = vpop.f32.mrb[0].mxu0
        %v2424 = vpop.f32.mrb[0].mxu0
        %v2425 = vadd.f32 %v1142, %v2424
        %v2426 = vpop.f32.mrb[0].mxu0
        %2427 = vmatprep.mubr.bf16.mxu0 0
        %2428 = vmatmul.mubr.bf16.gmra.mrb[0].mxu0 %v1933
        %v2429 = vpop.f32.mrb[0].mxu0
        %v2430 = vadd.f32 %v1142, %v2429
        %v2431 = vpop.f32.mrb[0].mxu0
        %v2432 = vpop.f32.mrb[0].mxu0
        %v2433 = vpop.f32.mrb[0].mxu0
        %2434 = vdwg.mxu0
        %v2435 = vmul.f32 %v2361, %v2422
        %v2436 = vmul.f32 %v2363, %v2425
        %v2437 = vmul.f32 %v2365, %v2430
        %v2438 = vadd.f32 %v927, %v2435
        %v2439 = vadd.f32 %v930, %v2436
        %v2440 = vadd.f32 %v935, %v2437
        %v2441 = vtanh.pop %v2438
        %v2442 = vtanh.pop %v2439
        %v2443 = vtanh.pop %v2440
        %v2444 = vsub.f32 1.0, %v2382
        %v2445 = vsub.f32 1.0, %v2384
        %v2446 = vsub.f32 1.0, %v2386
        %v2447 = vmul.f32 %v2444, %v2441
        %v2448 = vmul.f32 %v2445, %v2442
        %v2449 = vmul.f32 %v2446, %v2443
        %v2450 = vmul.f32 %v2382, %v1868
        %v2451 = vmul.f32 %v2384, %v1869
        %v2452 = vmul.f32 %v2386, %v1870
        %v2453 = vadd.f32 %v2447, %v2450
        %v2454 = vadd.f32 %v2448, %v2451
        %v2455 = vadd.f32 %v2449, %v2452
        %v2456 = vpack.c.bf16 %v2454, %v2453
        %v2457 = vpack.c.bf16 %v2455, %v2455
        %v2458 = vpack.c.bf16 %v2236, %v2235
        %v2459 = vpack.c.bf16 %v2237, %v2237
        %v2461 = vsel %vm610, %v2458, 0
        %v2464 = vsel %vm610, %v2459, 0
        %2466 = vmatprep.subr.bf16.mxu0 0
        %2467 = vmatpush1.bf16.msra.mxu0 %v1230
        %2468 = vmatprep.subr.bf16.mxu0 0
        %2469 = vmatpush1.bf16.msra.mxu0 0
        %2470 = vmatprep.subr.bf16.mxu0 0
        %2471 = vmatpush1.bf16.msra.mxu0 0
        %2472 = vmatprep.subr.bf16.mxu0 0
        %2473 = vmatpush1.bf16.msra.mxu0 0
        %2474 = vmatprep.subr.bf16.mxu0 0
        %2475 = vmatpush1.bf16.msra.mxu0 0
        %2476 = vmatprep.subr.bf16.mxu0 0
        %2477 = vmatpush1.bf16.msra.mxu0 0
        %2478 = vmatprep.subr.bf16.mxu0 0
        %2479 = vmatpush1.bf16.msra.mxu0 0
        %2480 = vmatprep.subr.bf16.mxu0 0
        %2481 = vmatpush1.bf16.msra.mxu0 0
        %2482 = vmatprep.subr.bf16.mxu0 0
        %2483 = vmatpush1.bf16.msra.mxu0 0
        %2484 = vmatprep.subr.bf16.mxu0 0
        %2485 = vmatpush1.bf16.msra.mxu0 0
        %2486 = vmatprep.subr.bf16.mxu0 0
        %2487 = vmatpush1.bf16.msra.mxu0 0
        %2488 = vmatprep.subr.bf16.mxu0 0
        %2489 = vmatpush1.bf16.msra.mxu0 0
        %2490 = vmatprep.subr.bf16.mxu0 0
        %2491 = vmatpush1.bf16.msra.mxu0 0
        %2492 = vmatprep.subr.bf16.mxu0 0
        %2493 = vmatpush1.bf16.msra.mxu0 0
        %2494 = vmatprep.subr.bf16.mxu0 0
        %2495 = vmatpush1.bf16.msra.mxu0 0
        %2496 = vmatprep.subr.bf16.mxu0 0
        %2497 = vmatpush1.bf16.msra.mxu0 0
        %2498 = vmatprep.mubr.bf16.mxu0 0
        %2499 = vmatmul.mubr.bf16.gmra.mrb[0].mxu0 %v2461
        %v2500 = vpop.f32.mrb[0].mxu0
        %v2501 = vadd.f32 0.0, %v2500
        %v2502 = vpop.f32.mrb[0].mxu0
        %v2503 = vpop.f32.mrb[0].mxu0
        %v2504 = vadd.f32 0.0, %v2503
        %v2505 = vpop.f32.mrb[0].mxu0
        %2506 = vmatprep.mubr.bf16.mxu0 0
        %2507 = vmatmul.mubr.bf16.gmra.mrb[0].mxu0 %v2464
        %v2508 = vpop.f32.mrb[0].mxu0
        %v2509 = vadd.f32 0.0, %v2508
        %v2510 = vpop.f32.mrb[0].mxu0
        %v2511 = vpop.f32.mrb[0].mxu0
        %v2512 = vpop.f32.mrb[0].mxu0
        %2513 = vdwg.mxu0
        %v2515 = vsel %vm985, %v2456, 0
        %v2518 = vsel %vm985, %v2457, 0
        %2520 = vmatprep.subr.bf16.mxu0 0
        %2521 = vmatpush1.bf16.msra.mxu0 %v1290
        %2522 = vmatprep.subr.bf16.mxu0 0
        %2523 = vmatpush1.bf16.msra.mxu0 %v1291
        %2524 = vmatprep.subr.bf16.mxu0 0
        %2525 = vmatpush1.bf16.msra.mxu0 0
        %2526 = vmatprep.subr.bf16.mxu0 0
        %2527 = vmatpush1.bf16.msra.mxu0 0
        %2528 = vmatprep.subr.bf16.mxu0 0
        %2529 = vmatpush1.bf16.msra.mxu0 0
        %2530 = vmatprep.subr.bf16.mxu0 0
        %2531 = vmatpush1.bf16.msra.mxu0 0
        %2532 = vmatprep.subr.bf16.mxu0 0
        %2533 = vmatpush1.bf16.msra.mxu0 0
        %2534 = vmatprep.subr.bf16.mxu0 0
        %2535 = vmatpush1.bf16.msra.mxu0 0
        %2536 = vmatprep.subr.bf16.mxu0 0
        %2537 = vmatpush1.bf16.msra.mxu0 0
        %2538 = vmatprep.subr.bf16.mxu0 0
        %2539 = vmatpush1.bf16.msra.mxu0 0
        %2540 = vmatprep.subr.bf16.mxu0 0
        %2541 = vmatpush1.bf16.msra.mxu0 0
        %2542 = vmatprep.subr.bf16.mxu0 0
        %2543 = vmatpush1.bf16.msra.mxu0 0
        %2544 = vmatprep.subr.bf16.mxu0 0
        %2545 = vmatpush1.bf16.msra.mxu0 0
        %2546 = vmatprep.subr.bf16.mxu0 0
        %2547 = vmatpush1.bf16.msra.mxu0 0
        %2548 = vmatprep.subr.bf16.mxu0 0
        %2549 = vmatpush1.bf16.msra.mxu0 0
        %2550 = vmatprep.subr.bf16.mxu0 0
        %2551 = vmatpush1.bf16.msra.mxu0 0
        %2552 = vmatprep.mubr.bf16.mxu0 0
        %2553 = vmatmul.mubr.bf16.gmra.mrb[0].mxu0 %v2515
        %v2554 = vpop.f32.mrb[0].mxu0
        %v2555 = vadd.f32 %v2501, %v2554
        %v2556 = vpop.f32.mrb[0].mxu0
        %v2557 = vpop.f32.mrb[0].mxu0
        %v2558 = vadd.f32 %v2504, %v2557
        %v2559 = vpop.f32.mrb[0].mxu0
        %2560 = vmatprep.mubr.bf16.mxu0 0
        %2561 = vmatmul.mubr.bf16.gmra.mrb[0].mxu0 %v2518
        %v2562 = vpop.f32.mrb[0].mxu0
        %v2563 = vadd.f32 %v2509, %v2562
        %v2564 = vpop.f32.mrb[0].mxu0
        %v2565 = vpop.f32.mrb[0].mxu0
        %v2566 = vpop.f32.mrb[0].mxu0
        %2567 = vdwg.mxu0
        %v2568 = vadd.f32 %v2555, %v1351
        %v2569 = vadd.f32 %v2558, %v1351
        %v2570 = vadd.f32 %v2563, %v1351
        %v2571 = vxor.u32 %v2568, 2147483648
        %v2572 = vxor.u32 %v2569, 2147483648
        %v2573 = vxor.u32 %v2570, 2147483648
        %v2574 = vmul.f32 %v2571, 1.442695
        %v2575 = vpow.pop %v2574
        %v2576 = vmul.f32 %v2572, 1.442695
        %v2577 = vpow.pop %v2576
        %v2578 = vmul.f32 %v2573, 1.442695
        %v2579 = vpow.pop %v2578
        %v2580 = vadd.f32 %v2575, 1.0
        %v2581 = vadd.f32 %v2577, 1.0
        %v2582 = vadd.f32 %v2579, 1.0
        %v2583 = vrcp.pop %v2580
        %v2584 = vmul.f32 1.0, %v2583
        %v2585 = vrcp.pop %v2581
        %v2586 = vmul.f32 1.0, %v2585
        %v2587 = vrcp.pop %v2582
        %v2588 = vmul.f32 1.0, %v2587
        %2589 = vmatprep.subr.bf16.mxu0 0
        %2590 = vmatpush1.bf16.msra.mxu0 %v1377
        %2591 = vmatprep.subr.bf16.mxu0 0
        %2592 = vmatpush1.bf16.msra.mxu0 0
        %2593 = vmatprep.subr.bf16.mxu0 0
        %2594 = vmatpush1.bf16.msra.mxu0 0
        %2595 = vmatprep.subr.bf16.mxu0 0
        %2596 = vmatpush1.bf16.msra.mxu0 0
        %2597 = vmatprep.subr.bf16.mxu0 0
        %2598 = vmatpush1.bf16.msra.mxu0 0
        %2599 = vmatprep.subr.bf16.mxu0 0
        %2600 = vmatpush1.bf16.msra.mxu0 0
        %2601 = vmatprep.subr.bf16.mxu0 0
        %2602 = vmatpush1.bf16.msra.mxu0 0
        %2603 = vmatprep.subr.bf16.mxu0 0
        %2604 = vmatpush1.bf16.msra.mxu0 0
        %2605 = vmatprep.subr.bf16.mxu0 0
        %2606 = vmatpush1.bf16.msra.mxu0 0
        %2607 = vmatprep.subr.bf16.mxu0 0
        %2608 = vmatpush1.bf16.msra.mxu0 0
        %2609 = vmatprep.subr.bf16.mxu0 0
        %2610 = vmatpush1.bf16.msra.mxu0 0
        %2611 = vmatprep.subr.bf16.mxu0 0
        %2612 = vmatpush1.bf16.msra.mxu0 0
        %2613 = vmatprep.subr.bf16.mxu0 0
        %2614 = vmatpush1.bf16.msra.mxu0 0
        %2615 = vmatprep.subr.bf16.mxu0 0
        %2616 = vmatpush1.bf16.msra.mxu0 0
        %2617 = vmatprep.subr.bf16.mxu0 0
        %2618 = vmatpush1.bf16.msra.mxu0 0
        %2619 = vmatprep.subr.bf16.mxu0 0
        %2620 = vmatpush1.bf16.msra.mxu0 0
        %2621 = vmatprep.mubr.bf16.mxu0 0
        %2622 = vmatmul.mubr.bf16.gmra.mrb[0].mxu0 %v2461
        %v2623 = vpop.f32.mrb[0].mxu0
        %v2624 = vadd.f32 0.0, %v2623
        %v2625 = vpop.f32.mrb[0].mxu0
        %v2626 = vpop.f32.mrb[0].mxu0
        %v2627 = vadd.f32 0.0, %v2626
        %v2628 = vpop.f32.mrb[0].mxu0
        %2629 = vmatprep.mubr.bf16.mxu0 0
        %2630 = vmatmul.mubr.bf16.gmra.mrb[0].mxu0 %v2464
        %v2631 = vpop.f32.mrb[0].mxu0
        %v2632 = vadd.f32 0.0, %v2631
        %v2633 = vpop.f32.mrb[0].mxu0
        %v2634 = vpop.f32.mrb[0].mxu0
        %v2635 = vpop.f32.mrb[0].mxu0
        %2636 = vdwg.mxu0
        %2637 = vmatprep.subr.bf16.mxu0 0
        %2638 = vmatpush1.bf16.msra.mxu0 %v1435
        %2639 = vmatprep.subr.bf16.mxu0 0
        %2640 = vmatpush1.bf16.msra.mxu0 %v1436
        %2641 = vmatprep.subr.bf16.mxu0 0
        %2642 = vmatpush1.bf16.msra.mxu0 0
        %2643 = vmatprep.subr.bf16.mxu0 0
        %2644 = vmatpush1.bf16.msra.mxu0 0
        %2645 = vmatprep.subr.bf16.mxu0 0
        %2646 = vmatpush1.bf16.msra.mxu0 0
        %2647 = vmatprep.subr.bf16.mxu0 0
        %2648 = vmatpush1.bf16.msra.mxu0 0
        %2649 = vmatprep.subr.bf16.mxu0 0
        %2650 = vmatpush1.bf16.msra.mxu0 0
        %2651 = vmatprep.subr.bf16.mxu0 0
        %2652 = vmatpush1.bf16.msra.mxu0 0
        %2653 = vmatprep.subr.bf16.mxu0 0
        %2654 = vmatpush1.bf16.msra.mxu0 0
        %2655 = vmatprep.subr.bf16.mxu0 0
        %2656 = vmatpush1.bf16.msra.mxu0 0
        %2657 = vmatprep.subr.bf16.mxu0 0
        %2658 = vmatpush1.bf16.msra.mxu0 0
        %2659 = vmatprep.subr.bf16.mxu0 0
        %2660 = vmatpush1.bf16.msra.mxu0 0
        %2661 = vmatprep.subr.bf16.mxu0 0
        %2662 = vmatpush1.bf16.msra.mxu0 0
        %2663 = vmatprep.subr.bf16.mxu0 0
        %2664 = vmatpush1.bf16.msra.mxu0 0
        %2665 = vmatprep.subr.bf16.mxu0 0
        %2666 = vmatpush1.bf16.msra.mxu0 0
        %2667 = vmatprep.subr.bf16.mxu0 0
        %2668 = vmatpush1.bf16.msra.mxu0 0
        %2669 = vmatprep.mubr.bf16.mxu0 0
        %2670 = vmatmul.mubr.bf16.gmra.mrb[0].mxu0 %v2515
        %v2671 = vpop.f32.mrb[0].mxu0
        %v2672 = vadd.f32 %v2624, %v2671
        %v2673 = vpop.f32.mrb[0].mxu0
        %v2674 = vpop.f32.mrb[0].mxu0
        %v2675 = vadd.f32 %v2627, %v2674
        %v2676 = vpop.f32.mrb[0].mxu0
        %2677 = vmatprep.mubr.bf16.mxu0 0
        %2678 = vmatmul.mubr.bf16.gmra.mrb[0].mxu0 %v2518
        %v2679 = vpop.f32.mrb[0].mxu0
        %v2680 = vadd.f32 %v2632, %v2679
        %v2681 = vpop.f32.mrb[0].mxu0
        %v2682 = vpop.f32.mrb[0].mxu0
        %v2683 = vpop.f32.mrb[0].mxu0
        %2684 = vdwg.mxu0
        %v2685 = vadd.f32 %v2672, %v1490
        %v2686 = vadd.f32 %v2675, %v1490
        %v2687 = vadd.f32 %v2680, %v1490
        %v2688 = vxor.u32 %v2685, 2147483648
        %v2689 = vxor.u32 %v2686, 2147483648
        %v2690 = vxor.u32 %v2687, 2147483648
        %v2691 = vmul.f32 %v2688, 1.442695
        %v2692 = vpow.pop %v2691
        %v2693 = vmul.f32 %v2689, 1.442695
        %v2694 = vpow.pop %v2693
        %v2695 = vmul.f32 %v2690, 1.442695
        %v2696 = vpow.pop %v2695
        %v2697 = vadd.f32 %v2692, 1.0
        %v2698 = vadd.f32 %v2694, 1.0
        %v2699 = vadd.f32 %v2696, 1.0
        %v2700 = vrcp.pop %v2697
        %v2701 = vmul.f32 1.0, %v2700
        %v2702 = vrcp.pop %v2698
        %v2703 = vmul.f32 1.0, %v2702
        %v2704 = vrcp.pop %v2699
        %v2705 = vmul.f32 1.0, %v2704
        %2706 = vmatprep.subr.bf16.mxu0 0
        %2707 = vmatpush1.bf16.msra.mxu0 %v1524
        %2708 = vmatprep.subr.bf16.mxu0 0
        %2709 = vmatpush1.bf16.msra.mxu0 %v1525
        %2710 = vmatprep.subr.bf16.mxu0 0
        %2711 = vmatpush1.bf16.msra.mxu0 0
        %2712 = vmatprep.subr.bf16.mxu0 0
        %2713 = vmatpush1.bf16.msra.mxu0 0
        %2714 = vmatprep.subr.bf16.mxu0 0
        %2715 = vmatpush1.bf16.msra.mxu0 0
        %2716 = vmatprep.subr.bf16.mxu0 0
        %2717 = vmatpush1.bf16.msra.mxu0 0
        %2718 = vmatprep.subr.bf16.mxu0 0
        %2719 = vmatpush1.bf16.msra.mxu0 0
        %2720 = vmatprep.subr.bf16.mxu0 0
        %2721 = vmatpush1.bf16.msra.mxu0 0
        %2722 = vmatprep.subr.bf16.mxu0 0
        %2723 = vmatpush1.bf16.msra.mxu0 0
        %2724 = vmatprep.subr.bf16.mxu0 0
        %2725 = vmatpush1.bf16.msra.mxu0 0
        %2726 = vmatprep.subr.bf16.mxu0 0
        %2727 = vmatpush1.bf16.msra.mxu0 0
        %2728 = vmatprep.subr.bf16.mxu0 0
        %2729 = vmatpush1.bf16.msra.mxu0 0
        %2730 = vmatprep.subr.bf16.mxu0 0
        %2731 = vmatpush1.bf16.msra.mxu0 0
        %2732 = vmatprep.subr.bf16.mxu0 0
        %2733 = vmatpush1.bf16.msra.mxu0 0
        %2734 = vmatprep.subr.bf16.mxu0 0
        %2735 = vmatpush1.bf16.msra.mxu0 0
        %2736 = vmatprep.subr.bf16.mxu0 0
        %2737 = vmatpush1.bf16.msra.mxu0 0
        %2738 = vmatprep.mubr.bf16.mxu0 0
        %2739 = vmatmul.mubr.bf16.gmra.mrb[0].mxu0 %v2515
        %v2740 = vpop.f32.mrb[0].mxu0
        %v2741 = vadd.f32 %v1515, %v2740
        %v2742 = vpop.f32.mrb[0].mxu0
        %v2743 = vpop.f32.mrb[0].mxu0
        %v2744 = vadd.f32 %v1515, %v2743
        %v2745 = vpop.f32.mrb[0].mxu0
        %2746 = vmatprep.mubr.bf16.mxu0 0
        %2747 = vmatmul.mubr.bf16.gmra.mrb[0].mxu0 %v2518
        %v2748 = vpop.f32.mrb[0].mxu0
        %v2749 = vadd.f32 %v1515, %v2748
        %v2750 = vpop.f32.mrb[0].mxu0
        %v2751 = vpop.f32.mrb[0].mxu0
        %v2752 = vpop.f32.mrb[0].mxu0
        %2753 = vdwg.mxu0
        %2754 = vmatprep.subr.bf16.mxu0 0
        %2755 = vmatpush1.bf16.msra.mxu0 %v1584
        %2756 = vmatprep.subr.bf16.mxu0 0
        %2757 = vmatpush1.bf16.msra.mxu0 0
        %2758 = vmatprep.subr.bf16.mxu0 0
        %2759 = vmatpush1.bf16.msra.mxu0 0
        %2760 = vmatprep.subr.bf16.mxu0 0
        %2761 = vmatpush1.bf16.msra.mxu0 0
        %2762 = vmatprep.subr.bf16.mxu0 0
        %2763 = vmatpush1.bf16.msra.mxu0 0
        %2764 = vmatprep.subr.bf16.mxu0 0
        %2765 = vmatpush1.bf16.msra.mxu0 0
        %2766 = vmatprep.subr.bf16.mxu0 0
        %2767 = vmatpush1.bf16.msra.mxu0 0
        %2768 = vmatprep.subr.bf16.mxu0 0
        %2769 = vmatpush1.bf16.msra.mxu0 0
        %2770 = vmatprep.subr.bf16.mxu0 0
        %2771 = vmatpush1.bf16.msra.mxu0 0
        %2772 = vmatprep.subr.bf16.mxu0 0
        %2773 = vmatpush1.bf16.msra.mxu0 0
        %2774 = vmatprep.subr.bf16.mxu0 0
        %2775 = vmatpush1.bf16.msra.mxu0 0
        %2776 = vmatprep.subr.bf16.mxu0 0
        %2777 = vmatpush1.bf16.msra.mxu0 0
        %2778 = vmatprep.subr.bf16.mxu0 0
        %2779 = vmatpush1.bf16.msra.mxu0 0
        %2780 = vmatprep.subr.bf16.mxu0 0
        %2781 = vmatpush1.bf16.msra.mxu0 0
        %2782 = vmatprep.subr.bf16.mxu0 0
        %2783 = vmatpush1.bf16.msra.mxu0 0
        %2784 = vmatprep.subr.bf16.mxu0 0
        %2785 = vmatpush1.bf16.msra.mxu0 0
        %2786 = vmatprep.mubr.bf16.mxu0 0
        %2787 = vmatmul.mubr.bf16.gmra.mrb[0].mxu0 %v2461
        %v2788 = vpop.f32.mrb[0].mxu0
        %v2789 = vadd.f32 %v1579, %v2788
        %v2790 = vpop.f32.mrb[0].mxu0
        %v2791 = vpop.f32.mrb[0].mxu0
        %v2792 = vadd.f32 %v1579, %v2791
        %v2793 = vpop.f32.mrb[0].mxu0
        %2794 = vmatprep.mubr.bf16.mxu0 0
        %2795 = vmatmul.mubr.bf16.gmra.mrb[0].mxu0 %v2464
        %v2796 = vpop.f32.mrb[0].mxu0
        %v2797 = vadd.f32 %v1579, %v2796
        %v2798 = vpop.f32.mrb[0].mxu0
        %v2799 = vpop.f32.mrb[0].mxu0
        %v2800 = vpop.f32.mrb[0].mxu0
        %2801 = vdwg.mxu0
        %v2802 = vmul.f32 %v2584, %v2789
        %v2803 = vmul.f32 %v2586, %v2792
        %v2804 = vmul.f32 %v2588, %v2797
        %v2805 = vadd.f32 %v2741, %v2802
        %v2806 = vadd.f32 %v2744, %v2803
        %v2807 = vadd.f32 %v2749, %v2804
        %v2808 = vtanh.pop %v2805
        %v2809 = vtanh.pop %v2806
        %v2810 = vtanh.pop %v2807
        %v2811 = vsub.f32 1.0, %v2701
        %v2812 = vsub.f32 1.0, %v2703
        %v2813 = vsub.f32 1.0, %v2705
        %v2814 = vmul.f32 %v2811, %v2808
        %v2815 = vmul.f32 %v2812, %v2809
        %v2816 = vmul.f32 %v2813, %v2810
        %v2817 = vmul.f32 %v2701, %v2235
        %v2818 = vmul.f32 %v2703, %v2236
        %v2819 = vmul.f32 %v2705, %v2237
        %v2820 = vadd.f32 %v2814, %v2817
        %v2821 = vadd.f32 %v2815, %v2818
        %v2822 = vadd.f32 %v2816, %v2819
        %s2823 = scalar_lea.vmem %s492, 48 [#allocation3]
        %v2824 = vld [vmem:[%s2823] sm:$0xff]
        %v2825 = vld [vmem:[%s2823 + $0x8] sm:$0xff]
        %v2826 = vld [vmem:[%s2823 + $0x10] sm:$0xff]
        %v2827 = vmul.f32 %v2820, %v2824
        %v2828 = vmul.f32 %v2821, %v2825
        %v2829 = vmul.f32 %v2822, %v2826
        %v2830 = vadd.f32 %v2827, %v2828
        %v2831 = vadd.f32 %v2830, %v2829
        %s2832 = scalar_lea.vmem %s533, 16
        %2833 = vst.msk [vmem:[%s2832] sm:$0xff] %vm610, %v2831
        %2834 = vmatprep.subr.bf16.mxu0 0
        %2835 = vmatpush1.bf16.msra.mxu0 %v981
        %2836 = vmatprep.subr.bf16.mxu0 0
        %2837 = vmatpush1.bf16.msra.mxu0 %v982
        %2838 = vmatprep.subr.bf16.mxu0 0
        %2839 = vmatpush1.bf16.msra.mxu0 0
        %2840 = vmatprep.subr.bf16.mxu0 0
        %2841 = vmatpush1.bf16.msra.mxu0 0
        %2842 = vmatprep.subr.bf16.mxu0 0
        %2843 = vmatpush1.bf16.msra.mxu0 0
        %2844 = vmatprep.subr.bf16.mxu0 0
        %2845 = vmatpush1.bf16.msra.mxu0 0
        %2846 = vmatprep.subr.bf16.mxu0 0
        %2847 = vmatpush1.bf16.msra.mxu0 0
        %2848 = vmatprep.subr.bf16.mxu0 0
        %2849 = vmatpush1.bf16.msra.mxu0 0
        %2850 = vmatprep.subr.bf16.mxu0 0
        %2851 = vmatpush1.bf16.msra.mxu0 0
        %2852 = vmatprep.subr.bf16.mxu0 0
        %2853 = vmatpush1.bf16.msra.mxu0 0
        %2854 = vmatprep.subr.bf16.mxu0 0
        %2855 = vmatpush1.bf16.msra.mxu0 0
        %2856 = vmatprep.subr.bf16.mxu0 0
        %2857 = vmatpush1.bf16.msra.mxu0 0
        %2858 = vmatprep.subr.bf16.mxu0 0
        %2859 = vmatpush1.bf16.msra.mxu0 0
        %2860 = vmatprep.subr.bf16.mxu0 0
        %2861 = vmatpush1.bf16.msra.mxu0 0
        %2862 = vmatprep.subr.bf16.mxu0 0
        %2863 = vmatpush1.bf16.msra.mxu0 0
        %2864 = vmatprep.subr.bf16.mxu0 0
        %2865 = vmatpush1.bf16.msra.mxu0 0
        %2866 = vmatprep.mubr.bf16.mxu0 0
        %2867 = vmatmul.mubr.bf16.gmra.mrb[0].mxu0 %v2515
        %v2868 = vpop.f32.mrb[0].mxu0
        %v2869 = vadd.f32 0.0, %v2868
        %v2870 = vpop.f32.mrb[0].mxu0
        %v2871 = vpop.f32.mrb[0].mxu0
        %v2872 = vadd.f32 0.0, %v2871
        %v2873 = vpop.f32.mrb[0].mxu0
        %2874 = vmatprep.mubr.bf16.mxu0 0
        %2875 = vmatmul.mubr.bf16.gmra.mrb[0].mxu0 %v2518
        %v2876 = vpop.f32.mrb[0].mxu0
        %v2877 = vadd.f32 0.0, %v2876
        %v2878 = vpop.f32.mrb[0].mxu0
        %v2879 = vpop.f32.mrb[0].mxu0
        %v2880 = vpop.f32.mrb[0].mxu0
        %2881 = vdwg.mxu0
        %2882 = vmatprep.subr.bf16.mxu0 0
        %2883 = vmatpush1.bf16.msra.mxu0 %v1045
        %2884 = vmatprep.subr.bf16.mxu0 0
        %2885 = vmatpush1.bf16.msra.mxu0 %v1046
        %2886 = vmatprep.subr.bf16.mxu0 0
        %2887 = vmatpush1.bf16.msra.mxu0 0
        %2888 = vmatprep.subr.bf16.mxu0 0
        %2889 = vmatpush1.bf16.msra.mxu0 0
        %2890 = vmatprep.subr.bf16.mxu0 0
        %2891 = vmatpush1.bf16.msra.mxu0 0
        %2892 = vmatprep.subr.bf16.mxu0 0
        %2893 = vmatpush1.bf16.msra.mxu0 0
        %2894 = vmatprep.subr.bf16.mxu0 0
        %2895 = vmatpush1.bf16.msra.mxu0 0
        %2896 = vmatprep.subr.bf16.mxu0 0
        %2897 = vmatpush1.bf16.msra.mxu0 0
        %2898 = vmatprep.subr.bf16.mxu0 0
        %2899 = vmatpush1.bf16.msra.mxu0 0
        %2900 = vmatprep.subr.bf16.mxu0 0
        %2901 = vmatpush1.bf16.msra.mxu0 0
        %2902 = vmatprep.subr.bf16.mxu0 0
        %2903 = vmatpush1.bf16.msra.mxu0 0
        %2904 = vmatprep.subr.bf16.mxu0 0
        %2905 = vmatpush1.bf16.msra.mxu0 0
        %2906 = vmatprep.subr.bf16.mxu0 0
        %2907 = vmatpush1.bf16.msra.mxu0 0
        %2908 = vmatprep.subr.bf16.mxu0 0
        %2909 = vmatpush1.bf16.msra.mxu0 0
        %2910 = vmatprep.subr.bf16.mxu0 0
        %2911 = vmatpush1.bf16.msra.mxu0 0
        %2912 = vmatprep.subr.bf16.mxu0 0
        %2913 = vmatpush1.bf16.msra.mxu0 0
        %2914 = vmatprep.mubr.bf16.mxu0 0
        %2915 = vmatmul.mubr.bf16.gmra.mrb[0].mxu0 %v2515
        %v2916 = vpop.f32.mrb[0].mxu0
        %v2917 = vadd.f32 0.0, %v2916
        %v2918 = vpop.f32.mrb[0].mxu0
        %v2919 = vpop.f32.mrb[0].mxu0
        %v2920 = vadd.f32 0.0, %v2919
        %v2921 = vpop.f32.mrb[0].mxu0
        %2922 = vmatprep.mubr.bf16.mxu0 0
        %2923 = vmatmul.mubr.bf16.gmra.mrb[0].mxu0 %v2518
        %v2924 = vpop.f32.mrb[0].mxu0
        %v2925 = vadd.f32 0.0, %v2924
        %v2926 = vpop.f32.mrb[0].mxu0
        %v2927 = vpop.f32.mrb[0].mxu0
        %v2928 = vpop.f32.mrb[0].mxu0
        %2929 = vdwg.mxu0
        %v2930 = vadd.f32 %v708, %v2869
        %v2931 = vadd.f32 %v713, %v2872
        %v2932 = vadd.f32 %v716, %v2877
        %v2933 = vxor.u32 %v2930, 2147483648
        %v2934 = vxor.u32 %v2931, 2147483648
        %v2935 = vxor.u32 %v2932, 2147483648
        %v2936 = vmul.f32 %v2933, 1.442695
        %v2937 = vpow.pop %v2936
        %v2938 = vmul.f32 %v2934, 1.442695
        %v2939 = vpow.pop %v2938
        %v2940 = vmul.f32 %v2935, 1.442695
        %v2941 = vpow.pop %v2940
        %v2942 = vadd.f32 %v2937, 1.0
        %v2943 = vadd.f32 %v2939, 1.0
        %v2944 = vadd.f32 %v2941, 1.0
        %v2945 = vrcp.pop %v2942
        %v2946 = vmul.f32 1.0, %v2945
        %v2947 = vrcp.pop %v2943
        %v2948 = vmul.f32 1.0, %v2947
        %v2949 = vrcp.pop %v2944
        %v2950 = vmul.f32 1.0, %v2949
        %v2951 = vadd.f32 %v823, %v2917
        %v2952 = vadd.f32 %v828, %v2920
        %v2953 = vadd.f32 %v831, %v2925
        %v2954 = vxor.u32 %v2951, 2147483648
        %v2955 = vxor.u32 %v2952, 2147483648
        %v2956 = vxor.u32 %v2953, 2147483648
        %v2957 = vmul.f32 %v2954, 1.442695
        %v2958 = vpow.pop %v2957
        %v2959 = vmul.f32 %v2955, 1.442695
        %v2960 = vpow.pop %v2959
        %v2961 = vmul.f32 %v2956, 1.442695
        %v2962 = vpow.pop %v2961
        %v2963 = vadd.f32 %v2958, 1.0
        %v2964 = vadd.f32 %v2960, 1.0
        %v2965 = vadd.f32 %v2962, 1.0
        %v2966 = vrcp.pop %v2963
        %v2967 = vmul.f32 1.0, %v2966
        %v2968 = vrcp.pop %v2964
        %v2969 = vmul.f32 1.0, %v2968
        %v2970 = vrcp.pop %v2965
        %v2971 = vmul.f32 1.0, %v2970
        %2972 = vmatprep.subr.bf16.mxu0 0
        %2973 = vmatpush1.bf16.msra.mxu0 %v1151
        %2974 = vmatprep.subr.bf16.mxu0 0
        %2975 = vmatpush1.bf16.msra.mxu0 %v1152
        %2976 = vmatprep.subr.bf16.mxu0 0
        %2977 = vmatpush1.bf16.msra.mxu0 0
        %2978 = vmatprep.subr.bf16.mxu0 0
        %2979 = vmatpush1.bf16.msra.mxu0 0
        %2980 = vmatprep.subr.bf16.mxu0 0
        %2981 = vmatpush1.bf16.msra.mxu0 0
        %2982 = vmatprep.subr.bf16.mxu0 0
        %2983 = vmatpush1.bf16.msra.mxu0 0
        %2984 = vmatprep.subr.bf16.mxu0 0
        %2985 = vmatpush1.bf16.msra.mxu0 0
        %2986 = vmatprep.subr.bf16.mxu0 0
        %2987 = vmatpush1.bf16.msra.mxu0 0
        %2988 = vmatprep.subr.bf16.mxu0 0
        %2989 = vmatpush1.bf16.msra.mxu0 0
        %2990 = vmatprep.subr.bf16.mxu0 0
        %2991 = vmatpush1.bf16.msra.mxu0 0
        %2992 = vmatprep.subr.bf16.mxu0 0
        %2993 = vmatpush1.bf16.msra.mxu0 0
        %2994 = vmatprep.subr.bf16.mxu0 0
        %2995 = vmatpush1.bf16.msra.mxu0 0
        %2996 = vmatprep.subr.bf16.mxu0 0
        %2997 = vmatpush1.bf16.msra.mxu0 0
        %2998 = vmatprep.subr.bf16.mxu0 0
        %2999 = vmatpush1.bf16.msra.mxu0 0
        %3000 = vmatprep.subr.bf16.mxu0 0
        %3001 = vmatpush1.bf16.msra.mxu0 0
        %3002 = vmatprep.subr.bf16.mxu0 0
        %3003 = vmatpush1.bf16.msra.mxu0 0
        %3004 = vmatprep.mubr.bf16.mxu0 0
        %3005 = vmatmul.mubr.bf16.gmra.mrb[0].mxu0 %v2515
        %v3006 = vpop.f32.mrb[0].mxu0
        %v3007 = vadd.f32 %v1142, %v3006
        %v3008 = vpop.f32.mrb[0].mxu0
        %v3009 = vpop.f32.mrb[0].mxu0
        %v3010 = vadd.f32 %v1142, %v3009
        %v3011 = vpop.f32.mrb[0].mxu0
        %3012 = vmatprep.mubr.bf16.mxu0 0
        %3013 = vmatmul.mubr.bf16.gmra.mrb[0].mxu0 %v2518
        %v3014 = vpop.f32.mrb[0].mxu0
        %v3015 = vadd.f32 %v1142, %v3014
        %v3016 = vpop.f32.mrb[0].mxu0
        %v3017 = vpop.f32.mrb[0].mxu0
        %v3018 = vpop.f32.mrb[0].mxu0
        %3019 = vdwg.mxu0
        %v3020 = vmul.f32 %v2946, %v3007
        %v3021 = vmul.f32 %v2948, %v3010
        %v3022 = vmul.f32 %v2950, %v3015
        %v3023 = vadd.f32 %v938, %v3020
        %v3024 = vadd.f32 %v943, %v3021
        %v3025 = vadd.f32 %v946, %v3022
        %v3026 = vtanh.pop %v3023
        %v3027 = vtanh.pop %v3024
        %v3028 = vtanh.pop %v3025
        %v3029 = vsub.f32 1.0, %v2967
        %v3030 = vsub.f32 1.0, %v2969
        %v3031 = vsub.f32 1.0, %v2971
        %v3032 = vmul.f32 %v3029, %v3026
        %v3033 = vmul.f32 %v3030, %v3027
        %v3034 = vmul.f32 %v3031, %v3028
        %v3035 = vmul.f32 %v2967, %v2453
        %v3036 = vmul.f32 %v2969, %v2454
        %v3037 = vmul.f32 %v2971, %v2455
        %v3038 = vadd.f32 %v3032, %v3035
        %v3039 = vadd.f32 %v3033, %v3036
        %v3040 = vadd.f32 %v3034, %v3037
        %v3041 = vpack.c.bf16 %v3039, %v3038
        %v3042 = vpack.c.bf16 %v3040, %v3040
        %v3043 = vpack.c.bf16 %v2821, %v2820
        %v3044 = vpack.c.bf16 %v2822, %v2822
        %v3046 = vsel %vm610, %v3043, 0
        %v3049 = vsel %vm610, %v3044, 0
        %3051 = vmatprep.subr.bf16.mxu0 0
        %3052 = vmatpush1.bf16.msra.mxu0 %v1230
        %3053 = vmatprep.subr.bf16.mxu0 0
        %3054 = vmatpush1.bf16.msra.mxu0 0
        %3055 = vmatprep.subr.bf16.mxu0 0
        %3056 = vmatpush1.bf16.msra.mxu0 0
        %3057 = vmatprep.subr.bf16.mxu0 0
        %3058 = vmatpush1.bf16.msra.mxu0 0
        %3059 = vmatprep.subr.bf16.mxu0 0
        %3060 = vmatpush1.bf16.msra.mxu0 0
        %3061 = vmatprep.subr.bf16.mxu0 0
        %3062 = vmatpush1.bf16.msra.mxu0 0
        %3063 = vmatprep.subr.bf16.mxu0 0
        %3064 = vmatpush1.bf16.msra.mxu0 0
        %3065 = vmatprep.subr.bf16.mxu0 0
        %3066 = vmatpush1.bf16.msra.mxu0 0
        %3067 = vmatprep.subr.bf16.mxu0 0
        %3068 = vmatpush1.bf16.msra.mxu0 0
        %3069 = vmatprep.subr.bf16.mxu0 0
        %3070 = vmatpush1.bf16.msra.mxu0 0
        %3071 = vmatprep.subr.bf16.mxu0 0
        %3072 = vmatpush1.bf16.msra.mxu0 0
        %3073 = vmatprep.subr.bf16.mxu0 0
        %3074 = vmatpush1.bf16.msra.mxu0 0
        %3075 = vmatprep.subr.bf16.mxu0 0
        %3076 = vmatpush1.bf16.msra.mxu0 0
        %3077 = vmatprep.subr.bf16.mxu0 0
        %3078 = vmatpush1.bf16.msra.mxu0 0
        %3079 = vmatprep.subr.bf16.mxu0 0
        %3080 = vmatpush1.bf16.msra.mxu0 0
        %3081 = vmatprep.subr.bf16.mxu0 0
        %3082 = vmatpush1.bf16.msra.mxu0 0
        %3083 = vmatprep.mubr.bf16.mxu0 0
        %3084 = vmatmul.mubr.bf16.gmra.mrb[0].mxu0 %v3046
        %v3085 = vpop.f32.mrb[0].mxu0
        %v3086 = vadd.f32 0.0, %v3085
        %v3087 = vpop.f32.mrb[0].mxu0
        %v3088 = vpop.f32.mrb[0].mxu0
        %v3089 = vadd.f32 0.0, %v3088
        %v3090 = vpop.f32.mrb[0].mxu0
        %3091 = vmatprep.mubr.bf16.mxu0 0
        %3092 = vmatmul.mubr.bf16.gmra.mrb[0].mxu0 %v3049
        %v3093 = vpop.f32.mrb[0].mxu0
        %v3094 = vadd.f32 0.0, %v3093
        %v3095 = vpop.f32.mrb[0].mxu0
        %v3096 = vpop.f32.mrb[0].mxu0
        %v3097 = vpop.f32.mrb[0].mxu0
        %3098 = vdwg.mxu0
        %v3100 = vsel %vm985, %v3041, 0
        %v3103 = vsel %vm985, %v3042, 0
        %3105 = vmatprep.subr.bf16.mxu0 0
        %3106 = vmatpush1.bf16.msra.mxu0 %v1290
        %3107 = vmatprep.subr.bf16.mxu0 0
        %3108 = vmatpush1.bf16.msra.mxu0 %v1291
        %3109 = vmatprep.subr.bf16.mxu0 0
        %3110 = vmatpush1.bf16.msra.mxu0 0
        %3111 = vmatprep.subr.bf16.mxu0 0
        %3112 = vmatpush1.bf16.msra.mxu0 0
        %3113 = vmatprep.subr.bf16.mxu0 0
        %3114 = vmatpush1.bf16.msra.mxu0 0
        %3115 = vmatprep.subr.bf16.mxu0 0
        %3116 = vmatpush1.bf16.msra.mxu0 0
        %3117 = vmatprep.subr.bf16.mxu0 0
        %3118 = vmatpush1.bf16.msra.mxu0 0
        %3119 = vmatprep.subr.bf16.mxu0 0
        %3120 = vmatpush1.bf16.msra.mxu0 0
        %3121 = vmatprep.subr.bf16.mxu0 0
        %3122 = vmatpush1.bf16.msra.mxu0 0
        %3123 = vmatprep.subr.bf16.mxu0 0
        %3124 = vmatpush1.bf16.msra.mxu0 0
        %3125 = vmatprep.subr.bf16.mxu0 0
        %3126 = vmatpush1.bf16.msra.mxu0 0
        %3127 = vmatprep.subr.bf16.mxu0 0
        %3128 = vmatpush1.bf16.msra.mxu0 0
        %3129 = vmatprep.subr.bf16.mxu0 0
        %3130 = vmatpush1.bf16.msra.mxu0 0
        %3131 = vmatprep.subr.bf16.mxu0 0
        %3132 = vmatpush1.bf16.msra.mxu0 0
        %3133 = vmatprep.subr.bf16.mxu0 0
        %3134 = vmatpush1.bf16.msra.mxu0 0
        %3135 = vmatprep.subr.bf16.mxu0 0
        %3136 = vmatpush1.bf16.msra.mxu0 0
        %3137 = vmatprep.mubr.bf16.mxu0 0
        %3138 = vmatmul.mubr.bf16.gmra.mrb[0].mxu0 %v3100
        %v3139 = vpop.f32.mrb[0].mxu0
        %v3140 = vadd.f32 %v3086, %v3139
        %v3141 = vpop.f32.mrb[0].mxu0
        %v3142 = vpop.f32.mrb[0].mxu0
        %v3143 = vadd.f32 %v3089, %v3142
        %v3144 = vpop.f32.mrb[0].mxu0
        %3145 = vmatprep.mubr.bf16.mxu0 0
        %3146 = vmatmul.mubr.bf16.gmra.mrb[0].mxu0 %v3103
        %v3147 = vpop.f32.mrb[0].mxu0
        %v3148 = vadd.f32 %v3094, %v3147
        %v3149 = vpop.f32.mrb[0].mxu0
        %v3150 = vpop.f32.mrb[0].mxu0
        %v3151 = vpop.f32.mrb[0].mxu0
        %3152 = vdwg.mxu0
        %v3153 = vadd.f32 %v3140, %v1351
        %v3154 = vadd.f32 %v3143, %v1351
        %v3155 = vadd.f32 %v3148, %v1351
        %v3156 = vxor.u32 %v3153, 2147483648
        %v3157 = vxor.u32 %v3154, 2147483648
        %v3158 = vxor.u32 %v3155, 2147483648
        %v3159 = vmul.f32 %v3156, 1.442695
        %v3160 = vpow.pop %v3159
        %v3161 = vmul.f32 %v3157, 1.442695
        %v3162 = vpow.pop %v3161
        %v3163 = vmul.f32 %v3158, 1.442695
        %v3164 = vpow.pop %v3163
        %v3165 = vadd.f32 %v3160, 1.0
        %v3166 = vadd.f32 %v3162, 1.0
        %v3167 = vadd.f32 %v3164, 1.0
        %v3168 = vrcp.pop %v3165
        %v3169 = vmul.f32 1.0, %v3168
        %v3170 = vrcp.pop %v3166
        %v3171 = vmul.f32 1.0, %v3170
        %v3172 = vrcp.pop %v3167
        %v3173 = vmul.f32 1.0, %v3172
        %3174 = vmatprep.subr.bf16.mxu0 0
        %3175 = vmatpush1.bf16.msra.mxu0 %v1377
        %3176 = vmatprep.subr.bf16.mxu0 0
        %3177 = vmatpush1.bf16.msra.mxu0 0
        %3178 = vmatprep.subr.bf16.mxu0 0
        %3179 = vmatpush1.bf16.msra.mxu0 0
        %3180 = vmatprep.subr.bf16.mxu0 0
        %3181 = vmatpush1.bf16.msra.mxu0 0
        %3182 = vmatprep.subr.bf16.mxu0 0
        %3183 = vmatpush1.bf16.msra.mxu0 0
        %3184 = vmatprep.subr.bf16.mxu0 0
        %3185 = vmatpush1.bf16.msra.mxu0 0
        %3186 = vmatprep.subr.bf16.mxu0 0
        %3187 = vmatpush1.bf16.msra.mxu0 0
        %3188 = vmatprep.subr.bf16.mxu0 0
        %3189 = vmatpush1.bf16.msra.mxu0 0
        %3190 = vmatprep.subr.bf16.mxu0 0
        %3191 = vmatpush1.bf16.msra.mxu0 0
        %3192 = vmatprep.subr.bf16.mxu0 0
        %3193 = vmatpush1.bf16.msra.mxu0 0
        %3194 = vmatprep.subr.bf16.mxu0 0
        %3195 = vmatpush1.bf16.msra.mxu0 0
        %3196 = vmatprep.subr.bf16.mxu0 0
        %3197 = vmatpush1.bf16.msra.mxu0 0
        %3198 = vmatprep.subr.bf16.mxu0 0
        %3199 = vmatpush1.bf16.msra.mxu0 0
        %3200 = vmatprep.subr.bf16.mxu0 0
        %3201 = vmatpush1.bf16.msra.mxu0 0
        %3202 = vmatprep.subr.bf16.mxu0 0
        %3203 = vmatpush1.bf16.msra.mxu0 0
        %3204 = vmatprep.subr.bf16.mxu0 0
        %3205 = vmatpush1.bf16.msra.mxu0 0
        %3206 = vmatprep.mubr.bf16.mxu0 0
        %3207 = vmatmul.mubr.bf16.gmra.mrb[0].mxu0 %v3046
        %v3208 = vpop.f32.mrb[0].mxu0
        %v3209 = vadd.f32 0.0, %v3208
        %v3210 = vpop.f32.mrb[0].mxu0
        %v3211 = vpop.f32.mrb[0].mxu0
        %v3212 = vadd.f32 0.0, %v3211
        %v3213 = vpop.f32.mrb[0].mxu0
        %3214 = vmatprep.mubr.bf16.mxu0 0
        %3215 = vmatmul.mubr.bf16.gmra.mrb[0].mxu0 %v3049
        %v3216 = vpop.f32.mrb[0].mxu0
        %v3217 = vadd.f32 0.0, %v3216
        %v3218 = vpop.f32.mrb[0].mxu0
        %v3219 = vpop.f32.mrb[0].mxu0
        %v3220 = vpop.f32.mrb[0].mxu0
        %3221 = vdwg.mxu0
        %3222 = vmatprep.subr.bf16.mxu0 0
        %3223 = vmatpush1.bf16.msra.mxu0 %v1435
        %3224 = vmatprep.subr.bf16.mxu0 0
        %3225 = vmatpush1.bf16.msra.mxu0 %v1436
        %3226 = vmatprep.subr.bf16.mxu0 0
        %3227 = vmatpush1.bf16.msra.mxu0 0
        %3228 = vmatprep.subr.bf16.mxu0 0
        %3229 = vmatpush1.bf16.msra.mxu0 0
        %3230 = vmatprep.subr.bf16.mxu0 0
        %3231 = vmatpush1.bf16.msra.mxu0 0
        %3232 = vmatprep.subr.bf16.mxu0 0
        %3233 = vmatpush1.bf16.msra.mxu0 0
        %3234 = vmatprep.subr.bf16.mxu0 0
        %3235 = vmatpush1.bf16.msra.mxu0 0
        %3236 = vmatprep.subr.bf16.mxu0 0
        %3237 = vmatpush1.bf16.msra.mxu0 0
        %3238 = vmatprep.subr.bf16.mxu0 0
        %3239 = vmatpush1.bf16.msra.mxu0 0
        %3240 = vmatprep.subr.bf16.mxu0 0
        %3241 = vmatpush1.bf16.msra.mxu0 0
        %3242 = vmatprep.subr.bf16.mxu0 0
        %3243 = vmatpush1.bf16.msra.mxu0 0
        %3244 = vmatprep.subr.bf16.mxu0 0
        %3245 = vmatpush1.bf16.msra.mxu0 0
        %3246 = vmatprep.subr.bf16.mxu0 0
        %3247 = vmatpush1.bf16.msra.mxu0 0
        %3248 = vmatprep.subr.bf16.mxu0 0
        %3249 = vmatpush1.bf16.msra.mxu0 0
        %3250 = vmatprep.subr.bf16.mxu0 0
        %3251 = vmatpush1.bf16.msra.mxu0 0
        %3252 = vmatprep.subr.bf16.mxu0 0
        %3253 = vmatpush1.bf16.msra.mxu0 0
        %3254 = vmatprep.mubr.bf16.mxu0 0
        %3255 = vmatmul.mubr.bf16.gmra.mrb[0].mxu0 %v3100
        %v3256 = vpop.f32.mrb[0].mxu0
        %v3257 = vadd.f32 %v3209, %v3256
        %v3258 = vpop.f32.mrb[0].mxu0
        %v3259 = vpop.f32.mrb[0].mxu0
        %v3260 = vadd.f32 %v3212, %v3259
        %v3261 = vpop.f32.mrb[0].mxu0
        %3262 = vmatprep.mubr.bf16.mxu0 0
        %3263 = vmatmul.mubr.bf16.gmra.mrb[0].mxu0 %v3103
        %v3264 = vpop.f32.mrb[0].mxu0
        %v3265 = vadd.f32 %v3217, %v3264
        %v3266 = vpop.f32.mrb[0].mxu0
        %v3267 = vpop.f32.mrb[0].mxu0
        %v3268 = vpop.f32.mrb[0].mxu0
        %3269 = vdwg.mxu0
        %v3270 = vadd.f32 %v3257, %v1490
        %v3271 = vadd.f32 %v3260, %v1490
        %v3272 = vadd.f32 %v3265, %v1490
        %v3273 = vxor.u32 %v3270, 2147483648
        %v3274 = vxor.u32 %v3271, 2147483648
        %v3275 = vxor.u32 %v3272, 2147483648
        %v3276 = vmul.f32 %v3273, 1.442695
        %v3277 = vpow.pop %v3276
        %v3278 = vmul.f32 %v3274, 1.442695
        %v3279 = vpow.pop %v3278
        %v3280 = vmul.f32 %v3275, 1.442695
        %v3281 = vpow.pop %v3280
        %v3282 = vadd.f32 %v3277, 1.0
        %v3283 = vadd.f32 %v3279, 1.0
        %v3284 = vadd.f32 %v3281, 1.0
        %v3285 = vrcp.pop %v3282
        %v3286 = vmul.f32 1.0, %v3285
        %v3287 = vrcp.pop %v3283
        %v3288 = vmul.f32 1.0, %v3287
        %v3289 = vrcp.pop %v3284
        %v3290 = vmul.f32 1.0, %v3289
        %3291 = vmatprep.subr.bf16.mxu0 0
        %3292 = vmatpush1.bf16.msra.mxu0 %v1524
        %3293 = vmatprep.subr.bf16.mxu0 0
        %3294 = vmatpush1.bf16.msra.mxu0 %v1525
        %3295 = vmatprep.subr.bf16.mxu0 0
        %3296 = vmatpush1.bf16.msra.mxu0 0
        %3297 = vmatprep.subr.bf16.mxu0 0
        %3298 = vmatpush1.bf16.msra.mxu0 0
        %3299 = vmatprep.subr.bf16.mxu0 0
        %3300 = vmatpush1.bf16.msra.mxu0 0
        %3301 = vmatprep.subr.bf16.mxu0 0
        %3302 = vmatpush1.bf16.msra.mxu0 0
        %3303 = vmatprep.subr.bf16.mxu0 0
        %3304 = vmatpush1.bf16.msra.mxu0 0
        %3305 = vmatprep.subr.bf16.mxu0 0
        %3306 = vmatpush1.bf16.msra.mxu0 0
        %3307 = vmatprep.subr.bf16.mxu0 0
        %3308 = vmatpush1.bf16.msra.mxu0 0
        %3309 = vmatprep.subr.bf16.mxu0 0
        %3310 = vmatpush1.bf16.msra.mxu0 0
        %3311 = vmatprep.subr.bf16.mxu0 0
        %3312 = vmatpush1.bf16.msra.mxu0 0
        %3313 = vmatprep.subr.bf16.mxu0 0
        %3314 = vmatpush1.bf16.msra.mxu0 0
        %3315 = vmatprep.subr.bf16.mxu0 0
        %3316 = vmatpush1.bf16.msra.mxu0 0
        %3317 = vmatprep.subr.bf16.mxu0 0
        %3318 = vmatpush1.bf16.msra.mxu0 0
        %3319 = vmatprep.subr.bf16.mxu0 0
        %3320 = vmatpush1.bf16.msra.mxu0 0
        %3321 = vmatprep.subr.bf16.mxu0 0
        %3322 = vmatpush1.bf16.msra.mxu0 0
        %3323 = vmatprep.mubr.bf16.mxu0 0
        %3324 = vmatmul.mubr.bf16.gmra.mrb[0].mxu0 %v3100
        %v3325 = vpop.f32.mrb[0].mxu0
        %v3326 = vadd.f32 %v1515, %v3325
        %v3327 = vpop.f32.mrb[0].mxu0
        %v3328 = vpop.f32.mrb[0].mxu0
        %v3329 = vadd.f32 %v1515, %v3328
        %v3330 = vpop.f32.mrb[0].mxu0
        %3331 = vmatprep.mubr.bf16.mxu0 0
        %3332 = vmatmul.mubr.bf16.gmra.mrb[0].mxu0 %v3103
        %v3333 = vpop.f32.mrb[0].mxu0
        %v3334 = vadd.f32 %v1515, %v3333
        %v3335 = vpop.f32.mrb[0].mxu0
        %v3336 = vpop.f32.mrb[0].mxu0
        %v3337 = vpop.f32.mrb[0].mxu0
        %3338 = vdwg.mxu0
        %3339 = vmatprep.subr.bf16.mxu0 0
        %3340 = vmatpush1.bf16.msra.mxu0 %v1584
        %3341 = vmatprep.subr.bf16.mxu0 0
        %3342 = vmatpush1.bf16.msra.mxu0 0
        %3343 = vmatprep.subr.bf16.mxu0 0
        %3344 = vmatpush1.bf16.msra.mxu0 0
        %3345 = vmatprep.subr.bf16.mxu0 0
        %3346 = vmatpush1.bf16.msra.mxu0 0
        %3347 = vmatprep.subr.bf16.mxu0 0
        %3348 = vmatpush1.bf16.msra.mxu0 0
        %3349 = vmatprep.subr.bf16.mxu0 0
        %3350 = vmatpush1.bf16.msra.mxu0 0
        %3351 = vmatprep.subr.bf16.mxu0 0
        %3352 = vmatpush1.bf16.msra.mxu0 0
        %3353 = vmatprep.subr.bf16.mxu0 0
        %3354 = vmatpush1.bf16.msra.mxu0 0
        %3355 = vmatprep.subr.bf16.mxu0 0
        %3356 = vmatpush1.bf16.msra.mxu0 0
        %3357 = vmatprep.subr.bf16.mxu0 0
        %3358 = vmatpush1.bf16.msra.mxu0 0
        %3359 = vmatprep.subr.bf16.mxu0 0
        %3360 = vmatpush1.bf16.msra.mxu0 0
        %3361 = vmatprep.subr.bf16.mxu0 0
        %3362 = vmatpush1.bf16.msra.mxu0 0
        %3363 = vmatprep.subr.bf16.mxu0 0
        %3364 = vmatpush1.bf16.msra.mxu0 0
        %3365 = vmatprep.subr.bf16.mxu0 0
        %3366 = vmatpush1.bf16.msra.mxu0 0
        %3367 = vmatprep.subr.bf16.mxu0 0
        %3368 = vmatpush1.bf16.msra.mxu0 0
        %3369 = vmatprep.subr.bf16.mxu0 0
        %3370 = vmatpush1.bf16.msra.mxu0 0
        %3371 = vmatprep.mubr.bf16.mxu0 0
        %3372 = vmatmul.mubr.bf16.gmra.mrb[0].mxu0 %v3046
        %v3373 = vpop.f32.mrb[0].mxu0
        %v3374 = vadd.f32 %v1579, %v3373
        %v3375 = vpop.f32.mrb[0].mxu0
        %v3376 = vpop.f32.mrb[0].mxu0
        %v3377 = vadd.f32 %v1579, %v3376
        %v3378 = vpop.f32.mrb[0].mxu0
        %3379 = vmatprep.mubr.bf16.mxu0 0
        %3380 = vmatmul.mubr.bf16.gmra.mrb[0].mxu0 %v3049
        %v3381 = vpop.f32.mrb[0].mxu0
        %v3382 = vadd.f32 %v1579, %v3381
        %v3383 = vpop.f32.mrb[0].mxu0
        %v3384 = vpop.f32.mrb[0].mxu0
        %v3385 = vpop.f32.mrb[0].mxu0
        %3386 = vdwg.mxu0
        %v3387 = vmul.f32 %v3169, %v3374
        %v3388 = vmul.f32 %v3171, %v3377
        %v3389 = vmul.f32 %v3173, %v3382
        %v3390 = vadd.f32 %v3326, %v3387
        %v3391 = vadd.f32 %v3329, %v3388
        %v3392 = vadd.f32 %v3334, %v3389
        %v3393 = vtanh.pop %v3390
        %v3394 = vtanh.pop %v3391
        %v3395 = vtanh.pop %v3392
        %v3396 = vsub.f32 1.0, %v3286
        %v3397 = vsub.f32 1.0, %v3288
        %v3398 = vsub.f32 1.0, %v3290
        %v3399 = vmul.f32 %v3396, %v3393
        %v3400 = vmul.f32 %v3397, %v3394
        %v3401 = vmul.f32 %v3398, %v3395
        %v3402 = vmul.f32 %v3286, %v2820
        %v3403 = vmul.f32 %v3288, %v2821
        %v3404 = vmul.f32 %v3290, %v2822
        %v3405 = vadd.f32 %v3399, %v3402
        %v3406 = vadd.f32 %v3400, %v3403
        %v3407 = vadd.f32 %v3401, %v3404
        %s3408 = scalar_lea.vmem %s492, 72 [#allocation3]
        %v3409 = vld [vmem:[%s3408] sm:$0xff]
        %v3410 = vld [vmem:[%s3408 + $0x8] sm:$0xff]
        %v3411 = vld [vmem:[%s3408 + $0x10] sm:$0xff]
        %v3412 = vmul.f32 %v3405, %v3409
        %v3413 = vmul.f32 %v3406, %v3410
        %v3414 = vmul.f32 %v3407, %v3411
        %v3415 = vadd.f32 %v3412, %v3413
        %v3416 = vadd.f32 %v3415, %v3414
        %s3417 = scalar_lea.vmem %s533, 24
        %3418 = vst.msk [vmem:[%s3417] sm:$0xff] %vm610, %v3416
        %3419 = vmatprep.subr.bf16.mxu0 0
        %3420 = vmatpush1.bf16.msra.mxu0 %v981
        %3421 = vmatprep.subr.bf16.mxu0 0
        %3422 = vmatpush1.bf16.msra.mxu0 %v982
        %3423 = vmatprep.subr.bf16.mxu0 0
        %3424 = vmatpush1.bf16.msra.mxu0 0
        %3425 = vmatprep.subr.bf16.mxu0 0
        %3426 = vmatpush1.bf16.msra.mxu0 0
        %3427 = vmatprep.subr.bf16.mxu0 0
        %3428 = vmatpush1.bf16.msra.mxu0 0
        %3429 = vmatprep.subr.bf16.mxu0 0
        %3430 = vmatpush1.bf16.msra.mxu0 0
        %3431 = vmatprep.subr.bf16.mxu0 0
        %3432 = vmatpush1.bf16.msra.mxu0 0
        %3433 = vmatprep.subr.bf16.mxu0 0
        %3434 = vmatpush1.bf16.msra.mxu0 0
        %3435 = vmatprep.subr.bf16.mxu0 0
        %3436 = vmatpush1.bf16.msra.mxu0 0
        %3437 = vmatprep.subr.bf16.mxu0 0
        %3438 = vmatpush1.bf16.msra.mxu0 0
        %3439 = vmatprep.subr.bf16.mxu0 0
        %3440 = vmatpush1.bf16.msra.mxu0 0
        %3441 = vmatprep.subr.bf16.mxu0 0
        %3442 = vmatpush1.bf16.msra.mxu0 0
        %3443 = vmatprep.subr.bf16.mxu0 0
        %3444 = vmatpush1.bf16.msra.mxu0 0
        %3445 = vmatprep.subr.bf16.mxu0 0
        %3446 = vmatpush1.bf16.msra.mxu0 0
        %3447 = vmatprep.subr.bf16.mxu0 0
        %3448 = vmatpush1.bf16.msra.mxu0 0
        %3449 = vmatprep.subr.bf16.mxu0 0
        %3450 = vmatpush1.bf16.msra.mxu0 0
        %3451 = vmatprep.mubr.bf16.mxu0 0
        %3452 = vmatmul.mubr.bf16.gmra.mrb[0].mxu0 %v3100
        %v3453 = vpop.f32.mrb[0].mxu0
        %v3454 = vadd.f32 0.0, %v3453
        %v3455 = vpop.f32.mrb[0].mxu0
        %v3456 = vpop.f32.mrb[0].mxu0
        %v3457 = vadd.f32 0.0, %v3456
        %v3458 = vpop.f32.mrb[0].mxu0
        %3459 = vmatprep.mubr.bf16.mxu0 0
        %3460 = vmatmul.mubr.bf16.gmra.mrb[0].mxu0 %v3103
        %v3461 = vpop.f32.mrb[0].mxu0
        %v3462 = vadd.f32 0.0, %v3461
        %v3463 = vpop.f32.mrb[0].mxu0
        %v3464 = vpop.f32.mrb[0].mxu0
        %v3465 = vpop.f32.mrb[0].mxu0
        %3466 = vdwg.mxu0
        %3467 = vmatprep.subr.bf16.mxu0 0
        %3468 = vmatpush1.bf16.msra.mxu0 %v1045
        %3469 = vmatprep.subr.bf16.mxu0 0
        %3470 = vmatpush1.bf16.msra.mxu0 %v1046
        %3471 = vmatprep.subr.bf16.mxu0 0
        %3472 = vmatpush1.bf16.msra.mxu0 0
        %3473 = vmatprep.subr.bf16.mxu0 0
        %3474 = vmatpush1.bf16.msra.mxu0 0
        %3475 = vmatprep.subr.bf16.mxu0 0
        %3476 = vmatpush1.bf16.msra.mxu0 0
        %3477 = vmatprep.subr.bf16.mxu0 0
        %3478 = vmatpush1.bf16.msra.mxu0 0
        %3479 = vmatprep.subr.bf16.mxu0 0
        %3480 = vmatpush1.bf16.msra.mxu0 0
        %3481 = vmatprep.subr.bf16.mxu0 0
        %3482 = vmatpush1.bf16.msra.mxu0 0
        %3483 = vmatprep.subr.bf16.mxu0 0
        %3484 = vmatpush1.bf16.msra.mxu0 0
        %3485 = vmatprep.subr.bf16.mxu0 0
        %3486 = vmatpush1.bf16.msra.mxu0 0
        %3487 = vmatprep.subr.bf16.mxu0 0
        %3488 = vmatpush1.bf16.msra.mxu0 0
        %3489 = vmatprep.subr.bf16.mxu0 0
        %3490 = vmatpush1.bf16.msra.mxu0 0
        %3491 = vmatprep.subr.bf16.mxu0 0
        %3492 = vmatpush1.bf16.msra.mxu0 0
        %3493 = vmatprep.subr.bf16.mxu0 0
        %3494 = vmatpush1.bf16.msra.mxu0 0
        %3495 = vmatprep.subr.bf16.mxu0 0
        %3496 = vmatpush1.bf16.msra.mxu0 0
        %3497 = vmatprep.subr.bf16.mxu0 0
        %3498 = vmatpush1.bf16.msra.mxu0 0
        %3499 = vmatprep.mubr.bf16.mxu0 0
        %3500 = vmatmul.mubr.bf16.gmra.mrb[0].mxu0 %v3100
        %v3501 = vpop.f32.mrb[0].mxu0
        %v3502 = vadd.f32 0.0, %v3501
        %v3503 = vpop.f32.mrb[0].mxu0
        %v3504 = vpop.f32.mrb[0].mxu0
        %v3505 = vadd.f32 0.0, %v3504
        %v3506 = vpop.f32.mrb[0].mxu0
        %3507 = vmatprep.mubr.bf16.mxu0 0
        %3508 = vmatmul.mubr.bf16.gmra.mrb[0].mxu0 %v3103
        %v3509 = vpop.f32.mrb[0].mxu0
        %v3510 = vadd.f32 0.0, %v3509
        %v3511 = vpop.f32.mrb[0].mxu0
        %v3512 = vpop.f32.mrb[0].mxu0
        %v3513 = vpop.f32.mrb[0].mxu0
        %3514 = vdwg.mxu0
        %v3515 = vadd.f32 %v721, %v3454
        %v3516 = vadd.f32 %v724, %v3457
        %v3517 = vadd.f32 %v729, %v3462
        %v3518 = vxor.u32 %v3515, 2147483648
        %v3519 = vxor.u32 %v3516, 2147483648
        %v3520 = vxor.u32 %v3517, 2147483648
        %v3521 = vmul.f32 %v3518, 1.442695
        %v3522 = vpow.pop %v3521
        %v3523 = vmul.f32 %v3519, 1.442695
        %v3524 = vpow.pop %v3523
        %v3525 = vmul.f32 %v3520, 1.442695
        %v3526 = vpow.pop %v3525
        %v3527 = vadd.f32 %v3522, 1.0
        %v3528 = vadd.f32 %v3524, 1.0
        %v3529 = vadd.f32 %v3526, 1.0
        %v3530 = vrcp.pop %v3527
        %v3531 = vmul.f32 1.0, %v3530
        %v3532 = vrcp.pop %v3528
        %v3533 = vmul.f32 1.0, %v3532
        %v3534 = vrcp.pop %v3529
        %v3535 = vmul.f32 1.0, %v3534
        %v3536 = vadd.f32 %v836, %v3502
        %v3537 = vadd.f32 %v839, %v3505
        %v3538 = vadd.f32 %v844, %v3510
        %v3539 = vxor.u32 %v3536, 2147483648
        %v3540 = vxor.u32 %v3537, 2147483648
        %v3541 = vxor.u32 %v3538, 2147483648
        %v3542 = vmul.f32 %v3539, 1.442695
        %v3543 = vpow.pop %v3542
        %v3544 = vmul.f32 %v3540, 1.442695
        %v3545 = vpow.pop %v3544
        %v3546 = vmul.f32 %v3541, 1.442695
        %v3547 = vpow.pop %v3546
        %v3548 = vadd.f32 %v3543, 1.0
        %v3549 = vadd.f32 %v3545, 1.0
        %v3550 = vadd.f32 %v3547, 1.0
        %v3551 = vrcp.pop %v3548
        %v3552 = vmul.f32 1.0, %v3551
        %v3553 = vrcp.pop %v3549
        %v3554 = vmul.f32 1.0, %v3553
        %v3555 = vrcp.pop %v3550
        %v3556 = vmul.f32 1.0, %v3555
        %3557 = vmatprep.subr.bf16.mxu0 0
        %3558 = vmatpush1.bf16.msra.mxu0 %v1151
        %3559 = vmatprep.subr.bf16.mxu0 0
        %3560 = vmatpush1.bf16.msra.mxu0 %v1152
        %3561 = vmatprep.subr.bf16.mxu0 0
        %3562 = vmatpush1.bf16.msra.mxu0 0
        %3563 = vmatprep.subr.bf16.mxu0 0
        %3564 = vmatpush1.bf16.msra.mxu0 0
        %3565 = vmatprep.subr.bf16.mxu0 0
        %3566 = vmatpush1.bf16.msra.mxu0 0
        %3567 = vmatprep.subr.bf16.mxu0 0
        %3568 = vmatpush1.bf16.msra.mxu0 0
        %3569 = vmatprep.subr.bf16.mxu0 0
        %3570 = vmatpush1.bf16.msra.mxu0 0
        %3571 = vmatprep.subr.bf16.mxu0 0
        %3572 = vmatpush1.bf16.msra.mxu0 0
        %3573 = vmatprep.subr.bf16.mxu0 0
        %3574 = vmatpush1.bf16.msra.mxu0 0
        %3575 = vmatprep.subr.bf16.mxu0 0
        %3576 = vmatpush1.bf16.msra.mxu0 0
        %3577 = vmatprep.subr.bf16.mxu0 0
        %3578 = vmatpush1.bf16.msra.mxu0 0
        %3579 = vmatprep.subr.bf16.mxu0 0
        %3580 = vmatpush1.bf16.msra.mxu0 0
        %3581 = vmatprep.subr.bf16.mxu0 0
        %3582 = vmatpush1.bf16.msra.mxu0 0
        %3583 = vmatprep.subr.bf16.mxu0 0
        %3584 = vmatpush1.bf16.msra.mxu0 0
        %3585 = vmatprep.subr.bf16.mxu0 0
        %3586 = vmatpush1.bf16.msra.mxu0 0
        %3587 = vmatprep.subr.bf16.mxu0 0
        %3588 = vmatpush1.bf16.msra.mxu0 0
        %3589 = vmatprep.mubr.bf16.mxu0 0
        %3590 = vmatmul.mubr.bf16.gmra.mrb[0].mxu0 %v3100
        %v3591 = vpop.f32.mrb[0].mxu0
        %v3592 = vadd.f32 %v1142, %v3591
        %v3593 = vpop.f32.mrb[0].mxu0
        %v3594 = vpop.f32.mrb[0].mxu0
        %v3595 = vadd.f32 %v1142, %v3594
        %v3596 = vpop.f32.mrb[0].mxu0
        %3597 = vmatprep.mubr.bf16.mxu0 0
        %3598 = vmatmul.mubr.bf16.gmra.mrb[0].mxu0 %v3103
        %v3599 = vpop.f32.mrb[0].mxu0
        %v3600 = vadd.f32 %v1142, %v3599
        %v3601 = vpop.f32.mrb[0].mxu0
        %v3602 = vpop.f32.mrb[0].mxu0
        %v3603 = vpop.f32.mrb[0].mxu0
        %3604 = vdwg.mxu0
        %v3605 = vmul.f32 %v3531, %v3592
        %v3606 = vmul.f32 %v3533, %v3595
        %v3607 = vmul.f32 %v3535, %v3600
        %v3608 = vadd.f32 %v951, %v3605
        %v3609 = vadd.f32 %v954, %v3606
        %v3610 = vadd.f32 %v959, %v3607
        %v3611 = vtanh.pop %v3608
        %v3612 = vtanh.pop %v3609
        %v3613 = vtanh.pop %v3610
        %v3614 = vsub.f32 1.0, %v3552
        %v3615 = vsub.f32 1.0, %v3554
        %v3616 = vsub.f32 1.0, %v3556
        %v3617 = vmul.f32 %v3614, %v3611
        %v3618 = vmul.f32 %v3615, %v3612
        %v3619 = vmul.f32 %v3616, %v3613
        %v3620 = vmul.f32 %v3552, %v3038
        %v3621 = vmul.f32 %v3554, %v3039
        %v3622 = vmul.f32 %v3556, %v3040
        %v3623 = vadd.f32 %v3617, %v3620
        %v3624 = vadd.f32 %v3618, %v3621
        %v3625 = vadd.f32 %v3619, %v3622
        %v3626 = vpack.c.bf16 %v3624, %v3623
        %v3627 = vpack.c.bf16 %v3625, %v3625
        %v3628 = vpack.c.bf16 %v3406, %v3405
        %v3629 = vpack.c.bf16 %v3407, %v3407
        %v3631 = vsel %vm610, %v3628, 0
        %v3634 = vsel %vm610, %v3629, 0
        %3636 = vmatprep.subr.bf16.mxu0 0
        %3637 = vmatpush1.bf16.msra.mxu0 %v1230
        %3638 = vmatprep.subr.bf16.mxu0 0
        %3639 = vmatpush1.bf16.msra.mxu0 0
        %3640 = vmatprep.subr.bf16.mxu0 0
        %3641 = vmatpush1.bf16.msra.mxu0 0
        %3642 = vmatprep.subr.bf16.mxu0 0
        %3643 = vmatpush1.bf16.msra.mxu0 0
        %3644 = vmatprep.subr.bf16.mxu0 0
        %3645 = vmatpush1.bf16.msra.mxu0 0
        %3646 = vmatprep.subr.bf16.mxu0 0
        %3647 = vmatpush1.bf16.msra.mxu0 0
        %3648 = vmatprep.subr.bf16.mxu0 0
        %3649 = vmatpush1.bf16.msra.mxu0 0
        %3650 = vmatprep.subr.bf16.mxu0 0
        %3651 = vmatpush1.bf16.msra.mxu0 0
        %3652 = vmatprep.subr.bf16.mxu0 0
        %3653 = vmatpush1.bf16.msra.mxu0 0
        %3654 = vmatprep.subr.bf16.mxu0 0
        %3655 = vmatpush1.bf16.msra.mxu0 0
        %3656 = vmatprep.subr.bf16.mxu0 0
        %3657 = vmatpush1.bf16.msra.mxu0 0
        %3658 = vmatprep.subr.bf16.mxu0 0
        %3659 = vmatpush1.bf16.msra.mxu0 0
        %3660 = vmatprep.subr.bf16.mxu0 0
        %3661 = vmatpush1.bf16.msra.mxu0 0
        %3662 = vmatprep.subr.bf16.mxu0 0
        %3663 = vmatpush1.bf16.msra.mxu0 0
        %3664 = vmatprep.subr.bf16.mxu0 0
        %3665 = vmatpush1.bf16.msra.mxu0 0
        %3666 = vmatprep.subr.bf16.mxu0 0
        %3667 = vmatpush1.bf16.msra.mxu0 0
        %3668 = vmatprep.mubr.bf16.mxu0 0
        %3669 = vmatmul.mubr.bf16.gmra.mrb[0].mxu0 %v3631
        %v3670 = vpop.f32.mrb[0].mxu0
        %v3671 = vadd.f32 0.0, %v3670
        %v3672 = vpop.f32.mrb[0].mxu0
        %v3673 = vpop.f32.mrb[0].mxu0
        %v3674 = vadd.f32 0.0, %v3673
        %v3675 = vpop.f32.mrb[0].mxu0
        %3676 = vmatprep.mubr.bf16.mxu0 0
        %3677 = vmatmul.mubr.bf16.gmra.mrb[0].mxu0 %v3634
        %v3678 = vpop.f32.mrb[0].mxu0
        %v3679 = vadd.f32 0.0, %v3678
        %v3680 = vpop.f32.mrb[0].mxu0
        %v3681 = vpop.f32.mrb[0].mxu0
        %v3682 = vpop.f32.mrb[0].mxu0
        %3683 = vdwg.mxu0
        %v3685 = vsel %vm985, %v3626, 0
        %v3688 = vsel %vm985, %v3627, 0
        %3690 = vmatprep.subr.bf16.mxu0 0
        %3691 = vmatpush1.bf16.msra.mxu0 %v1290
        %3692 = vmatprep.subr.bf16.mxu0 0
        %3693 = vmatpush1.bf16.msra.mxu0 %v1291
        %3694 = vmatprep.subr.bf16.mxu0 0
        %3695 = vmatpush1.bf16.msra.mxu0 0
        %3696 = vmatprep.subr.bf16.mxu0 0
        %3697 = vmatpush1.bf16.msra.mxu0 0
        %3698 = vmatprep.subr.bf16.mxu0 0
        %3699 = vmatpush1.bf16.msra.mxu0 0
        %3700 = vmatprep.subr.bf16.mxu0 0
        %3701 = vmatpush1.bf16.msra.mxu0 0
        %3702 = vmatprep.subr.bf16.mxu0 0
        %3703 = vmatpush1.bf16.msra.mxu0 0
        %3704 = vmatprep.subr.bf16.mxu0 0
        %3705 = vmatpush1.bf16.msra.mxu0 0
        %3706 = vmatprep.subr.bf16.mxu0 0
        %3707 = vmatpush1.bf16.msra.mxu0 0
        %3708 = vmatprep.subr.bf16.mxu0 0
        %3709 = vmatpush1.bf16.msra.mxu0 0
        %3710 = vmatprep.subr.bf16.mxu0 0
        %3711 = vmatpush1.bf16.msra.mxu0 0
        %3712 = vmatprep.subr.bf16.mxu0 0
        %3713 = vmatpush1.bf16.msra.mxu0 0
        %3714 = vmatprep.subr.bf16.mxu0 0
        %3715 = vmatpush1.bf16.msra.mxu0 0
        %3716 = vmatprep.subr.bf16.mxu0 0
        %3717 = vmatpush1.bf16.msra.mxu0 0
        %3718 = vmatprep.subr.bf16.mxu0 0
        %3719 = vmatpush1.bf16.msra.mxu0 0
        %3720 = vmatprep.subr.bf16.mxu0 0
        %3721 = vmatpush1.bf16.msra.mxu0 0
        %3722 = vmatprep.mubr.bf16.mxu0 0
        %3723 = vmatmul.mubr.bf16.gmra.mrb[0].mxu0 %v3685
        %v3724 = vpop.f32.mrb[0].mxu0
        %v3725 = vadd.f32 %v3671, %v3724
        %v3726 = vpop.f32.mrb[0].mxu0
        %v3727 = vpop.f32.mrb[0].mxu0
        %v3728 = vadd.f32 %v3674, %v3727
        %v3729 = vpop.f32.mrb[0].mxu0
        %3730 = vmatprep.mubr.bf16.mxu0 0
        %3731 = vmatmul.mubr.bf16.gmra.mrb[0].mxu0 %v3688
        %v3732 = vpop.f32.mrb[0].mxu0
        %v3733 = vadd.f32 %v3679, %v3732
        %v3734 = vpop.f32.mrb[0].mxu0
        %v3735 = vpop.f32.mrb[0].mxu0
        %v3736 = vpop.f32.mrb[0].mxu0
        %3737 = vdwg.mxu0
        %v3738 = vadd.f32 %v3725, %v1351
        %v3739 = vadd.f32 %v3728, %v1351
        %v3740 = vadd.f32 %v3733, %v1351
        %v3741 = vxor.u32 %v3738, 2147483648
        %v3742 = vxor.u32 %v3739, 2147483648
        %v3743 = vxor.u32 %v3740, 2147483648
        %v3744 = vmul.f32 %v3741, 1.442695
        %v3745 = vpow.pop %v3744
        %v3746 = vmul.f32 %v3742, 1.442695
        %v3747 = vpow.pop %v3746
        %v3748 = vmul.f32 %v3743, 1.442695
        %v3749 = vpow.pop %v3748
        %v3750 = vadd.f32 %v3745, 1.0
        %v3751 = vadd.f32 %v3747, 1.0
        %v3752 = vadd.f32 %v3749, 1.0
        %v3753 = vrcp.pop %v3750
        %v3754 = vmul.f32 1.0, %v3753
        %v3755 = vrcp.pop %v3751
        %v3756 = vmul.f32 1.0, %v3755
        %v3757 = vrcp.pop %v3752
        %v3758 = vmul.f32 1.0, %v3757
        %3759 = vmatprep.subr.bf16.mxu0 0
        %3760 = vmatpush1.bf16.msra.mxu0 %v1377
        %3761 = vmatprep.subr.bf16.mxu0 0
        %3762 = vmatpush1.bf16.msra.mxu0 0
        %3763 = vmatprep.subr.bf16.mxu0 0
        %3764 = vmatpush1.bf16.msra.mxu0 0
        %3765 = vmatprep.subr.bf16.mxu0 0
        %3766 = vmatpush1.bf16.msra.mxu0 0
        %3767 = vmatprep.subr.bf16.mxu0 0
        %3768 = vmatpush1.bf16.msra.mxu0 0
        %3769 = vmatprep.subr.bf16.mxu0 0
        %3770 = vmatpush1.bf16.msra.mxu0 0
        %3771 = vmatprep.subr.bf16.mxu0 0
        %3772 = vmatpush1.bf16.msra.mxu0 0
        %3773 = vmatprep.subr.bf16.mxu0 0
        %3774 = vmatpush1.bf16.msra.mxu0 0
        %3775 = vmatprep.subr.bf16.mxu0 0
        %3776 = vmatpush1.bf16.msra.mxu0 0
        %3777 = vmatprep.subr.bf16.mxu0 0
        %3778 = vmatpush1.bf16.msra.mxu0 0
        %3779 = vmatprep.subr.bf16.mxu0 0
        %3780 = vmatpush1.bf16.msra.mxu0 0
        %3781 = vmatprep.subr.bf16.mxu0 0
        %3782 = vmatpush1.bf16.msra.mxu0 0
        %3783 = vmatprep.subr.bf16.mxu0 0
        %3784 = vmatpush1.bf16.msra.mxu0 0
        %3785 = vmatprep.subr.bf16.mxu0 0
        %3786 = vmatpush1.bf16.msra.mxu0 0
        %3787 = vmatprep.subr.bf16.mxu0 0
        %3788 = vmatpush1.bf16.msra.mxu0 0
        %3789 = vmatprep.subr.bf16.mxu0 0
        %3790 = vmatpush1.bf16.msra.mxu0 0
        %3791 = vmatprep.mubr.bf16.mxu0 0
        %3792 = vmatmul.mubr.bf16.gmra.mrb[0].mxu0 %v3631
        %v3793 = vpop.f32.mrb[0].mxu0
        %v3794 = vadd.f32 0.0, %v3793
        %v3795 = vpop.f32.mrb[0].mxu0
        %v3796 = vpop.f32.mrb[0].mxu0
        %v3797 = vadd.f32 0.0, %v3796
        %v3798 = vpop.f32.mrb[0].mxu0
        %3799 = vmatprep.mubr.bf16.mxu0 0
        %3800 = vmatmul.mubr.bf16.gmra.mrb[0].mxu0 %v3634
        %v3801 = vpop.f32.mrb[0].mxu0
        %v3802 = vadd.f32 0.0, %v3801
        %v3803 = vpop.f32.mrb[0].mxu0
        %v3804 = vpop.f32.mrb[0].mxu0
        %v3805 = vpop.f32.mrb[0].mxu0
        %3806 = vdwg.mxu0
        %3807 = vmatprep.subr.bf16.mxu0 0
        %3808 = vmatpush1.bf16.msra.mxu0 %v1435
        %3809 = vmatprep.subr.bf16.mxu0 0
        %3810 = vmatpush1.bf16.msra.mxu0 %v1436
        %3811 = vmatprep.subr.bf16.mxu0 0
        %3812 = vmatpush1.bf16.msra.mxu0 0
        %3813 = vmatprep.subr.bf16.mxu0 0
        %3814 = vmatpush1.bf16.msra.mxu0 0
        %3815 = vmatprep.subr.bf16.mxu0 0
        %3816 = vmatpush1.bf16.msra.mxu0 0
        %3817 = vmatprep.subr.bf16.mxu0 0
        %3818 = vmatpush1.bf16.msra.mxu0 0
        %3819 = vmatprep.subr.bf16.mxu0 0
        %3820 = vmatpush1.bf16.msra.mxu0 0
        %3821 = vmatprep.subr.bf16.mxu0 0
        %3822 = vmatpush1.bf16.msra.mxu0 0
        %3823 = vmatprep.subr.bf16.mxu0 0
        %3824 = vmatpush1.bf16.msra.mxu0 0
        %3825 = vmatprep.subr.bf16.mxu0 0
        %3826 = vmatpush1.bf16.msra.mxu0 0
        %3827 = vmatprep.subr.bf16.mxu0 0
        %3828 = vmatpush1.bf16.msra.mxu0 0
        %3829 = vmatprep.subr.bf16.mxu0 0
        %3830 = vmatpush1.bf16.msra.mxu0 0
        %3831 = vmatprep.subr.bf16.mxu0 0
        %3832 = vmatpush1.bf16.msra.mxu0 0
        %3833 = vmatprep.subr.bf16.mxu0 0
        %3834 = vmatpush1.bf16.msra.mxu0 0
        %3835 = vmatprep.subr.bf16.mxu0 0
        %3836 = vmatpush1.bf16.msra.mxu0 0
        %3837 = vmatprep.subr.bf16.mxu0 0
        %3838 = vmatpush1.bf16.msra.mxu0 0
        %3839 = vmatprep.mubr.bf16.mxu0 0
        %3840 = vmatmul.mubr.bf16.gmra.mrb[0].mxu0 %v3685
        %v3841 = vpop.f32.mrb[0].mxu0
        %v3842 = vadd.f32 %v3794, %v3841
        %v3843 = vpop.f32.mrb[0].mxu0
        %v3844 = vpop.f32.mrb[0].mxu0
        %v3845 = vadd.f32 %v3797, %v3844
        %v3846 = vpop.f32.mrb[0].mxu0
        %3847 = vmatprep.mubr.bf16.mxu0 0
        %3848 = vmatmul.mubr.bf16.gmra.mrb[0].mxu0 %v3688
        %v3849 = vpop.f32.mrb[0].mxu0
        %v3850 = vadd.f32 %v3802, %v3849
        %v3851 = vpop.f32.mrb[0].mxu0
        %v3852 = vpop.f32.mrb[0].mxu0
        %v3853 = vpop.f32.mrb[0].mxu0
        %3854 = vdwg.mxu0
        %v3855 = vadd.f32 %v3842, %v1490
        %v3856 = vadd.f32 %v3845, %v1490
        %v3857 = vadd.f32 %v3850, %v1490
        %v3858 = vxor.u32 %v3855, 2147483648
        %v3859 = vxor.u32 %v3856, 2147483648
        %v3860 = vxor.u32 %v3857, 2147483648
        %v3861 = vmul.f32 %v3858, 1.442695
        %v3862 = vpow.pop %v3861
        %v3863 = vmul.f32 %v3859, 1.442695
        %v3864 = vpow.pop %v3863
        %v3865 = vmul.f32 %v3860, 1.442695
        %v3866 = vpow.pop %v3865
        %v3867 = vadd.f32 %v3862, 1.0
        %v3868 = vadd.f32 %v3864, 1.0
        %v3869 = vadd.f32 %v3866, 1.0
        %v3870 = vrcp.pop %v3867
        %v3871 = vmul.f32 1.0, %v3870
        %v3872 = vrcp.pop %v3868
        %v3873 = vmul.f32 1.0, %v3872
        %v3874 = vrcp.pop %v3869
        %v3875 = vmul.f32 1.0, %v3874
        %3876 = vmatprep.subr.bf16.mxu0 0
        %3877 = vmatpush1.bf16.msra.mxu0 %v1524
        %3878 = vmatprep.subr.bf16.mxu0 0
        %3879 = vmatpush1.bf16.msra.mxu0 %v1525
        %3880 = vmatprep.subr.bf16.mxu0 0
        %3881 = vmatpush1.bf16.msra.mxu0 0
        %3882 = vmatprep.subr.bf16.mxu0 0
        %3883 = vmatpush1.bf16.msra.mxu0 0
        %3884 = vmatprep.subr.bf16.mxu0 0
        %3885 = vmatpush1.bf16.msra.mxu0 0
        %3886 = vmatprep.subr.bf16.mxu0 0
        %3887 = vmatpush1.bf16.msra.mxu0 0
        %3888 = vmatprep.subr.bf16.mxu0 0
        %3889 = vmatpush1.bf16.msra.mxu0 0
        %3890 = vmatprep.subr.bf16.mxu0 0
        %3891 = vmatpush1.bf16.msra.mxu0 0
        %3892 = vmatprep.subr.bf16.mxu0 0
        %3893 = vmatpush1.bf16.msra.mxu0 0
        %3894 = vmatprep.subr.bf16.mxu0 0
        %3895 = vmatpush1.bf16.msra.mxu0 0
        %3896 = vmatprep.subr.bf16.mxu0 0
        %3897 = vmatpush1.bf16.msra.mxu0 0
        %3898 = vmatprep.subr.bf16.mxu0 0
        %3899 = vmatpush1.bf16.msra.mxu0 0
        %3900 = vmatprep.subr.bf16.mxu0 0
        %3901 = vmatpush1.bf16.msra.mxu0 0
        %3902 = vmatprep.subr.bf16.mxu0 0
        %3903 = vmatpush1.bf16.msra.mxu0 0
        %3904 = vmatprep.subr.bf16.mxu0 0
        %3905 = vmatpush1.bf16.msra.mxu0 0
        %3906 = vmatprep.subr.bf16.mxu0 0
        %3907 = vmatpush1.bf16.msra.mxu0 0
        %3908 = vmatprep.mubr.bf16.mxu0 0
        %3909 = vmatmul.mubr.bf16.gmra.mrb[0].mxu0 %v3685
        %v3910 = vpop.f32.mrb[0].mxu0
        %v3911 = vadd.f32 %v1515, %v3910
        %v3912 = vpop.f32.mrb[0].mxu0
        %v3913 = vpop.f32.mrb[0].mxu0
        %v3914 = vadd.f32 %v1515, %v3913
        %v3915 = vpop.f32.mrb[0].mxu0
        %3916 = vmatprep.mubr.bf16.mxu0 0
        %3917 = vmatmul.mubr.bf16.gmra.mrb[0].mxu0 %v3688
        %v3918 = vpop.f32.mrb[0].mxu0
        %v3919 = vadd.f32 %v1515, %v3918
        %v3920 = vpop.f32.mrb[0].mxu0
        %v3921 = vpop.f32.mrb[0].mxu0
        %v3922 = vpop.f32.mrb[0].mxu0
        %3923 = vdwg.mxu0
        %3924 = vmatprep.subr.bf16.mxu0 0
        %3925 = vmatpush1.bf16.msra.mxu0 %v1584
        %3926 = vmatprep.subr.bf16.mxu0 0
        %3927 = vmatpush1.bf16.msra.mxu0 0
        %3928 = vmatprep.subr.bf16.mxu0 0
        %3929 = vmatpush1.bf16.msra.mxu0 0
        %3930 = vmatprep.subr.bf16.mxu0 0
        %3931 = vmatpush1.bf16.msra.mxu0 0
        %3932 = vmatprep.subr.bf16.mxu0 0
        %3933 = vmatpush1.bf16.msra.mxu0 0
        %3934 = vmatprep.subr.bf16.mxu0 0
        %3935 = vmatpush1.bf16.msra.mxu0 0
        %3936 = vmatprep.subr.bf16.mxu0 0
        %3937 = vmatpush1.bf16.msra.mxu0 0
        %3938 = vmatprep.subr.bf16.mxu0 0
        %3939 = vmatpush1.bf16.msra.mxu0 0
        %3940 = vmatprep.subr.bf16.mxu0 0
        %3941 = vmatpush1.bf16.msra.mxu0 0
        %3942 = vmatprep.subr.bf16.mxu0 0
        %3943 = vmatpush1.bf16.msra.mxu0 0
        %3944 = vmatprep.subr.bf16.mxu0 0
        %3945 = vmatpush1.bf16.msra.mxu0 0
        %3946 = vmatprep.subr.bf16.mxu0 0
        %3947 = vmatpush1.bf16.msra.mxu0 0
        %3948 = vmatprep.subr.bf16.mxu0 0
        %3949 = vmatpush1.bf16.msra.mxu0 0
        %3950 = vmatprep.subr.bf16.mxu0 0
        %3951 = vmatpush1.bf16.msra.mxu0 0
        %3952 = vmatprep.subr.bf16.mxu0 0
        %3953 = vmatpush1.bf16.msra.mxu0 0
        %3954 = vmatprep.subr.bf16.mxu0 0
        %3955 = vmatpush1.bf16.msra.mxu0 0
        %3956 = vmatprep.mubr.bf16.mxu0 0
        %3957 = vmatmul.mubr.bf16.gmra.mrb[0].mxu0 %v3631
        %v3958 = vpop.f32.mrb[0].mxu0
        %v3959 = vadd.f32 %v1579, %v3958
        %v3960 = vpop.f32.mrb[0].mxu0
        %v3961 = vpop.f32.mrb[0].mxu0
        %v3962 = vadd.f32 %v1579, %v3961
        %v3963 = vpop.f32.mrb[0].mxu0
        %3964 = vmatprep.mubr.bf16.mxu0 0
        %3965 = vmatmul.mubr.bf16.gmra.mrb[0].mxu0 %v3634
        %v3966 = vpop.f32.mrb[0].mxu0
        %v3967 = vadd.f32 %v1579, %v3966
        %v3968 = vpop.f32.mrb[0].mxu0
        %v3969 = vpop.f32.mrb[0].mxu0
        %v3970 = vpop.f32.mrb[0].mxu0
        %3971 = vdwg.mxu0
        %v3972 = vmul.f32 %v3754, %v3959
        %v3973 = vmul.f32 %v3756, %v3962
        %v3974 = vmul.f32 %v3758, %v3967
        %v3975 = vadd.f32 %v3911, %v3972
        %v3976 = vadd.f32 %v3914, %v3973
        %v3977 = vadd.f32 %v3919, %v3974
        %v3978 = vtanh.pop %v3975
        %v3979 = vtanh.pop %v3976
        %v3980 = vtanh.pop %v3977
        %v3981 = vsub.f32 1.0, %v3871
        %v3982 = vsub.f32 1.0, %v3873
        %v3983 = vsub.f32 1.0, %v3875
        %v3984 = vmul.f32 %v3981, %v3978
        %v3985 = vmul.f32 %v3982, %v3979
        %v3986 = vmul.f32 %v3983, %v3980
        %v3987 = vmul.f32 %v3871, %v3405
        %v3988 = vmul.f32 %v3873, %v3406
        %v3989 = vmul.f32 %v3875, %v3407
        %v3990 = vadd.f32 %v3984, %v3987
        %v3991 = vadd.f32 %v3985, %v3988
        %v3992 = vadd.f32 %v3986, %v3989
        %s3993 = scalar_lea.vmem %s492, 96 [#allocation3]
        %v3994 = vld [vmem:[%s3993] sm:$0xff]
        %v3995 = vld [vmem:[%s3993 + $0x8] sm:$0xff]
        %v3996 = vld [vmem:[%s3993 + $0x10] sm:$0xff]
        %v3997 = vmul.f32 %v3990, %v3994
        %v3998 = vmul.f32 %v3991, %v3995
        %v3999 = vmul.f32 %v3992, %v3996
        %v4000 = vadd.f32 %v3997, %v3998
        %v4001 = vadd.f32 %v4000, %v3999
        %s4002 = scalar_lea.vmem %s533, 32
        %4003 = vst.msk [vmem:[%s4002] sm:$0xff] %vm610, %v4001
        %4004 = vmatprep.subr.bf16.mxu0 0
        %4005 = vmatpush1.bf16.msra.mxu0 %v981
        %4006 = vmatprep.subr.bf16.mxu0 0
        %4007 = vmatpush1.bf16.msra.mxu0 %v982
        %4008 = vmatprep.subr.bf16.mxu0 0
        %4009 = vmatpush1.bf16.msra.mxu0 0
        %4010 = vmatprep.subr.bf16.mxu0 0
        %4011 = vmatpush1.bf16.msra.mxu0 0
        %4012 = vmatprep.subr.bf16.mxu0 0
        %4013 = vmatpush1.bf16.msra.mxu0 0
        %4014 = vmatprep.subr.bf16.mxu0 0
        %4015 = vmatpush1.bf16.msra.mxu0 0
        %4016 = vmatprep.subr.bf16.mxu0 0
        %4017 = vmatpush1.bf16.msra.mxu0 0
        %4018 = vmatprep.subr.bf16.mxu0 0
        %4019 = vmatpush1.bf16.msra.mxu0 0
        %4020 = vmatprep.subr.bf16.mxu0 0
        %4021 = vmatpush1.bf16.msra.mxu0 0
        %4022 = vmatprep.subr.bf16.mxu0 0
        %4023 = vmatpush1.bf16.msra.mxu0 0
        %4024 = vmatprep.subr.bf16.mxu0 0
        %4025 = vmatpush1.bf16.msra.mxu0 0
        %4026 = vmatprep.subr.bf16.mxu0 0
        %4027 = vmatpush1.bf16.msra.mxu0 0
        %4028 = vmatprep.subr.bf16.mxu0 0
        %4029 = vmatpush1.bf16.msra.mxu0 0
        %4030 = vmatprep.subr.bf16.mxu0 0
        %4031 = vmatpush1.bf16.msra.mxu0 0
        %4032 = vmatprep.subr.bf16.mxu0 0
        %4033 = vmatpush1.bf16.msra.mxu0 0
        %4034 = vmatprep.subr.bf16.mxu0 0
        %4035 = vmatpush1.bf16.msra.mxu0 0
        %4036 = vmatprep.mubr.bf16.mxu0 0
        %4037 = vmatmul.mubr.bf16.gmra.mrb[0].mxu0 %v3685
        %v4038 = vpop.f32.mrb[0].mxu0
        %v4039 = vadd.f32 0.0, %v4038
        %v4040 = vpop.f32.mrb[0].mxu0
        %v4041 = vpop.f32.mrb[0].mxu0
        %v4042 = vadd.f32 0.0, %v4041
        %v4043 = vpop.f32.mrb[0].mxu0
        %4044 = vmatprep.mubr.bf16.mxu0 0
        %4045 = vmatmul.mubr.bf16.gmra.mrb[0].mxu0 %v3688
        %v4046 = vpop.f32.mrb[0].mxu0
        %v4047 = vadd.f32 0.0, %v4046
        %v4048 = vpop.f32.mrb[0].mxu0
        %v4049 = vpop.f32.mrb[0].mxu0
        %v4050 = vpop.f32.mrb[0].mxu0
        %4051 = vdwg.mxu0
        %4052 = vmatprep.subr.bf16.mxu0 0
        %4053 = vmatpush1.bf16.msra.mxu0 %v1045
        %4054 = vmatprep.subr.bf16.mxu0 0
        %4055 = vmatpush1.bf16.msra.mxu0 %v1046
        %4056 = vmatprep.subr.bf16.mxu0 0
        %4057 = vmatpush1.bf16.msra.mxu0 0
        %4058 = vmatprep.subr.bf16.mxu0 0
        %4059 = vmatpush1.bf16.msra.mxu0 0
        %4060 = vmatprep.subr.bf16.mxu0 0
        %4061 = vmatpush1.bf16.msra.mxu0 0
        %4062 = vmatprep.subr.bf16.mxu0 0
        %4063 = vmatpush1.bf16.msra.mxu0 0
        %4064 = vmatprep.subr.bf16.mxu0 0
        %4065 = vmatpush1.bf16.msra.mxu0 0
        %4066 = vmatprep.subr.bf16.mxu0 0
        %4067 = vmatpush1.bf16.msra.mxu0 0
        %4068 = vmatprep.subr.bf16.mxu0 0
        %4069 = vmatpush1.bf16.msra.mxu0 0
        %4070 = vmatprep.subr.bf16.mxu0 0
        %4071 = vmatpush1.bf16.msra.mxu0 0
        %4072 = vmatprep.subr.bf16.mxu0 0
        %4073 = vmatpush1.bf16.msra.mxu0 0
        %4074 = vmatprep.subr.bf16.mxu0 0
        %4075 = vmatpush1.bf16.msra.mxu0 0
        %4076 = vmatprep.subr.bf16.mxu0 0
        %4077 = vmatpush1.bf16.msra.mxu0 0
        %4078 = vmatprep.subr.bf16.mxu0 0
        %4079 = vmatpush1.bf16.msra.mxu0 0
        %4080 = vmatprep.subr.bf16.mxu0 0
        %4081 = vmatpush1.bf16.msra.mxu0 0
        %4082 = vmatprep.subr.bf16.mxu0 0
        %4083 = vmatpush1.bf16.msra.mxu0 0
        %4084 = vmatprep.mubr.bf16.mxu0 0
        %4085 = vmatmul.mubr.bf16.gmra.mrb[0].mxu0 %v3685
        %v4086 = vpop.f32.mrb[0].mxu0
        %v4087 = vadd.f32 0.0, %v4086
        %v4088 = vpop.f32.mrb[0].mxu0
        %v4089 = vpop.f32.mrb[0].mxu0
        %v4090 = vadd.f32 0.0, %v4089
        %v4091 = vpop.f32.mrb[0].mxu0
        %4092 = vmatprep.mubr.bf16.mxu0 0
        %4093 = vmatmul.mubr.bf16.gmra.mrb[0].mxu0 %v3688
        %v4094 = vpop.f32.mrb[0].mxu0
        %v4095 = vadd.f32 0.0, %v4094
        %v4096 = vpop.f32.mrb[0].mxu0
        %v4097 = vpop.f32.mrb[0].mxu0
        %v4098 = vpop.f32.mrb[0].mxu0
        %4099 = vdwg.mxu0
        %v4100 = vadd.f32 %v732, %v4039
        %v4101 = vadd.f32 %v737, %v4042
        %v4102 = vadd.f32 %v740, %v4047
        %v4103 = vxor.u32 %v4100, 2147483648
        %v4104 = vxor.u32 %v4101, 2147483648
        %v4105 = vxor.u32 %v4102, 2147483648
        %v4106 = vmul.f32 %v4103, 1.442695
        %v4107 = vpow.pop %v4106
        %v4108 = vmul.f32 %v4104, 1.442695
        %v4109 = vpow.pop %v4108
        %v4110 = vmul.f32 %v4105, 1.442695
        %v4111 = vpow.pop %v4110
        %v4112 = vadd.f32 %v4107, 1.0
        %v4113 = vadd.f32 %v4109, 1.0
        %v4114 = vadd.f32 %v4111, 1.0
        %v4115 = vrcp.pop %v4112
        %v4116 = vmul.f32 1.0, %v4115
        %v4117 = vrcp.pop %v4113
        %v4118 = vmul.f32 1.0, %v4117
        %v4119 = vrcp.pop %v4114
        %v4120 = vmul.f32 1.0, %v4119
        %v4121 = vadd.f32 %v847, %v4087
        %v4122 = vadd.f32 %v852, %v4090
        %v4123 = vadd.f32 %v855, %v4095
        %v4124 = vxor.u32 %v4121, 2147483648
        %v4125 = vxor.u32 %v4122, 2147483648
        %v4126 = vxor.u32 %v4123, 2147483648
        %v4127 = vmul.f32 %v4124, 1.442695
        %v4128 = vpow.pop %v4127
        %v4129 = vmul.f32 %v4125, 1.442695
        %v4130 = vpow.pop %v4129
        %v4131 = vmul.f32 %v4126, 1.442695
        %v4132 = vpow.pop %v4131
        %v4133 = vadd.f32 %v4128, 1.0
        %v4134 = vadd.f32 %v4130, 1.0
        %v4135 = vadd.f32 %v4132, 1.0
        %v4136 = vrcp.pop %v4133
        %v4137 = vmul.f32 1.0, %v4136
        %v4138 = vrcp.pop %v4134
        %v4139 = vmul.f32 1.0, %v4138
        %v4140 = vrcp.pop %v4135
        %v4141 = vmul.f32 1.0, %v4140
        %4142 = vmatprep.subr.bf16.mxu0 0
        %4143 = vmatpush1.bf16.msra.mxu0 %v1151
        %4144 = vmatprep.subr.bf16.mxu0 0
        %4145 = vmatpush1.bf16.msra.mxu0 %v1152
        %4146 = vmatprep.subr.bf16.mxu0 0
        %4147 = vmatpush1.bf16.msra.mxu0 0
        %4148 = vmatprep.subr.bf16.mxu0 0
        %4149 = vmatpush1.bf16.msra.mxu0 0
        %4150 = vmatprep.subr.bf16.mxu0 0
        %4151 = vmatpush1.bf16.msra.mxu0 0
        %4152 = vmatprep.subr.bf16.mxu0 0
        %4153 = vmatpush1.bf16.msra.mxu0 0
        %4154 = vmatprep.subr.bf16.mxu0 0
        %4155 = vmatpush1.bf16.msra.mxu0 0
        %4156 = vmatprep.subr.bf16.mxu0 0
        %4157 = vmatpush1.bf16.msra.mxu0 0
        %4158 = vmatprep.subr.bf16.mxu0 0
        %4159 = vmatpush1.bf16.msra.mxu0 0
        %4160 = vmatprep.subr.bf16.mxu0 0
        %4161 = vmatpush1.bf16.msra.mxu0 0
        %4162 = vmatprep.subr.bf16.mxu0 0
        %4163 = vmatpush1.bf16.msra.mxu0 0
        %4164 = vmatprep.subr.bf16.mxu0 0
        %4165 = vmatpush1.bf16.msra.mxu0 0
        %4166 = vmatprep.subr.bf16.mxu0 0
        %4167 = vmatpush1.bf16.msra.mxu0 0
        %4168 = vmatprep.subr.bf16.mxu0 0
        %4169 = vmatpush1.bf16.msra.mxu0 0
        %4170 = vmatprep.subr.bf16.mxu0 0
        %4171 = vmatpush1.bf16.msra.mxu0 0
        %4172 = vmatprep.subr.bf16.mxu0 0
        %4173 = vmatpush1.bf16.msra.mxu0 0
        %4174 = vmatprep.mubr.bf16.mxu0 0
        %4175 = vmatmul.mubr.bf16.gmra.mrb[0].mxu0 %v3685
        %v4176 = vpop.f32.mrb[0].mxu0
        %v4177 = vadd.f32 %v1142, %v4176
        %v4178 = vpop.f32.mrb[0].mxu0
        %v4179 = vpop.f32.mrb[0].mxu0
        %v4180 = vadd.f32 %v1142, %v4179
        %v4181 = vpop.f32.mrb[0].mxu0
        %4182 = vmatprep.mubr.bf16.mxu0 0
        %4183 = vmatmul.mubr.bf16.gmra.mrb[0].mxu0 %v3688
        %v4184 = vpop.f32.mrb[0].mxu0
        %v4185 = vadd.f32 %v1142, %v4184
        %v4186 = vpop.f32.mrb[0].mxu0
        %v4187 = vpop.f32.mrb[0].mxu0
        %v4188 = vpop.f32.mrb[0].mxu0
        %4189 = vdwg.mxu0
        %v4190 = vmul.f32 %v4116, %v4177
        %v4191 = vmul.f32 %v4118, %v4180
        %v4192 = vmul.f32 %v4120, %v4185
        %v4193 = vadd.f32 %v962, %v4190
        %v4194 = vadd.f32 %v967, %v4191
        %v4195 = vadd.f32 %v970, %v4192
        %v4196 = vtanh.pop %v4193
        %v4197 = vtanh.pop %v4194
        %v4198 = vtanh.pop %v4195
        %v4199 = vsub.f32 1.0, %v4137
        %v4200 = vsub.f32 1.0, %v4139
        %v4201 = vsub.f32 1.0, %v4141
        %v4202 = vmul.f32 %v4199, %v4196
        %v4203 = vmul.f32 %v4200, %v4197
        %v4204 = vmul.f32 %v4201, %v4198
        %v4205 = vmul.f32 %v4137, %v3623
        %v4206 = vmul.f32 %v4139, %v3624
        %v4207 = vmul.f32 %v4141, %v3625
        %v4208 = vadd.f32 %v4202, %v4205
        %v4209 = vadd.f32 %v4203, %v4206
        %v4210 = vadd.f32 %v4204, %v4207
        %v4211 = vpack.c.bf16 %v4209, %v4208
        %v4212 = vpack.c.bf16 %v4210, %v4210
        %v4213 = vpack.c.bf16 %v3991, %v3990
        %v4214 = vpack.c.bf16 %v3992, %v3992
        %v4216 = vsel %vm610, %v4213, 0
        %v4219 = vsel %vm610, %v4214, 0
        %4221 = vmatprep.subr.bf16.mxu0 0
        %4222 = vmatpush1.bf16.msra.mxu0 %v1230
        %4223 = vmatprep.subr.bf16.mxu0 0
        %4224 = vmatpush1.bf16.msra.mxu0 0
        %4225 = vmatprep.subr.bf16.mxu0 0
        %4226 = vmatpush1.bf16.msra.mxu0 0
        %4227 = vmatprep.subr.bf16.mxu0 0
        %4228 = vmatpush1.bf16.msra.mxu0 0
        %4229 = vmatprep.subr.bf16.mxu0 0
        %4230 = vmatpush1.bf16.msra.mxu0 0
        %4231 = vmatprep.subr.bf16.mxu0 0
        %4232 = vmatpush1.bf16.msra.mxu0 0
        %4233 = vmatprep.subr.bf16.mxu0 0
        %4234 = vmatpush1.bf16.msra.mxu0 0
        %4235 = vmatprep.subr.bf16.mxu0 0
        %4236 = vmatpush1.bf16.msra.mxu0 0
        %4237 = vmatprep.subr.bf16.mxu0 0
        %4238 = vmatpush1.bf16.msra.mxu0 0
        %4239 = vmatprep.subr.bf16.mxu0 0
        %4240 = vmatpush1.bf16.msra.mxu0 0
        %4241 = vmatprep.subr.bf16.mxu0 0
        %4242 = vmatpush1.bf16.msra.mxu0 0
        %4243 = vmatprep.subr.bf16.mxu0 0
        %4244 = vmatpush1.bf16.msra.mxu0 0
        %4245 = vmatprep.subr.bf16.mxu0 0
        %4246 = vmatpush1.bf16.msra.mxu0 0
        %4247 = vmatprep.subr.bf16.mxu0 0
        %4248 = vmatpush1.bf16.msra.mxu0 0
        %4249 = vmatprep.subr.bf16.mxu0 0
        %4250 = vmatpush1.bf16.msra.mxu0 0
        %4251 = vmatprep.subr.bf16.mxu0 0
        %4252 = vmatpush1.bf16.msra.mxu0 0
        %4253 = vmatprep.mubr.bf16.mxu0 0
        %4254 = vmatmul.mubr.bf16.gmra.mrb[0].mxu0 %v4216
        %v4255 = vpop.f32.mrb[0].mxu0
        %v4256 = vadd.f32 0.0, %v4255
        %v4257 = vpop.f32.mrb[0].mxu0
        %v4258 = vpop.f32.mrb[0].mxu0
        %v4259 = vadd.f32 0.0, %v4258
        %v4260 = vpop.f32.mrb[0].mxu0
        %4261 = vmatprep.mubr.bf16.mxu0 0
        %4262 = vmatmul.mubr.bf16.gmra.mrb[0].mxu0 %v4219
        %v4263 = vpop.f32.mrb[0].mxu0
        %v4264 = vadd.f32 0.0, %v4263
        %v4265 = vpop.f32.mrb[0].mxu0
        %v4266 = vpop.f32.mrb[0].mxu0
        %v4267 = vpop.f32.mrb[0].mxu0
        %4268 = vdwg.mxu0
        %v4270 = vsel %vm985, %v4211, 0
        %v4273 = vsel %vm985, %v4212, 0
        %4275 = vmatprep.subr.bf16.mxu0 0
        %4276 = vmatpush1.bf16.msra.mxu0 %v1290
        %4277 = vmatprep.subr.bf16.mxu0 0
        %4278 = vmatpush1.bf16.msra.mxu0 %v1291
        %4279 = vmatprep.subr.bf16.mxu0 0
        %4280 = vmatpush1.bf16.msra.mxu0 0
        %4281 = vmatprep.subr.bf16.mxu0 0
        %4282 = vmatpush1.bf16.msra.mxu0 0
        %4283 = vmatprep.subr.bf16.mxu0 0
        %4284 = vmatpush1.bf16.msra.mxu0 0
        %4285 = vmatprep.subr.bf16.mxu0 0
        %4286 = vmatpush1.bf16.msra.mxu0 0
        %4287 = vmatprep.subr.bf16.mxu0 0
        %4288 = vmatpush1.bf16.msra.mxu0 0
        %4289 = vmatprep.subr.bf16.mxu0 0
        %4290 = vmatpush1.bf16.msra.mxu0 0
        %4291 = vmatprep.subr.bf16.mxu0 0
        %4292 = vmatpush1.bf16.msra.mxu0 0
        %4293 = vmatprep.subr.bf16.mxu0 0
        %4294 = vmatpush1.bf16.msra.mxu0 0
        %4295 = vmatprep.subr.bf16.mxu0 0
        %4296 = vmatpush1.bf16.msra.mxu0 0
        %4297 = vmatprep.subr.bf16.mxu0 0
        %4298 = vmatpush1.bf16.msra.mxu0 0
        %4299 = vmatprep.subr.bf16.mxu0 0
        %4300 = vmatpush1.bf16.msra.mxu0 0
        %4301 = vmatprep.subr.bf16.mxu0 0
        %4302 = vmatpush1.bf16.msra.mxu0 0
        %4303 = vmatprep.subr.bf16.mxu0 0
        %4304 = vmatpush1.bf16.msra.mxu0 0
        %4305 = vmatprep.subr.bf16.mxu0 0
        %4306 = vmatpush1.bf16.msra.mxu0 0
        %4307 = vmatprep.mubr.bf16.mxu0 0
        %4308 = vmatmul.mubr.bf16.gmra.mrb[0].mxu0 %v4270
        %v4309 = vpop.f32.mrb[0].mxu0
        %v4310 = vadd.f32 %v4256, %v4309
        %v4311 = vpop.f32.mrb[0].mxu0
        %v4312 = vpop.f32.mrb[0].mxu0
        %v4313 = vadd.f32 %v4259, %v4312
        %v4314 = vpop.f32.mrb[0].mxu0
        %4315 = vmatprep.mubr.bf16.mxu0 0
        %4316 = vmatmul.mubr.bf16.gmra.mrb[0].mxu0 %v4273
        %v4317 = vpop.f32.mrb[0].mxu0
        %v4318 = vadd.f32 %v4264, %v4317
        %v4319 = vpop.f32.mrb[0].mxu0
        %v4320 = vpop.f32.mrb[0].mxu0
        %v4321 = vpop.f32.mrb[0].mxu0
        %4322 = vdwg.mxu0
        %v4323 = vadd.f32 %v4310, %v1351
        %v4324 = vadd.f32 %v4313, %v1351
        %v4325 = vadd.f32 %v4318, %v1351
        %v4326 = vxor.u32 %v4323, 2147483648
        %v4327 = vxor.u32 %v4324, 2147483648
        %v4328 = vxor.u32 %v4325, 2147483648
        %v4329 = vmul.f32 %v4326, 1.442695
        %v4330 = vpow.pop %v4329
        %v4331 = vmul.f32 %v4327, 1.442695
        %v4332 = vpow.pop %v4331
        %v4333 = vmul.f32 %v4328, 1.442695
        %v4334 = vpow.pop %v4333
        %v4335 = vadd.f32 %v4330, 1.0
        %v4336 = vadd.f32 %v4332, 1.0
        %v4337 = vadd.f32 %v4334, 1.0
        %v4338 = vrcp.pop %v4335
        %v4339 = vmul.f32 1.0, %v4338
        %v4340 = vrcp.pop %v4336
        %v4341 = vmul.f32 1.0, %v4340
        %v4342 = vrcp.pop %v4337
        %v4343 = vmul.f32 1.0, %v4342
        %4344 = vmatprep.subr.bf16.mxu0 0
        %4345 = vmatpush1.bf16.msra.mxu0 %v1377
        %4346 = vmatprep.subr.bf16.mxu0 0
        %4347 = vmatpush1.bf16.msra.mxu0 0
        %4348 = vmatprep.subr.bf16.mxu0 0
        %4349 = vmatpush1.bf16.msra.mxu0 0
        %4350 = vmatprep.subr.bf16.mxu0 0
        %4351 = vmatpush1.bf16.msra.mxu0 0
        %4352 = vmatprep.subr.bf16.mxu0 0
        %4353 = vmatpush1.bf16.msra.mxu0 0
        %4354 = vmatprep.subr.bf16.mxu0 0
        %4355 = vmatpush1.bf16.msra.mxu0 0
        %4356 = vmatprep.subr.bf16.mxu0 0
        %4357 = vmatpush1.bf16.msra.mxu0 0
        %4358 = vmatprep.subr.bf16.mxu0 0
        %4359 = vmatpush1.bf16.msra.mxu0 0
        %4360 = vmatprep.subr.bf16.mxu0 0
        %4361 = vmatpush1.bf16.msra.mxu0 0
        %4362 = vmatprep.subr.bf16.mxu0 0
        %4363 = vmatpush1.bf16.msra.mxu0 0
        %4364 = vmatprep.subr.bf16.mxu0 0
        %4365 = vmatpush1.bf16.msra.mxu0 0
        %4366 = vmatprep.subr.bf16.mxu0 0
        %4367 = vmatpush1.bf16.msra.mxu0 0
        %4368 = vmatprep.subr.bf16.mxu0 0
        %4369 = vmatpush1.bf16.msra.mxu0 0
        %4370 = vmatprep.subr.bf16.mxu0 0
        %4371 = vmatpush1.bf16.msra.mxu0 0
        %4372 = vmatprep.subr.bf16.mxu0 0
        %4373 = vmatpush1.bf16.msra.mxu0 0
        %4374 = vmatprep.subr.bf16.mxu0 0
        %4375 = vmatpush1.bf16.msra.mxu0 0
        %4376 = vmatprep.mubr.bf16.mxu0 0
        %4377 = vmatmul.mubr.bf16.gmra.mrb[0].mxu0 %v4216
        %v4378 = vpop.f32.mrb[0].mxu0
        %v4379 = vadd.f32 0.0, %v4378
        %v4380 = vpop.f32.mrb[0].mxu0
        %v4381 = vpop.f32.mrb[0].mxu0
        %v4382 = vadd.f32 0.0, %v4381
        %v4383 = vpop.f32.mrb[0].mxu0
        %4384 = vmatprep.mubr.bf16.mxu0 0
        %4385 = vmatmul.mubr.bf16.gmra.mrb[0].mxu0 %v4219
        %v4386 = vpop.f32.mrb[0].mxu0
        %v4387 = vadd.f32 0.0, %v4386
        %v4388 = vpop.f32.mrb[0].mxu0
        %v4389 = vpop.f32.mrb[0].mxu0
        %v4390 = vpop.f32.mrb[0].mxu0
        %4391 = vdwg.mxu0
        %4392 = vmatprep.subr.bf16.mxu0 0
        %4393 = vmatpush1.bf16.msra.mxu0 %v1435
        %4394 = vmatprep.subr.bf16.mxu0 0
        %4395 = vmatpush1.bf16.msra.mxu0 %v1436
        %4396 = vmatprep.subr.bf16.mxu0 0
        %4397 = vmatpush1.bf16.msra.mxu0 0
        %4398 = vmatprep.subr.bf16.mxu0 0
        %4399 = vmatpush1.bf16.msra.mxu0 0
        %4400 = vmatprep.subr.bf16.mxu0 0
        %4401 = vmatpush1.bf16.msra.mxu0 0
        %4402 = vmatprep.subr.bf16.mxu0 0
        %4403 = vmatpush1.bf16.msra.mxu0 0
        %4404 = vmatprep.subr.bf16.mxu0 0
        %4405 = vmatpush1.bf16.msra.mxu0 0
        %4406 = vmatprep.subr.bf16.mxu0 0
        %4407 = vmatpush1.bf16.msra.mxu0 0
        %4408 = vmatprep.subr.bf16.mxu0 0
        %4409 = vmatpush1.bf16.msra.mxu0 0
        %4410 = vmatprep.subr.bf16.mxu0 0
        %4411 = vmatpush1.bf16.msra.mxu0 0
        %4412 = vmatprep.subr.bf16.mxu0 0
        %4413 = vmatpush1.bf16.msra.mxu0 0
        %4414 = vmatprep.subr.bf16.mxu0 0
        %4415 = vmatpush1.bf16.msra.mxu0 0
        %4416 = vmatprep.subr.bf16.mxu0 0
        %4417 = vmatpush1.bf16.msra.mxu0 0
        %4418 = vmatprep.subr.bf16.mxu0 0
        %4419 = vmatpush1.bf16.msra.mxu0 0
        %4420 = vmatprep.subr.bf16.mxu0 0
        %4421 = vmatpush1.bf16.msra.mxu0 0
        %4422 = vmatprep.subr.bf16.mxu0 0
        %4423 = vmatpush1.bf16.msra.mxu0 0
        %4424 = vmatprep.mubr.bf16.mxu0 0
        %4425 = vmatmul.mubr.bf16.gmra.mrb[0].mxu0 %v4270
        %v4426 = vpop.f32.mrb[0].mxu0
        %v4427 = vadd.f32 %v4379, %v4426
        %v4428 = vpop.f32.mrb[0].mxu0
        %v4429 = vpop.f32.mrb[0].mxu0
        %v4430 = vadd.f32 %v4382, %v4429
        %v4431 = vpop.f32.mrb[0].mxu0
        %4432 = vmatprep.mubr.bf16.mxu0 0
        %4433 = vmatmul.mubr.bf16.gmra.mrb[0].mxu0 %v4273
        %v4434 = vpop.f32.mrb[0].mxu0
        %v4435 = vadd.f32 %v4387, %v4434
        %v4436 = vpop.f32.mrb[0].mxu0
        %v4437 = vpop.f32.mrb[0].mxu0
        %v4438 = vpop.f32.mrb[0].mxu0
        %4439 = vdwg.mxu0
        %v4440 = vadd.f32 %v4427, %v1490
        %v4441 = vadd.f32 %v4430, %v1490
        %v4442 = vadd.f32 %v4435, %v1490
        %v4443 = vxor.u32 %v4440, 2147483648
        %v4444 = vxor.u32 %v4441, 2147483648
        %v4445 = vxor.u32 %v4442, 2147483648
        %v4446 = vmul.f32 %v4443, 1.442695
        %v4447 = vpow.pop %v4446
        %v4448 = vmul.f32 %v4444, 1.442695
        %v4449 = vpow.pop %v4448
        %v4450 = vmul.f32 %v4445, 1.442695
        %v4451 = vpow.pop %v4450
        %v4452 = vadd.f32 %v4447, 1.0
        %v4453 = vadd.f32 %v4449, 1.0
        %v4454 = vadd.f32 %v4451, 1.0
        %v4455 = vrcp.pop %v4452
        %v4456 = vmul.f32 1.0, %v4455
        %v4457 = vrcp.pop %v4453
        %v4458 = vmul.f32 1.0, %v4457
        %v4459 = vrcp.pop %v4454
        %v4460 = vmul.f32 1.0, %v4459
        %4461 = vmatprep.subr.bf16.mxu0 0
        %4462 = vmatpush1.bf16.msra.mxu0 %v1524
        %4463 = vmatprep.subr.bf16.mxu0 0
        %4464 = vmatpush1.bf16.msra.mxu0 %v1525
        %4465 = vmatprep.subr.bf16.mxu0 0
        %4466 = vmatpush1.bf16.msra.mxu0 0
        %4467 = vmatprep.subr.bf16.mxu0 0
        %4468 = vmatpush1.bf16.msra.mxu0 0
        %4469 = vmatprep.subr.bf16.mxu0 0
        %4470 = vmatpush1.bf16.msra.mxu0 0
        %4471 = vmatprep.subr.bf16.mxu0 0
        %4472 = vmatpush1.bf16.msra.mxu0 0
        %4473 = vmatprep.subr.bf16.mxu0 0
        %4474 = vmatpush1.bf16.msra.mxu0 0
        %4475 = vmatprep.subr.bf16.mxu0 0
        %4476 = vmatpush1.bf16.msra.mxu0 0
        %4477 = vmatprep.subr.bf16.mxu0 0
        %4478 = vmatpush1.bf16.msra.mxu0 0
        %4479 = vmatprep.subr.bf16.mxu0 0
        %4480 = vmatpush1.bf16.msra.mxu0 0
        %4481 = vmatprep.subr.bf16.mxu0 0
        %4482 = vmatpush1.bf16.msra.mxu0 0
        %4483 = vmatprep.subr.bf16.mxu0 0
        %4484 = vmatpush1.bf16.msra.mxu0 0
        %4485 = vmatprep.subr.bf16.mxu0 0
        %4486 = vmatpush1.bf16.msra.mxu0 0
        %4487 = vmatprep.subr.bf16.mxu0 0
        %4488 = vmatpush1.bf16.msra.mxu0 0
        %4489 = vmatprep.subr.bf16.mxu0 0
        %4490 = vmatpush1.bf16.msra.mxu0 0
        %4491 = vmatprep.subr.bf16.mxu0 0
        %4492 = vmatpush1.bf16.msra.mxu0 0
        %4493 = vmatprep.mubr.bf16.mxu0 0
        %4494 = vmatmul.mubr.bf16.gmra.mrb[0].mxu0 %v4270
        %v4495 = vpop.f32.mrb[0].mxu0
        %v4496 = vadd.f32 %v1515, %v4495
        %v4497 = vpop.f32.mrb[0].mxu0
        %v4498 = vpop.f32.mrb[0].mxu0
        %v4499 = vadd.f32 %v1515, %v4498
        %v4500 = vpop.f32.mrb[0].mxu0
        %4501 = vmatprep.mubr.bf16.mxu0 0
        %4502 = vmatmul.mubr.bf16.gmra.mrb[0].mxu0 %v4273
        %v4503 = vpop.f32.mrb[0].mxu0
        %v4504 = vadd.f32 %v1515, %v4503
        %v4505 = vpop.f32.mrb[0].mxu0
        %v4506 = vpop.f32.mrb[0].mxu0
        %v4507 = vpop.f32.mrb[0].mxu0
        %4508 = vdwg.mxu0
        %4509 = vmatprep.subr.bf16.mxu0 0
        %4510 = vmatpush1.bf16.msra.mxu0 %v1584
        %4511 = vmatprep.subr.bf16.mxu0 0
        %4512 = vmatpush1.bf16.msra.mxu0 0
        %4513 = vmatprep.subr.bf16.mxu0 0
        %4514 = vmatpush1.bf16.msra.mxu0 0
        %4515 = vmatprep.subr.bf16.mxu0 0
        %4516 = vmatpush1.bf16.msra.mxu0 0
        %4517 = vmatprep.subr.bf16.mxu0 0
        %4518 = vmatpush1.bf16.msra.mxu0 0
        %4519 = vmatprep.subr.bf16.mxu0 0
        %4520 = vmatpush1.bf16.msra.mxu0 0
        %4521 = vmatprep.subr.bf16.mxu0 0
        %4522 = vmatpush1.bf16.msra.mxu0 0
        %4523 = vmatprep.subr.bf16.mxu0 0
        %4524 = vmatpush1.bf16.msra.mxu0 0
        %4525 = vmatprep.subr.bf16.mxu0 0
        %4526 = vmatpush1.bf16.msra.mxu0 0
        %4527 = vmatprep.subr.bf16.mxu0 0
        %4528 = vmatpush1.bf16.msra.mxu0 0
        %4529 = vmatprep.subr.bf16.mxu0 0
        %4530 = vmatpush1.bf16.msra.mxu0 0
        %4531 = vmatprep.subr.bf16.mxu0 0
        %4532 = vmatpush1.bf16.msra.mxu0 0
        %4533 = vmatprep.subr.bf16.mxu0 0
        %4534 = vmatpush1.bf16.msra.mxu0 0
        %4535 = vmatprep.subr.bf16.mxu0 0
        %4536 = vmatpush1.bf16.msra.mxu0 0
        %4537 = vmatprep.subr.bf16.mxu0 0
        %4538 = vmatpush1.bf16.msra.mxu0 0
        %4539 = vmatprep.subr.bf16.mxu0 0
        %4540 = vmatpush1.bf16.msra.mxu0 0
        %4541 = vmatprep.mubr.bf16.mxu0 0
        %4542 = vmatmul.mubr.bf16.gmra.mrb[0].mxu0 %v4216
        %v4543 = vpop.f32.mrb[0].mxu0
        %v4544 = vadd.f32 %v1579, %v4543
        %v4545 = vpop.f32.mrb[0].mxu0
        %v4546 = vpop.f32.mrb[0].mxu0
        %v4547 = vadd.f32 %v1579, %v4546
        %v4548 = vpop.f32.mrb[0].mxu0
        %4549 = vmatprep.mubr.bf16.mxu0 0
        %4550 = vmatmul.mubr.bf16.gmra.mrb[0].mxu0 %v4219
        %v4551 = vpop.f32.mrb[0].mxu0
        %v4552 = vadd.f32 %v1579, %v4551
        %v4553 = vpop.f32.mrb[0].mxu0
        %v4554 = vpop.f32.mrb[0].mxu0
        %v4555 = vpop.f32.mrb[0].mxu0
        %4556 = vdwg.mxu0
        %v4557 = vmul.f32 %v4339, %v4544
        %v4558 = vmul.f32 %v4341, %v4547
        %v4559 = vmul.f32 %v4343, %v4552
        %v4560 = vadd.f32 %v4496, %v4557
        %v4561 = vadd.f32 %v4499, %v4558
        %v4562 = vadd.f32 %v4504, %v4559
        %v4563 = vtanh.pop %v4560
        %v4564 = vtanh.pop %v4561
        %v4565 = vtanh.pop %v4562
        %v4566 = vsub.f32 1.0, %v4456
        %v4567 = vsub.f32 1.0, %v4458
        %v4568 = vsub.f32 1.0, %v4460
        %v4569 = vmul.f32 %v4566, %v4563
        %v4570 = vmul.f32 %v4567, %v4564
        %v4571 = vmul.f32 %v4568, %v4565
        %v4572 = vmul.f32 %v4456, %v3990
        %v4573 = vmul.f32 %v4458, %v3991
        %v4574 = vmul.f32 %v4460, %v3992
        %v4575 = vadd.f32 %v4569, %v4572
        %v4576 = vadd.f32 %v4570, %v4573
        %v4577 = vadd.f32 %v4571, %v4574
        %s4578 = scalar_lea.vmem %s492, 120 [#allocation3]
        %v4579 = vld [vmem:[%s4578] sm:$0xff]
        %v4580 = vld [vmem:[%s4578 + $0x8] sm:$0xff]
        %v4581 = vld [vmem:[%s4578 + $0x10] sm:$0xff]
        %v4582 = vmul.f32 %v4575, %v4579
        %v4583 = vmul.f32 %v4576, %v4580
        %v4584 = vmul.f32 %v4577, %v4581
        %v4585 = vadd.f32 %v4582, %v4583
        %v4586 = vadd.f32 %v4585, %v4584
        %s4587 = scalar_lea.vmem %s533, 40
        %4588 = vst.msk [vmem:[%s4587] sm:$0xff] %vm610, %v4586
        %p4589 = scmp.lt.s32.totalorder %s19, 1
        %s4590 = scalar_select %p4589, %s19, 1
        %s4591 = smul.addr %s4590, 6
        %s4592 = smul.addr %s4591, 8
        %s4593 = scalar_lea.vmem %s8, %s4592
        // Predicated region
        $region129: #{gru_model_forward.1} parent=119 // pred_check
          %p4594 = pneg %p215
        $region130: #{gru_model_forward.1} parent=119 // pred_check_branch
          %4596 = sbr.rel (%p4594) target = $region132
        $region131: #{gru_model_forward.1} parent=119 // pred_region
          _
        $region132: #{gru_model_forward.1} parent=119 // pred_fallthru
          _
      $region120: #{gru_model_forward.1} parent=5 // pred_fallthru
        _
      %p4597 = scmp.le.s32.totalorder 2, %s14
      // Predicated region
      $region133: #{gru_model_forward.1} parent=5 // pred_check
        %p4598 = pneg %p4597
      $region134: #{gru_model_forward.1} parent=5 // pred_check_branch
        %4600 = sbr.rel (%p4598) target = $region136
      $region135: #{gru_model_forward.1} parent=5 // pred_region
        %s4601 = ssub.s32 %s14, 2
        // Predicated region
        $region137: #{gru_model_forward.1} parent=135 // pred_check
          %p4602 = pneg %p221
        $region138: #{gru_model_forward.1} parent=135 // pred_check_branch
          %4604 = sbr.rel (%p4602) target = $region140
        $region139: #{gru_model_forward.1} parent=135 // pred_region
          %p4605 = scmp.lt.s32.totalorder %s20, 1
          %s4606 = scalar_select %p4605, %s20, 1
          %s4607 = smul.addr %s4606, 6
          %s4608 = smul.addr %s4607, 8
          %s4609 = scalar_lea.vmem %s8, %s4608
        $region140: #{gru_model_forward.1} parent=135 // pred_fallthru
          _
      $region136: #{gru_model_forward.1} parent=5 // pred_fallthru
        _
    $region6: #{gru_model_forward.1} parent=1 // loop_footer
      %s18 = sadd.s32 1, %s14
    $region7: #{gru_model_forward.1} parent=1 // loop_footer_branch
      %13 = sbr.rel target = $region3
    $region8: #{gru_model_forward.1} parent=1 // loop_exit
      _

</llo_original>
